<compile_context>
chip_gen: v5e
topology: v5e:2x2
jax: 0.10.0
libtpu: 0.0.40
codegen_flags: <defaults>
</compile_context>

<pallas_src>
import functools

import jax
import jax.numpy as jnp
import numpy as np
from jax.experimental import pallas as pl
from jax.experimental.pallas import tpu as pltpu


# --------------------------------------------------------------------------------------
# VMEM budget / tiling helpers
# --------------------------------------------------------------------------------------
_VMEM_LIMIT = None


def _vmem_limit():
    """Scoped-VMEM limit: explicit so the same code stays within v7x's 64 MiB part."""
    global _VMEM_LIMIT
    if _VMEM_LIMIT is None:
        try:
            cap = pltpu.get_tpu_info().vmem_capacity_bytes   # 64 MiB v7x, 128 MiB v5e/v6e
            _VMEM_LIMIT = min(48 * 1024 * 1024, (cap * 3) // 4)
        except Exception:  # fall back to a conservative, universally-valid limit
            _VMEM_LIMIT = 32 * 1024 * 1024
    return int(_VMEM_LIMIT)


def _choose_row_tile(H, W, cin, cout, itemsize, budget):
    """Largest divisor of H whose per-step working set fits the VMEM budget."""
    for th in sorted((d for d in range(1, H + 1) if H % d == 0), reverse=True):
        if th > 128:
            continue
        io = 2 * th * W * (cin + cout) * itemsize      # double-buffered input + output tiles
        act = 16 * (th + 2) * W * cin                  # f32 activation strip + folded 3-tap slab
        acc = 4 * th * W * cout                        # f32 accumulator
        wts = 2 * 9 * cin * cout * itemsize            # conv weight slab (+ shortcut)
        if io + act + acc + wts <= budget:
            return th
    return 1


# --------------------------------------------------------------------------------------
# Kernels
# --------------------------------------------------------------------------------------
def gn_stats_kernel(x_ref, s_ref):
    """Per-channel sum / sum-of-squares of a row tile, accumulated across the H grid axis."""
    t = pl.program_id(1)

    @pl.when(t == 0)
    def _init():
        s_ref[...] = jnp.zeros_like(s_ref)

    x = x_ref[0].astype(jnp.float32)                    # (TH, W, C)
    x2 = x.reshape(-1, x.shape[-1])                     # (TH*W, C)
    s = jnp.sum(x2, axis=0, keepdims=True)              # (1, C)
    ss = jnp.sum(x2 * x2, axis=0, keepdims=True)        # (1, C)
    s_ref[0] += jnp.concatenate([s, ss], axis=0)        # (2, C)


def _gn_silu_conv3x3(x_top, x_mid, x_bot, sc_ref, sh_ref, w_ref, b_ref, mxu_dtype):
    """GN-apply (per-channel scale/shift) + SiLU on a (TH+2)-row strip, then 3x3 conv.

    x_mid: (1, TH, W, Cin); x_top/x_bot: (1, 1, W, Cin) clamped halo rows (masked at borders);
    w_ref: (3, 3*Cin, Cout) weight slab (kx folded into K); b_ref: (1, Cout).
    Returns the f32 accumulator of shape (TH*W, Cout).
    """
    TH, W, Cin = x_mid.shape[1], x_mid.shape[2], x_mid.shape[3]
    t = pl.program_id(1)
    T = pl.num_programs(1)

    scale = sc_ref[...].astype(jnp.float32)             # (1, 1, Cin)
    shift = sh_ref[...].astype(jnp.float32)

    def act(v):                                         # normalize + affine + SiLU
        y = v.astype(jnp.float32) * scale + shift
        return y * jax.nn.sigmoid(y)

    # Halo rows come in clamped to the image; zero them at the image border so they
    # reproduce the conv's zero padding (padding applies to silu(gn(x))).
    a_top = act(x_top[0]) * (t > 0).astype(jnp.float32)          # (1, W, Cin)
    a_bot = act(x_bot[0]) * (t < T - 1).astype(jnp.float32)      # (1, W, Cin)
    a = jnp.concatenate([a_top, act(x_mid[0]), a_bot], axis=0)   # (TH+2, W, Cin)

    # Fold the kx taps into K: btap[., x, kx*Cin + c] = a_padded[., x + kx, c]
    zcol = jnp.zeros((TH + 2, 1, Cin), jnp.float32)
    left = jnp.concatenate([zcol, a[:, :W - 1, :]], axis=1)      # x-1 tap (zero at x=0)
    right = jnp.concatenate([a[:, 1:, :], zcol], axis=1)         # x+1 tap (zero at x=W-1)
    btap = jnp.concatenate([left, a, right], axis=-1).astype(mxu_dtype)  # (TH+2, W, 3*Cin)

    Cout = w_ref.shape[-1]
    acc = jnp.zeros((TH * W, Cout), jnp.float32)
    for ky in range(3):                                 # 3 MXU matmuls, K = 3*Cin
        acc = acc + jnp.dot(btap[ky:ky + TH].reshape(TH * W, 3 * Cin),
                            w_ref[ky], preferred_element_type=jnp.float32)
    return acc + b_ref[...].astype(jnp.float32)


def conv1_kernel(x_top, x_mid, x_bot, sc_ref, sh_ref, w_ref, b_ref, h_ref, st_ref, *, mxu_dtype):
    """norm1-apply + SiLU + conv1, and fused partial stats (sum/sumsq) for norm2."""
    t = pl.program_id(1)

    @pl.when(t == 0)
    def _init():
        st_ref[...] = jnp.zeros_like(st_ref)

    acc = _gn_silu_conv3x3(x_top, x_mid, x_bot, sc_ref, sh_ref, w_ref, b_ref, mxu_dtype)

    # Fused per-channel statistics of the conv output (saves a full HBM read of h1 later).
    s = jnp.sum(acc, axis=0, keepdims=True)             # (1, Cout)
    ss = jnp.sum(acc * acc, axis=0, keepdims=True)      # (1, Cout)
    st_ref[0] += jnp.concatenate([s, ss], axis=0)       # (2, Cout), accumulated over row tiles

    TH, W = x_mid.shape[1], x_mid.shape[2]
    h_ref[0] = acc.reshape(TH, W, acc.shape[-1]).astype(h_ref.dtype)


def conv2_kernel(*refs, has_nin, mxu_dtype):
    """norm2-apply + SiLU + dropout(identity) + conv2 + (1x1 nin_shortcut | identity) + residual."""
    if has_nin:
        (h_top, h_mid, h_bot, sc_ref, sh_ref, w_ref, b_ref, x_ref, nw_ref, nb_ref, o_ref) = refs
    else:
        (h_top, h_mid, h_bot, sc_ref, sh_ref, w_ref, b_ref, x_ref, o_ref) = refs

    acc = _gn_silu_conv3x3(h_top, h_mid, h_bot, sc_ref, sh_ref, w_ref, b_ref, mxu_dtype)

    TH, W = h_mid.shape[1], h_mid.shape[2]
    Cout = acc.shape[-1]
    Cres = x_ref.shape[-1]
    if has_nin:                                         # fused 1x1 nin_shortcut
        xs = x_ref[0].reshape(TH * W, Cres).astype(mxu_dtype)
        res = jnp.dot(xs, nw_ref[...], preferred_element_type=jnp.float32)
        res = res + nb_ref[...].astype(jnp.float32)
    else:                                               # identity shortcut
        res = x_ref[0].astype(jnp.float32).reshape(TH * W, Cres)

    o_ref[0] = (acc + res).reshape(TH, W, Cout).astype(o_ref.dtype)


# --------------------------------------------------------------------------------------
# pallas_call wrappers (grid = (N, H // TH); row-tiled with halo rows, no HBM pad copy)
# --------------------------------------------------------------------------------------
def _gn_stats_call(x, th, vmem_limit):
    N, H, W, C = x.shape
    return pl.pallas_call(
        gn_stats_kernel,
        out_shape=jax.ShapeDtypeStruct((N, 2, C), jnp.float32),
        grid=(N, H // th),
        in_specs=[pl.BlockSpec((1, th, W, C), lambda n, t: (n, t, 0, 0))],
        out_specs=pl.BlockSpec((1, 2, C), lambda n, t: (n, 0, 0)),
        compiler_params=pltpu.CompilerParams(
            dimension_semantics=("parallel", "arbitrary"),
            vmem_limit_bytes=vmem_limit),
    )(x)


def _conv1_call(x, scale, shift, w_slab, bias, th, mxu_dtype, vmem_limit):
    N, H, W, Cin = x.shape
    Cout = w_slab.shape[-1]
    kernel = functools.partial(conv1_kernel, mxu_dtype=mxu_dtype)
    return pl.pallas_call(
        kernel,
        out_shape=(jax.ShapeDtypeStruct((N, H, W, Cout), x.dtype),
                   jax.ShapeDtypeStruct((N, 2, Cout), jnp.float32)),
        grid=(N, H // th),
        in_specs=[
            pl.BlockSpec((1, 1, W, Cin), lambda n, t: (n, jnp.maximum(t * th - 1, 0), 0, 0)),
            pl.BlockSpec((1, th, W, Cin), lambda n, t: (n, t, 0, 0)),
            pl.BlockSpec((1, 1, W, Cin), lambda n, t: (n, jnp.minimum((t + 1) * th, H - 1), 0, 0)),
            pl.BlockSpec((1, 1, Cin), lambda n, t: (n, 0, 0)),
            pl.BlockSpec((1, 1, Cin), lambda n, t: (n, 0, 0)),
            pl.BlockSpec((3, 3 * Cin, Cout), lambda n, t: (0, 0, 0)),
            pl.BlockSpec((1, Cout), lambda n, t: (0, 0)),
        ],
        out_specs=[
            pl.BlockSpec((1, th, W, Cout), lambda n, t: (n, t, 0, 0)),
            pl.BlockSpec((1, 2, Cout), lambda n, t: (n, 0, 0)),   # stats accumulator (resident over t)
        ],
        compiler_params=pltpu.CompilerParams(
            dimension_semantics=("parallel", "arbitrary"),        # t carries the stats accumulator
            vmem_limit_bytes=vmem_limit),
    )(x, x, x, scale, shift, w_slab, bias)


def _conv2_call(h, scale, shift, w_slab, bias, x_res, nin_w, nin_b, th, mxu_dtype, vmem_limit):
    N, H, W, C = h.shape
    Cout = w_slab.shape[-1]
    Cres = x_res.shape[-1]
    has_nin = nin_w is not None
    kernel = functools.partial(conv2_kernel, has_nin=has_nin, mxu_dtype=mxu_dtype)
    in_specs = [
        pl.BlockSpec((1, 1, W, C), lambda n, t: (n, jnp.maximum(t * th - 1, 0), 0, 0)),
        pl.BlockSpec((1, th, W, C), lambda n, t: (n, t, 0, 0)),
        pl.BlockSpec((1, 1, W, C), lambda n, t: (n, jnp.minimum((t + 1) * th, H - 1), 0, 0)),
        pl.BlockSpec((1, 1, C), lambda n, t: (n, 0, 0)),
        pl.BlockSpec((1, 1, C), lambda n, t: (n, 0, 0)),
        pl.BlockSpec((3, 3 * C, Cout), lambda n, t: (0, 0, 0)),
        pl.BlockSpec((1, Cout), lambda n, t: (0, 0)),
        pl.BlockSpec((1, th, W, Cres), lambda n, t: (n, t, 0, 0)),
    ]
    args = [h, h, h, scale, shift, w_slab, bias, x_res]
    if has_nin:
        in_specs += [pl.BlockSpec((Cres, Cout), lambda n, t: (0, 0)),
                     pl.BlockSpec((1, Cout), lambda n, t: (0, 0))]
        args += [nin_w, nin_b]
    return pl.pallas_call(
        kernel,
        out_shape=jax.ShapeDtypeStruct((N, H, W, Cout), x_res.dtype),
        grid=(N, H // th),
        in_specs=in_specs,
        out_specs=pl.BlockSpec((1, th, W, Cout), lambda n, t: (n, t, 0, 0)),
        compiler_params=pltpu.CompilerParams(
            dimension_semantics=("parallel", "parallel"),         # fully parallel: both v7x TCs usable
            vmem_limit_bytes=vmem_limit),
    )(*args)


# --------------------------------------------------------------------------------------
# GroupNorm scale/shift finalization (tiny (N, C) arrays; plain JAX glue)
# --------------------------------------------------------------------------------------
def _gn_scale_shift(sums, gamma, beta, num_groups, eps, spatial):
    """Per-channel (sum, sumsq) -> per-channel scale/shift so GN-apply is y = x*scale + shift."""
    N, _, C = sums.shape
    cg = C // num_groups
    s = sums[:, 0, :].reshape(N, num_groups, cg).sum(-1)
    ss = sums[:, 1, :].reshape(N, num_groups, cg).sum(-1)
    cnt = jnp.float32(spatial * cg)
    mean = s / cnt
    # TODO(synk): E[x^2]-mean^2 in f32; switch to two-pass/Welford if activation magnitudes get large.
    var = jnp.maximum(ss / cnt - mean * mean, 0.0)
    rstd = jax.lax.rsqrt(var + jnp.float32(eps))
    mean_c = jnp.repeat(mean, cg, axis=1)                # (N, C)
    rstd_c = jnp.repeat(rstd, cg, axis=1)
    scale = gamma[None, :].astype(jnp.float32) * rstd_c
    shift = beta[None, :].astype(jnp.float32) - mean_c * scale
    return scale.reshape(N, 1, C), shift.reshape(N, 1, C)


# --------------------------------------------------------------------------------------
# ResnetBlock2D forward (NCHW in / NCHW out, like the PyTorch module; inference semantics)
# --------------------------------------------------------------------------------------
def resnet_block_2d(x_nchw, params, *, num_groups, eps=1e-6, row_block=None,
                    mxu_dtype=jnp.bfloat16):
    # TODO(synk): video_to_image decorator (5D (B,C,T,H,W) -> (B*T,C,H,W)) handled by caller; 4D only.
    # TODO(synk): conv_shortcut=True (3x3 shortcut conv) not implemented; default nin_shortcut path only.
    x = jnp.transpose(x_nchw, (0, 2, 3, 1))              # NCHW -> NHWC (C on the 128-lane axis)
    N, H, W, Cin = x.shape
    Cout = params["conv1_w"].shape[-1]
    vmem_limit = _vmem_limit()

    th = row_block if row_block is not None else _choose_row_tile(
        H, W, Cin, Cout, jnp.dtype(x.dtype).itemsize, vmem_limit // 2)
    if H % th != 0:
        raise ValueError(f"row tile {th} must divide H={H}")

    # 1) norm1 statistics (tiled reduction over x)
    sums1 = _gn_stats_call(x, th, vmem_limit)
    scale1, shift1 = _gn_scale_shift(sums1, params["norm1_g"], params["norm1_b"],
                                     num_groups, eps, H * W)

    # 2) conv1 fused with GN1-apply + SiLU; also emits norm2 partial sums
    w1 = params["conv1_w"].reshape(3, 3 * Cin, Cout).astype(mxu_dtype)   # kx folded into K
    b1 = params["conv1_b"].astype(jnp.float32).reshape(1, Cout)
    h1, sums2 = _conv1_call(x, scale1, shift1, w1, b1, th, mxu_dtype, vmem_limit)
    scale2, shift2 = _gn_scale_shift(sums2, params["norm2_g"], params["norm2_b"],
                                     num_groups, eps, H * W)

    # 3) conv2 fused with GN2-apply + SiLU + dropout(identity) + shortcut + residual add
    w2 = params["conv2_w"].reshape(3, 3 * Cout, Cout).astype(mxu_dtype)
    b2 = params["conv2_b"].astype(jnp.float32).reshape(1, Cout)
    if Cin != Cout:
        nin_w = params["nin_w"].astype(mxu_dtype)
        nin_b = params["nin_b"].astype(jnp.float32).reshape(1, Cout)
    else:
        nin_w = nin_b = None
    out = _conv2_call(h1, scale2, shift2, w2, b2, x, nin_w, nin_b, th, mxu_dtype, vmem_limit)
    return jnp.transpose(out, (0, 3, 1, 2))              # NHWC -> NCHW


# --------------------------------------------------------------------------------------
# Pure-JAX reference for verification
# --------------------------------------------------------------------------------------
def _gn_ref(x, gamma, beta, groups, eps):  # NHWC
    N, H, W, C = x.shape
    xg = x.reshape(N, H, W, groups, C // groups)
    mean = xg.mean(axis=(1, 2, 4), keepdims=True)
    var = ((xg - mean) ** 2).mean(axis=(1, 2, 4), keepdims=True)
    xn = ((xg - mean) / jnp.sqrt(var + eps)).reshape(N, H, W, C)
    return xn * gamma + beta


def _conv_ref(x, w, b):  # NHWC, HWIO
    y = jax.lax.conv_general_dilated(
        x, w, window_strides=(1, 1), padding="SAME",
        dimension_numbers=("NHWC", "HWIO", "NHWC"),
        precision=jax.lax.Precision.HIGHEST)
    return y + b


def _ref_forward(x_nchw, params, num_groups, eps=1e-6):
    x = jnp.transpose(x_nchw, (0, 2, 3, 1))
    silu = lambda v: v * jax.nn.sigmoid(v)
    h = silu(_gn_ref(x, params["norm1_g"], params["norm1_b"], num_groups, eps))
    h = _conv_ref(h, params["conv1_w"], params["conv1_b"])
    h = silu(_gn_ref(h, params["norm2_g"], params["norm2_b"], num_groups, eps))
    h = _conv_ref(h, params["conv2_w"], params["conv2_b"])
    if x.shape[-1] != h.shape[-1]:
        sc = jnp.dot(x, params["nin_w"], precision=jax.lax.Precision.HIGHEST) + params["nin_b"]
    else:
        sc = x
    return jnp.transpose(sc + h, (0, 3, 1, 2))


# --------------------------------------------------------------------------------------
if __name__ == "__main__":
    def make_params(key, cin, cout):
        ks = jax.random.split(key, 10)
        p = {
            "norm1_g": 1.0 + 0.1 * jax.random.normal(ks[0], (cin,), jnp.float32),
            "norm1_b": 0.1 * jax.random.normal(ks[1], (cin,), jnp.float32),
            "conv1_w": 0.1 * jax.random.normal(ks[2], (3, 3, cin, cout), jnp.float32),  # HWIO
            "conv1_b": 0.1 * jax.random.normal(ks[3], (cout,), jnp.float32),
            "norm2_g": 1.0 + 0.1 * jax.random.normal(ks[4], (cout,), jnp.float32),
            "norm2_b": 0.1 * jax.random.normal(ks[5], (cout,), jnp.float32),
            "conv2_w": 0.1 * jax.random.normal(ks[6], (3, 3, cout, cout), jnp.float32),
            "conv2_b": 0.1 * jax.random.normal(ks[7], (cout,), jnp.float32),
        }
        if cin != cout:
            p["nin_w"] = 0.1 * jax.random.normal(ks[8], (cin, cout), jnp.float32)  # 1x1 conv as matmul
            p["nin_b"] = 0.05 * jax.random.normal(ks[9], (cout,), jnp.float32)
        return p

    fwd = jax.jit(resnet_block_2d,
                  static_argnames=("num_groups", "eps", "row_block", "mxu_dtype"))

    # Config 1: in_ch != out_ch (fused 1x1 nin_shortcut), f32 MXU operands, tight tolerance.
    # row_block=8 -> 2 row tiles per image: exercises halo rows + tiled stats accumulation.
    p1 = make_params(jax.random.PRNGKey(0), 4, 8)
    x1 = jax.random.normal(jax.random.PRNGKey(1), (2, 4, 16, 16), jnp.float32)
    out1 = jax.block_until_ready(
        fwd(x1, p1, num_groups=2, eps=1e-6, row_block=8, mxu_dtype=jnp.float32))
    ref1 = jax.block_until_ready(_ref_forward(x1, p1, 2, 1e-6))
    np.testing.assert_allclose(np.asarray(out1), np.asarray(ref1), rtol=2e-3, atol=2e-3)

    # Config 2: in_ch == out_ch (identity shortcut), bf16 MXU operands (f32 accumulate).
    p2 = make_params(jax.random.PRNGKey(2), 8, 8)
    x2 = jax.random.normal(jax.random.PRNGKey(3), (2, 8, 16, 16), jnp.float32)
    out2 = jax.block_until_ready(
        fwd(x2, p2, num_groups=4, eps=1e-6, row_block=8, mxu_dtype=jnp.bfloat16))
    ref2 = jax.block_until_ready(_ref_forward(x2, p2, 4, 1e-6))
    np.testing.assert_allclose(np.asarray(out2), np.asarray(ref2), rtol=5e-2, atol=5e-2)

    print("KERNEL_OK")
</pallas_src>

<mosaic_0001>
module attributes {stable_mosaic.version = 11 : i64} {
  func.func @gn_stats_kernel(%arg0: i32, %arg1: i32, %arg2: memref<1x8x16x4xf32, #tpu.memory_space<vmem>>, %arg3: memref<1x2x4xf32, #tpu.memory_space<vmem>>) attributes {dimension_semantics = [#tpu.dimension_semantics<parallel>, #tpu.dimension_semantics<arbitrary>], iteration_bounds = array<i64: 2, 2>, scalar_prefetch = 0 : i64, scratch_operands = 0 : i64, tpu.core_type = #tpu.core_type<tc>, window_params = [{transform_indices = @transform_0, window_bounds = array<i64: 1, 8, 16, 4>}, {transform_indices = @transform_1, window_bounds = array<i64: 1, 2, 4>}]} {
    %c0_i32 = arith.constant 0 : i32
    %0 = arith.cmpi eq, %arg1, %c0_i32 : i32
    %1 = arith.extui %0 : i1 to i32
    %c0_i32_0 = arith.constant 0 : i32
    %2 = arith.cmpi ne, %1, %c0_i32_0 : i32
    scf.if %2 {
      %cst_11 = arith.constant 0.000000e+00 : f32
      %18 = vector.broadcast %cst_11 : f32 to vector<1x2x4xf32>
      %c0_12 = arith.constant 0 : index
      %c0_13 = arith.constant 0 : index
      %c0_14 = arith.constant 0 : index
      %19 = vector.load %arg3[%c0_12, %c0_13, %c0_14] : memref<1x2x4xf32, #tpu.memory_space<vmem>>, vector<1x2x4xf32>
      tpu.vector_store %arg3[%c0_12, %c0_13, %c0_14], %18 {strides = array<i32>} : memref<1x2x4xf32, #tpu.memory_space<vmem>>, vector<1x2x4xf32>,
    } else {
    }
    %c0 = arith.constant 0 : index
    %c0_1 = arith.constant 0 : index
    %c0_2 = arith.constant 0 : index
    %c0_3 = arith.constant 0 : index
    %3 = vector.load %arg2[%c0, %c0_1, %c0_2, %c0_3] : memref<1x8x16x4xf32, #tpu.memory_space<vmem>>, vector<1x8x16x4xf32>
    %4 = vector.shape_cast %3 : vector<1x8x16x4xf32> to vector<8x16x4xf32>
    %5 = vector.shape_cast %4 : vector<8x16x4xf32> to vector<128x4xf32>
    %cst = arith.constant dense<0.000000e+00> : vector<4xf32>
    %6 = vector.multi_reduction <add>, %5, %cst [0] : vector<128x4xf32> to vector<4xf32>
    %7 = vector.shape_cast %6 : vector<4xf32> to vector<1x4xf32>
    %8 = arith.mulf %5, %5 : vector<128x4xf32>
    %cst_4 = arith.constant dense<0.000000e+00> : vector<4xf32>
    %9 = vector.multi_reduction <add>, %8, %cst_4 [0] : vector<128x4xf32> to vector<4xf32>
    %10 = vector.shape_cast %9 : vector<4xf32> to vector<1x4xf32>
    %c0_5 = arith.constant 0 : index
    %c0_6 = arith.constant 0 : index
    %c0_7 = arith.constant 0 : index
    %11 = vector.load %arg3[%c0_5, %c0_6, %c0_7] : memref<1x2x4xf32, #tpu.memory_space<vmem>>, vector<1x2x4xf32>
    %12 = vector.shape_cast %11 : vector<1x2x4xf32> to vector<2x4xf32>
    %13 = tpu.concatenate %7, %10 in 0 : vector<1x4xf32>, vector<1x4xf32> -> vector<2x4xf32>
    %14 = arith.addf %12, %13 : vector<2x4xf32>
    %c0_8 = arith.constant 0 : index
    %c0_9 = arith.constant 0 : index
    %c0_10 = arith.constant 0 : index
    %15 = vector.load %arg3[%c0_8, %c0_9, %c0_10] : memref<1x2x4xf32, #tpu.memory_space<vmem>>, vector<1x2x4xf32>
    %16 = vector.shape_cast %15 : vector<1x2x4xf32> to vector<2x4xf32>
    %17 = vector.shape_cast %14 : vector<2x4xf32> to vector<1x2x4xf32>
    tpu.vector_store %arg3[%c0_8, %c0_9, %c0_10], %17 {strides = array<i32>} : memref<1x2x4xf32, #tpu.memory_space<vmem>>, vector<1x2x4xf32>,
    return
  }
  func.func @transform_0(%arg0: i32, %arg1: i32) -> (i32, i32, i32, i32) {
    %c0_i32 = arith.constant 0 : i32
    %c0_i32_0 = arith.constant 0 : i32
    %c0_i32_1 = arith.constant 0 : i32
    return %arg0, %arg1, %c0_i32, %c0_i32_0 : i32, i32, i32, i32
  }
  func.func @transform_1(%arg0: i32, %arg1: i32) -> (i32, i32, i32) {
    %c0_i32 = arith.constant 0 : i32
    %c0_i32_0 = arith.constant 0 : i32
    %c0_i32_1 = arith.constant 0 : i32
    return %arg0, %c0_i32, %c0_i32_0 : i32, i32, i32
  }
}

module attributes {stable_mosaic.version = 11 : i64} {
  func.func @conv1_kernel(%arg0: i32, %arg1: i32, %arg2: memref<1x1x16x4xf32, #tpu.memory_space<vmem>>, %arg3: memref<1x8x16x4xf32, #tpu.memory_space<vmem>>, %arg4: memref<1x1x16x4xf32, #tpu.memory_space<vmem>>, %arg5: memref<1x1x4xf32, #tpu.memory_space<vmem>>, %arg6: memref<1x1x4xf32, #tpu.memory_space<vmem>>, %arg7: memref<3x12x8xf32, #tpu.memory_space<vmem>>, %arg8: memref<1x8xf32, #tpu.memory_space<vmem>>, %arg9: memref<1x8x16x8xf32, #tpu.memory_space<vmem>>, %arg10: memref<1x2x8xf32, #tpu.memory_space<vmem>>) attributes {dimension_semantics = [#tpu.dimension_semantics<parallel>, #tpu.dimension_semantics<arbitrary>], iteration_bounds = array<i64: 2, 2>, scalar_prefetch = 0 : i64, scratch_operands = 0 : i64, tpu.core_type = #tpu.core_type<tc>, window_params = [{transform_indices = @transform_0, window_bounds = array<i64: 1, 1, 16, 4>}, {transform_indices = @transform_1, window_bounds = array<i64: 1, 8, 16, 4>}, {transform_indices = @transform_2, window_bounds = array<i64: 1, 1, 16, 4>}, {transform_indices = @transform_3, window_bounds = array<i64: 1, 1, 4>}, {transform_indices = @transform_4, window_bounds = array<i64: 1, 1, 4>}, {pipeline_mode = #tpu.pipeline_mode<synchronous>, transform_indices = @transform_5, window_bounds = array<i64: 3, 12, 8>}, {pipeline_mode = #tpu.pipeline_mode<synchronous>, transform_indices = @transform_6, window_bounds = array<i64: 1, 8>}, {transform_indices = @transform_7, window_bounds = array<i64: 1, 8, 16, 8>}, {transform_indices = @transform_8, window_bounds = array<i64: 1, 2, 8>}]} {
    %c0_i32 = arith.constant 0 : i32
    %0 = arith.cmpi eq, %arg1, %c0_i32 : i32
    %1 = arith.extui %0 : i1 to i32
    %c0_i32_0 = arith.constant 0 : i32
    %2 = arith.cmpi ne, %1, %c0_i32_0 : i32
    scf.if %2 {
      %cst_47 = arith.constant 0.000000e+00 : f32
      %96 = vector.broadcast %cst_47 : f32 to vector<1x2x8xf32>
      %c0_48 = arith.constant 0 : index
      %c0_49 = arith.constant 0 : index
      %c0_50 = arith.constant 0 : index
      %97 = vector.load %arg10[%c0_48, %c0_49, %c0_50] : memref<1x2x8xf32, #tpu.memory_space<vmem>>, vector<1x2x8xf32>
      tpu.vector_store %arg10[%c0_48, %c0_49, %c0_50], %96 {strides = array<i32>} : memref<1x2x8xf32, #tpu.memory_space<vmem>>, vector<1x2x8xf32>,
    } else {
    }
    %c0 = arith.constant 0 : index
    %c0_1 = arith.constant 0 : index
    %c0_2 = arith.constant 0 : index
    %3 = vector.load %arg5[%c0, %c0_1, %c0_2] : memref<1x1x4xf32, #tpu.memory_space<vmem>>, vector<1x1x4xf32>
    %c0_3 = arith.constant 0 : index
    %c0_4 = arith.constant 0 : index
    %c0_5 = arith.constant 0 : index
    %4 = vector.load %arg6[%c0_3, %c0_4, %c0_5] : memref<1x1x4xf32, #tpu.memory_space<vmem>>, vector<1x1x4xf32>
    %c0_6 = arith.constant 0 : index
    %c0_7 = arith.constant 0 : index
    %c0_8 = arith.constant 0 : index
    %c0_9 = arith.constant 0 : index
    %5 = vector.load %arg2[%c0_6, %c0_7, %c0_8, %c0_9] : memref<1x1x16x4xf32, #tpu.memory_space<vmem>>, vector<1x1x16x4xf32>
    %6 = vector.shape_cast %5 : vector<1x1x16x4xf32> to vector<1x16x4xf32>
    %7 = vector.broadcast %3 : vector<1x1x4xf32> to vector<1x16x4xf32>
    %8 = arith.mulf %6, %7 : vector<1x16x4xf32>
    %9 = vector.broadcast %4 : vector<1x1x4xf32> to vector<1x16x4xf32>
    %10 = arith.addf %8, %9 : vector<1x16x4xf32>
    %11 = arith.negf %10 : vector<1x16x4xf32>
    %12 = math.exp %11 : vector<1x16x4xf32>
    %cst = arith.constant 1.000000e+00 : f32
    %13 = vector.broadcast %cst : f32 to vector<1x16x4xf32>
    %14 = arith.addf %13, %12 : vector<1x16x4xf32>
    %15 = arith.divf %13, %14 : vector<1x16x4xf32>
    %16 = arith.mulf %10, %15 : vector<1x16x4xf32>
    %c0_i32_10 = arith.constant 0 : i32
    %17 = arith.cmpi sgt, %arg1, %c0_i32_10 : i32
    %18 = arith.extui %17 : i1 to i32
    %19 = arith.sitofp %18 : i32 to f32
    %20 = vector.broadcast %19 : f32 to vector<1x16x4xf32>
    %21 = arith.mulf %16, %20 : vector<1x16x4xf32>
    %c0_11 = arith.constant 0 : index
    %c0_12 = arith.constant 0 : index
    %c0_13 = arith.constant 0 : index
    %c0_14 = arith.constant 0 : index
    %22 = vector.load %arg4[%c0_11, %c0_12, %c0_13, %c0_14] : memref<1x1x16x4xf32, #tpu.memory_space<vmem>>, vector<1x1x16x4xf32>
    %23 = vector.shape_cast %22 : vector<1x1x16x4xf32> to vector<1x16x4xf32>
    %24 = vector.broadcast %3 : vector<1x1x4xf32> to vector<1x16x4xf32>
    %25 = arith.mulf %23, %24 : vector<1x16x4xf32>
    %26 = vector.broadcast %4 : vector<1x1x4xf32> to vector<1x16x4xf32>
    %27 = arith.addf %25, %26 : vector<1x16x4xf32>
    %28 = arith.negf %27 : vector<1x16x4xf32>
    %29 = math.exp %28 : vector<1x16x4xf32>
    %cst_15 = arith.constant 1.000000e+00 : f32
    %30 = vector.broadcast %cst_15 : f32 to vector<1x16x4xf32>
    %31 = arith.addf %30, %29 : vector<1x16x4xf32>
    %32 = arith.divf %30, %31 : vector<1x16x4xf32>
    %33 = arith.mulf %27, %32 : vector<1x16x4xf32>
    %c1_i32 = arith.constant 1 : i32
    %34 = arith.cmpi slt, %arg1, %c1_i32 : i32
    %35 = arith.extui %34 : i1 to i32
    %36 = arith.sitofp %35 : i32 to f32
    %37 = vector.broadcast %36 : f32 to vector<1x16x4xf32>
    %38 = arith.mulf %33, %37 : vector<1x16x4xf32>
    %c0_16 = arith.constant 0 : index
    %c0_17 = arith.constant 0 : index
    %c0_18 = arith.constant 0 : index
    %c0_19 = arith.constant 0 : index
    %39 = vector.load %arg3[%c0_16, %c0_17, %c0_18, %c0_19] : memref<1x8x16x4xf32, #tpu.memory_space<vmem>>, vector<1x8x16x4xf32>
    %40 = vector.shape_cast %39 : vector<1x8x16x4xf32> to vector<8x16x4xf32>
    %41 = vector.broadcast %3 : vector<1x1x4xf32> to vector<8x16x4xf32>
    %42 = arith.mulf %40, %41 : vector<8x16x4xf32>
    %43 = vector.broadcast %4 : vector<1x1x4xf32> to vector<8x16x4xf32>
    %44 = arith.addf %42, %43 : vector<8x16x4xf32>
    %45 = arith.negf %44 : vector<8x16x4xf32>
    %46 = math.exp %45 : vector<8x16x4xf32>
    %cst_20 = arith.constant 1.000000e+00 : f32
    %47 = vector.broadcast %cst_20 : f32 to vector<8x16x4xf32>
    %48 = arith.addf %47, %46 : vector<8x16x4xf32>
    %49 = arith.divf %47, %48 : vector<8x16x4xf32>
    %50 = arith.mulf %44, %49 : vector<8x16x4xf32>
    %51 = tpu.concatenate %21, %50, %38 in 0 : vector<1x16x4xf32>, vector<8x16x4xf32>, vector<1x16x4xf32> -> vector<10x16x4xf32>
    %cst_21 = arith.constant 0.000000e+00 : f32
    %52 = vector.broadcast %cst_21 : f32 to vector<10x1x4xf32>
    %53 = vector.extract_strided_slice %51 {offsets = [0, 0, 0], sizes = [10, 15, 4], strides = [1, 1, 1]} : vector<10x16x4xf32> to vector<10x15x4xf32>
    %54 = tpu.concatenate %52, %53 in 1 : vector<10x1x4xf32>, vector<10x15x4xf32> -> vector<10x16x4xf32>
    %55 = vector.extract_strided_slice %51 {offsets = [0, 1, 0], sizes = [10, 15, 4], strides = [1, 1, 1]} : vector<10x16x4xf32> to vector<10x15x4xf32>
    %56 = tpu.concatenate %55, %52 in 1 : vector<10x15x4xf32>, vector<10x1x4xf32> -> vector<10x16x4xf32>
    %57 = tpu.concatenate %54, %51, %56 in 2 : vector<10x16x4xf32>, vector<10x16x4xf32>, vector<10x16x4xf32> -> vector<10x16x12xf32>
    %cst_22 = arith.constant 0.000000e+00 : f32
    %58 = vector.broadcast %cst_22 : f32 to vector<128x8xf32>
    %59 = vector.extract_strided_slice %57 {offsets = [0, 0, 0], sizes = [8, 16, 12], strides = [1, 1, 1]} : vector<10x16x12xf32> to vector<8x16x12xf32>
    %60 = vector.shape_cast %59 : vector<8x16x12xf32> to vector<128x12xf32>
    %c0_23 = arith.constant 0 : index
    %c0_24 = arith.constant 0 : index
    %c0_25 = arith.constant 0 : index
    %61 = vector.load %arg7[%c0_23, %c0_24, %c0_25] : memref<3x12x8xf32, #tpu.memory_space<vmem>>, vector<1x12x8xf32>
    %62 = vector.shape_cast %61 : vector<1x12x8xf32> to vector<12x8xf32>
    %cst_26 = arith.constant dense<0.000000e+00> : vector<128x8xf32>
    %63 = tpu.matmul %60, %62, %cst_26 {dimension_numbers = #tpu.dot_dimension_numbers<[1], [0], [0], [1], [0, 0, 1, 1], [], []>} : vector<128x12xf32>, vector<12x8xf32>, vector<128x8xf32> -> vector<128x8xf32>
    %64 = arith.addf %58, %63 : vector<128x8xf32>
    %65 = vector.extract_strided_slice %57 {offsets = [1, 0, 0], sizes = [8, 16, 12], strides = [1, 1, 1]} : vector<10x16x12xf32> to vector<8x16x12xf32>
    %66 = vector.shape_cast %65 : vector<8x16x12xf32> to vector<128x12xf32>
    %c1 = arith.constant 1 : index
    %c0_27 = arith.constant 0 : index
    %c0_28 = arith.constant 0 : index
    %67 = vector.load %arg7[%c1, %c0_27, %c0_28] : memref<3x12x8xf32, #tpu.memory_space<vmem>>, vector<1x12x8xf32>
    %68 = vector.shape_cast %67 : vector<1x12x8xf32> to vector<12x8xf32>
    %cst_29 = arith.constant dense<0.000000e+00> : vector<128x8xf32>
    %69 = tpu.matmul %66, %68, %cst_29 {dimension_numbers = #tpu.dot_dimension_numbers<[1], [0], [0], [1], [0, 0, 1, 1], [], []>} : vector<128x12xf32>, vector<12x8xf32>, vector<128x8xf32> -> vector<128x8xf32>
    %70 = arith.addf %64, %69 : vector<128x8xf32>
    %71 = vector.extract_strided_slice %57 {offsets = [2, 0, 0], sizes = [8, 16, 12], strides = [1, 1, 1]} : vector<10x16x12xf32> to vector<8x16x12xf32>
    %72 = vector.shape_cast %71 : vector<8x16x12xf32> to vector<128x12xf32>
    %c2 = arith.constant 2 : index
    %c0_30 = arith.constant 0 : index
    %c0_31 = arith.constant 0 : index
    %73 = vector.load %arg7[%c2, %c0_30, %c0_31] : memref<3x12x8xf32, #tpu.memory_space<vmem>>, vector<1x12x8xf32>
    %74 = vector.shape_cast %73 : vector<1x12x8xf32> to vector<12x8xf32>
    %cst_32 = arith.constant dense<0.000000e+00> : vector<128x8xf32>
    %75 = tpu.matmul %72, %74, %cst_32 {dimension_numbers = #tpu.dot_dimension_numbers<[1], [0], [0], [1], [0, 0, 1, 1], [], []>} : vector<128x12xf32>, vector<12x8xf32>, vector<128x8xf32> -> vector<128x8xf32>
    %76 = arith.addf %70, %75 : vector<128x8xf32>
    %c0_33 = arith.constant 0 : index
    %c0_34 = arith.constant 0 : index
    %77 = vector.load %arg8[%c0_33, %c0_34] : memref<1x8xf32, #tpu.memory_space<vmem>>, vector<1x8xf32>
    %78 = vector.broadcast %77 : vector<1x8xf32> to vector<128x8xf32>
    %79 = arith.addf %76, %78 : vector<128x8xf32>
    %cst_35 = arith.constant dense<0.000000e+00> : vector<8xf32>
    %80 = vector.multi_reduction <add>, %79, %cst_35 [0] : vector<128x8xf32> to vector<8xf32>
    %81 = vector.shape_cast %80 : vector<8xf32> to vector<1x8xf32>
    %82 = arith.mulf %79, %79 : vector<128x8xf32>
    %cst_36 = arith.constant dense<0.000000e+00> : vector<8xf32>
    %83 = vector.multi_reduction <add>, %82, %cst_36 [0] : vector<128x8xf32> to vector<8xf32>
    %84 = vector.shape_cast %83 : vector<8xf32> to vector<1x8xf32>
    %c0_37 = arith.constant 0 : index
    %c0_38 = arith.constant 0 : index
    %c0_39 = arith.constant 0 : index
    %85 = vector.load %arg10[%c0_37, %c0_38, %c0_39] : memref<1x2x8xf32, #tpu.memory_space<vmem>>, vector<1x2x8xf32>
    %86 = vector.shape_cast %85 : vector<1x2x8xf32> to vector<2x8xf32>
    %87 = tpu.concatenate %81, %84 in 0 : vector<1x8xf32>, vector<1x8xf32> -> vector<2x8xf32>
    %88 = arith.addf %86, %87 : vector<2x8xf32>
    %c0_40 = arith.constant 0 : index
    %c0_41 = arith.constant 0 : index
    %c0_42 = arith.constant 0 : index
    %89 = vector.load %arg10[%c0_40, %c0_41, %c0_42] : memref<1x2x8xf32, #tpu.memory_space<vmem>>, vector<1x2x8xf32>
    %90 = vector.shape_cast %89 : vector<1x2x8xf32> to vector<2x8xf32>
    %91 = vector.shape_cast %88 : vector<2x8xf32> to vector<1x2x8xf32>
    tpu.vector_store %arg10[%c0_40, %c0_41, %c0_42], %91 {strides = array<i32>} : memref<1x2x8xf32, #tpu.memory_space<vmem>>, vector<1x2x8xf32>,
    %92 = vector.shape_cast %79 : vector<128x8xf32> to vector<8x16x8xf32>
    %c0_43 = arith.constant 0 : index
    %c0_44 = arith.constant 0 : index
    %c0_45 = arith.constant 0 : index
    %c0_46 = arith.constant 0 : index
    %93 = vector.load %arg9[%c0_43, %c0_44, %c0_45, %c0_46] : memref<1x8x16x8xf32, #tpu.memory_space<vmem>>, vector<1x8x16x8xf32>
    %94 = vector.shape_cast %93 : vector<1x8x16x8xf32> to vector<8x16x8xf32>
    %95 = vector.shape_cast %92 : vector<8x16x8xf32> to vector<1x8x16x8xf32>
    tpu.vector_store %arg9[%c0_43, %c0_44, %c0_45, %c0_46], %95 {strides = array<i32>} : memref<1x8x16x8xf32, #tpu.memory_space<vmem>>, vector<1x8x16x8xf32>,
    return
  }
  func.func @transform_0(%arg0: i32, %arg1: i32) -> (i32, i32, i32, i32) {
    %c8_i32 = arith.constant 8 : i32
    %0 = arith.muli %arg1, %c8_i32 : i32
    %c1_i32 = arith.constant 1 : i32
    %1 = arith.subi %0, %c1_i32 : i32
    %c0_i32 = arith.constant 0 : i32
    %2 = arith.maxsi %1, %c0_i32 : i32
    %c0_i32_0 = arith.constant 0 : i32
    %c0_i32_1 = arith.constant 0 : i32
    %c0_i32_2 = arith.constant 0 : i32
    return %arg0, %2, %c0_i32_0, %c0_i32_1 : i32, i32, i32, i32
  }
  func.func @transform_1(%arg0: i32, %arg1: i32) -> (i32, i32, i32, i32) {
    %c0_i32 = arith.constant 0 : i32
    %c0_i32_0 = arith.constant 0 : i32
    %c0_i32_1 = arith.constant 0 : i32
    return %arg0, %arg1, %c0_i32, %c0_i32_0 : i32, i32, i32, i32
  }
  func.func @transform_2(%arg0: i32, %arg1: i32) -> (i32, i32, i32, i32) {
    %c1_i32 = arith.constant 1 : i32
    %0 = arith.addi %arg1, %c1_i32 : i32
    %c8_i32 = arith.constant 8 : i32
    %1 = arith.muli %0, %c8_i32 : i32
    %c15_i32 = arith.constant 15 : i32
    %2 = arith.minsi %1, %c15_i32 : i32
    %c0_i32 = arith.constant 0 : i32
    %c0_i32_0 = arith.constant 0 : i32
    %c0_i32_1 = arith.constant 0 : i32
    return %arg0, %2, %c0_i32, %c0_i32_0 : i32, i32, i32, i32
  }
  func.func @transform_3(%arg0: i32, %arg1: i32) -> (i32, i32, i32) {
    %c0_i32 = arith.constant 0 : i32
    %c0_i32_0 = arith.constant 0 : i32
    %c0_i32_1 = arith.constant 0 : i32
    return %arg0, %c0_i32, %c0_i32_0 : i32, i32, i32
  }
  func.func @transform_4(%arg0: i32, %arg1: i32) -> (i32, i32, i32) {
    %c0_i32 = arith.constant 0 : i32
    %c0_i32_0 = arith.constant 0 : i32
    %c0_i32_1 = arith.constant 0 : i32
    return %arg0, %c0_i32, %c0_i32_0 : i32, i32, i32
  }
  func.func @transform_5(%arg0: i32, %arg1: i32) -> (i32, i32, i32) {
    %c0_i32 = arith.constant 0 : i32
    %c0_i32_0 = arith.constant 0 : i32
    %c0_i32_1 = arith.constant 0 : i32
    %c0_i32_2 = arith.constant 0 : i32
    return %c0_i32, %c0_i32_0, %c0_i32_1 : i32, i32, i32
  }
  func.func @transform_6(%arg0: i32, %arg1: i32) -> (i32, i32) {
    %c0_i32 = arith.constant 0 : i32
    %c0_i32_0 = arith.constant 0 : i32
    %c0_i32_1 = arith.constant 0 : i32
    return %c0_i32, %c0_i32_0 : i32, i32
  }
  func.func @transform_7(%arg0: i32, %arg1: i32) -> (i32, i32, i32, i32) {
    %c0_i32 = arith.constant 0 : i32
    %c0_i32_0 = arith.constant 0 : i32
    %c0_i32_1 = arith.constant 0 : i32
    return %arg0, %arg1, %c0_i32, %c0_i32_0 : i32, i32, i32, i32
  }
  func.func @transform_8(%arg0: i32, %arg1: i32) -> (i32, i32, i32) {
    %c0_i32 = arith.constant 0 : i32
    %c0_i32_0 = arith.constant 0 : i32
    %c0_i32_1 = arith.constant 0 : i32
    return %arg0, %c0_i32, %c0_i32_0 : i32, i32, i32
  }
}

module attributes {stable_mosaic.version = 11 : i64} {
  func.func @conv2_kernel(%arg0: i32, %arg1: i32, %arg2: memref<1x1x16x8xf32, #tpu.memory_space<vmem>>, %arg3: memref<1x8x16x8xf32, #tpu.memory_space<vmem>>, %arg4: memref<1x1x16x8xf32, #tpu.memory_space<vmem>>, %arg5: memref<1x1x8xf32, #tpu.memory_space<vmem>>, %arg6: memref<1x1x8xf32, #tpu.memory_space<vmem>>, %arg7: memref<3x24x8xf32, #tpu.memory_space<vmem>>, %arg8: memref<1x8xf32, #tpu.memory_space<vmem>>, %arg9: memref<1x8x16x4xf32, #tpu.memory_space<vmem>>, %arg10: memref<4x8xf32, #tpu.memory_space<vmem>>, %arg11: memref<1x8xf32, #tpu.memory_space<vmem>>, %arg12: memref<1x8x16x8xf32, #tpu.memory_space<vmem>>) attributes {dimension_semantics = [#tpu.dimension_semantics<parallel>, #tpu.dimension_semantics<parallel>], iteration_bounds = array<i64: 2, 2>, scalar_prefetch = 0 : i64, scratch_operands = 0 : i64, tpu.core_type = #tpu.core_type<tc>, window_params = [{transform_indices = @transform_0, window_bounds = array<i64: 1, 1, 16, 8>}, {transform_indices = @transform_1, window_bounds = array<i64: 1, 8, 16, 8>}, {transform_indices = @transform_2, window_bounds = array<i64: 1, 1, 16, 8>}, {transform_indices = @transform_3, window_bounds = array<i64: 1, 1, 8>}, {transform_indices = @transform_4, window_bounds = array<i64: 1, 1, 8>}, {pipeline_mode = #tpu.pipeline_mode<synchronous>, transform_indices = @transform_5, window_bounds = array<i64: 3, 24, 8>}, {pipeline_mode = #tpu.pipeline_mode<synchronous>, transform_indices = @transform_6, window_bounds = array<i64: 1, 8>}, {transform_indices = @transform_7, window_bounds = array<i64: 1, 8, 16, 4>}, {pipeline_mode = #tpu.pipeline_mode<synchronous>, transform_indices = @transform_8, window_bounds = array<i64: 4, 8>}, {pipeline_mode = #tpu.pipeline_mode<synchronous>, transform_indices = @transform_9, window_bounds = array<i64: 1, 8>}, {transform_indices = @transform_10, window_bounds = array<i64: 1, 8, 16, 8>}]} {
    %c0 = arith.constant 0 : index
    %c0_0 = arith.constant 0 : index
    %c0_1 = arith.constant 0 : index
    %0 = vector.load %arg5[%c0, %c0_0, %c0_1] : memref<1x1x8xf32, #tpu.memory_space<vmem>>, vector<1x1x8xf32>
    %c0_2 = arith.constant 0 : index
    %c0_3 = arith.constant 0 : index
    %c0_4 = arith.constant 0 : index
    %1 = vector.load %arg6[%c0_2, %c0_3, %c0_4] : memref<1x1x8xf32, #tpu.memory_space<vmem>>, vector<1x1x8xf32>
    %c0_5 = arith.constant 0 : index
    %c0_6 = arith.constant 0 : index
    %c0_7 = arith.constant 0 : index
    %c0_8 = arith.constant 0 : index
    %2 = vector.load %arg2[%c0_5, %c0_6, %c0_7, %c0_8] : memref<1x1x16x8xf32, #tpu.memory_space<vmem>>, vector<1x1x16x8xf32>
    %3 = vector.shape_cast %2 : vector<1x1x16x8xf32> to vector<1x16x8xf32>
    %4 = vector.broadcast %0 : vector<1x1x8xf32> to vector<1x16x8xf32>
    %5 = arith.mulf %3, %4 : vector<1x16x8xf32>
    %6 = vector.broadcast %1 : vector<1x1x8xf32> to vector<1x16x8xf32>
    %7 = arith.addf %5, %6 : vector<1x16x8xf32>
    %8 = arith.negf %7 : vector<1x16x8xf32>
    %9 = math.exp %8 : vector<1x16x8xf32>
    %cst = arith.constant 1.000000e+00 : f32
    %10 = vector.broadcast %cst : f32 to vector<1x16x8xf32>
    %11 = arith.addf %10, %9 : vector<1x16x8xf32>
    %12 = arith.divf %10, %11 : vector<1x16x8xf32>
    %13 = arith.mulf %7, %12 : vector<1x16x8xf32>
    %c0_i32 = arith.constant 0 : i32
    %14 = arith.cmpi sgt, %arg1, %c0_i32 : i32
    %15 = arith.extui %14 : i1 to i32
    %16 = arith.sitofp %15 : i32 to f32
    %17 = vector.broadcast %16 : f32 to vector<1x16x8xf32>
    %18 = arith.mulf %13, %17 : vector<1x16x8xf32>
    %c0_9 = arith.constant 0 : index
    %c0_10 = arith.constant 0 : index
    %c0_11 = arith.constant 0 : index
    %c0_12 = arith.constant 0 : index
    %19 = vector.load %arg4[%c0_9, %c0_10, %c0_11, %c0_12] : memref<1x1x16x8xf32, #tpu.memory_space<vmem>>, vector<1x1x16x8xf32>
    %20 = vector.shape_cast %19 : vector<1x1x16x8xf32> to vector<1x16x8xf32>
    %21 = vector.broadcast %0 : vector<1x1x8xf32> to vector<1x16x8xf32>
    %22 = arith.mulf %20, %21 : vector<1x16x8xf32>
    %23 = vector.broadcast %1 : vector<1x1x8xf32> to vector<1x16x8xf32>
    %24 = arith.addf %22, %23 : vector<1x16x8xf32>
    %25 = arith.negf %24 : vector<1x16x8xf32>
    %26 = math.exp %25 : vector<1x16x8xf32>
    %cst_13 = arith.constant 1.000000e+00 : f32
    %27 = vector.broadcast %cst_13 : f32 to vector<1x16x8xf32>
    %28 = arith.addf %27, %26 : vector<1x16x8xf32>
    %29 = arith.divf %27, %28 : vector<1x16x8xf32>
    %30 = arith.mulf %24, %29 : vector<1x16x8xf32>
    %c1_i32 = arith.constant 1 : i32
    %31 = arith.cmpi slt, %arg1, %c1_i32 : i32
    %32 = arith.extui %31 : i1 to i32
    %33 = arith.sitofp %32 : i32 to f32
    %34 = vector.broadcast %33 : f32 to vector<1x16x8xf32>
    %35 = arith.mulf %30, %34 : vector<1x16x8xf32>
    %c0_14 = arith.constant 0 : index
    %c0_15 = arith.constant 0 : index
    %c0_16 = arith.constant 0 : index
    %c0_17 = arith.constant 0 : index
    %36 = vector.load %arg3[%c0_14, %c0_15, %c0_16, %c0_17] : memref<1x8x16x8xf32, #tpu.memory_space<vmem>>, vector<1x8x16x8xf32>
    %37 = vector.shape_cast %36 : vector<1x8x16x8xf32> to vector<8x16x8xf32>
    %38 = vector.broadcast %0 : vector<1x1x8xf32> to vector<8x16x8xf32>
    %39 = arith.mulf %37, %38 : vector<8x16x8xf32>
    %40 = vector.broadcast %1 : vector<1x1x8xf32> to vector<8x16x8xf32>
    %41 = arith.addf %39, %40 : vector<8x16x8xf32>
    %42 = arith.negf %41 : vector<8x16x8xf32>
    %43 = math.exp %42 : vector<8x16x8xf32>
    %cst_18 = arith.constant 1.000000e+00 : f32
    %44 = vector.broadcast %cst_18 : f32 to vector<8x16x8xf32>
    %45 = arith.addf %44, %43 : vector<8x16x8xf32>
    %46 = arith.divf %44, %45 : vector<8x16x8xf32>
    %47 = arith.mulf %41, %46 : vector<8x16x8xf32>
    %48 = tpu.concatenate %18, %47, %35 in 0 : vector<1x16x8xf32>, vector<8x16x8xf32>, vector<1x16x8xf32> -> vector<10x16x8xf32>
    %cst_19 = arith.constant 0.000000e+00 : f32
    %49 = vector.broadcast %cst_19 : f32 to vector<10x1x8xf32>
    %50 = vector.extract_strided_slice %48 {offsets = [0, 0, 0], sizes = [10, 15, 8], strides = [1, 1, 1]} : vector<10x16x8xf32> to vector<10x15x8xf32>
    %51 = tpu.concatenate %49, %50 in 1 : vector<10x1x8xf32>, vector<10x15x8xf32> -> vector<10x16x8xf32>
    %52 = vector.extract_strided_slice %48 {offsets = [0, 1, 0], sizes = [10, 15, 8], strides = [1, 1, 1]} : vector<10x16x8xf32> to vector<10x15x8xf32>
    %53 = tpu.concatenate %52, %49 in 1 : vector<10x15x8xf32>, vector<10x1x8xf32> -> vector<10x16x8xf32>
    %54 = tpu.concatenate %51, %48, %53 in 2 : vector<10x16x8xf32>, vector<10x16x8xf32>, vector<10x16x8xf32> -> vector<10x16x24xf32>
    %cst_20 = arith.constant 0.000000e+00 : f32
    %55 = vector.broadcast %cst_20 : f32 to vector<128x8xf32>
    %56 = vector.extract_strided_slice %54 {offsets = [0, 0, 0], sizes = [8, 16, 24], strides = [1, 1, 1]} : vector<10x16x24xf32> to vector<8x16x24xf32>
    %57 = vector.shape_cast %56 : vector<8x16x24xf32> to vector<128x24xf32>
    %c0_21 = arith.constant 0 : index
    %c0_22 = arith.constant 0 : index
    %c0_23 = arith.constant 0 : index
    %58 = vector.load %arg7[%c0_21, %c0_22, %c0_23] : memref<3x24x8xf32, #tpu.memory_space<vmem>>, vector<1x24x8xf32>
    %59 = vector.shape_cast %58 : vector<1x24x8xf32> to vector<24x8xf32>
    %cst_24 = arith.constant dense<0.000000e+00> : vector<128x8xf32>
    %60 = tpu.matmul %57, %59, %cst_24 {dimension_numbers = #tpu.dot_dimension_numbers<[1], [0], [0], [1], [0, 0, 1, 1], [], []>} : vector<128x24xf32>, vector<24x8xf32>, vector<128x8xf32> -> vector<128x8xf32>
    %61 = arith.addf %55, %60 : vector<128x8xf32>
    %62 = vector.extract_strided_slice %54 {offsets = [1, 0, 0], sizes = [8, 16, 24], strides = [1, 1, 1]} : vector<10x16x24xf32> to vector<8x16x24xf32>
    %63 = vector.shape_cast %62 : vector<8x16x24xf32> to vector<128x24xf32>
    %c1 = arith.constant 1 : index
    %c0_25 = arith.constant 0 : index
    %c0_26 = arith.constant 0 : index
    %64 = vector.load %arg7[%c1, %c0_25, %c0_26] : memref<3x24x8xf32, #tpu.memory_space<vmem>>, vector<1x24x8xf32>
    %65 = vector.shape_cast %64 : vector<1x24x8xf32> to vector<24x8xf32>
    %cst_27 = arith.constant dense<0.000000e+00> : vector<128x8xf32>
    %66 = tpu.matmul %63, %65, %cst_27 {dimension_numbers = #tpu.dot_dimension_numbers<[1], [0], [0], [1], [0, 0, 1, 1], [], []>} : vector<128x24xf32>, vector<24x8xf32>, vector<128x8xf32> -> vector<128x8xf32>
    %67 = arith.addf %61, %66 : vector<128x8xf32>
    %68 = vector.extract_strided_slice %54 {offsets = [2, 0, 0], sizes = [8, 16, 24], strides = [1, 1, 1]} : vector<10x16x24xf32> to vector<8x16x24xf32>
    %69 = vector.shape_cast %68 : vector<8x16x24xf32> to vector<128x24xf32>
    %c2 = arith.constant 2 : index
    %c0_28 = arith.constant 0 : index
    %c0_29 = arith.constant 0 : index
    %70 = vector.load %arg7[%c2, %c0_28, %c0_29] : memref<3x24x8xf32, #tpu.memory_space<vmem>>, vector<1x24x8xf32>
    %71 = vector.shape_cast %70 : vector<1x24x8xf32> to vector<24x8xf32>
    %cst_30 = arith.constant dense<0.000000e+00> : vector<128x8xf32>
    %72 = tpu.matmul %69, %71, %cst_30 {dimension_numbers = #tpu.dot_dimension_numbers<[1], [0], [0], [1], [0, 0, 1, 1], [], []>} : vector<128x24xf32>, vector<24x8xf32>, vector<128x8xf32> -> vector<128x8xf32>
    %73 = arith.addf %67, %72 : vector<128x8xf32>
    %c0_31 = arith.constant 0 : index
    %c0_32 = arith.constant 0 : index
    %74 = vector.load %arg8[%c0_31, %c0_32] : memref<1x8xf32, #tpu.memory_space<vmem>>, vector<1x8xf32>
    %75 = vector.broadcast %74 : vector<1x8xf32> to vector<128x8xf32>
    %76 = arith.addf %73, %75 : vector<128x8xf32>
    %c0_33 = arith.constant 0 : index
    %c0_34 = arith.constant 0 : index
    %c0_35 = arith.constant 0 : index
    %c0_36 = arith.constant 0 : index
    %77 = vector.load %arg9[%c0_33, %c0_34, %c0_35, %c0_36] : memref<1x8x16x4xf32, #tpu.memory_space<vmem>>, vector<1x8x16x4xf32>
    %78 = vector.shape_cast %77 : vector<1x8x16x4xf32> to vector<8x16x4xf32>
    %79 = vector.shape_cast %78 : vector<8x16x4xf32> to vector<128x4xf32>
    %c0_37 = arith.constant 0 : index
    %c0_38 = arith.constant 0 : index
    %80 = vector.load %arg10[%c0_37, %c0_38] : memref<4x8xf32, #tpu.memory_space<vmem>>, vector<4x8xf32>
    %cst_39 = arith.constant dense<0.000000e+00> : vector<128x8xf32>
    %81 = tpu.matmul %79, %80, %cst_39 {dimension_numbers = #tpu.dot_dimension_numbers<[1], [0], [0], [1], [0, 0, 1, 1], [], []>} : vector<128x4xf32>, vector<4x8xf32>, vector<128x8xf32> -> vector<128x8xf32>
    %c0_40 = arith.constant 0 : index
    %c0_41 = arith.constant 0 : index
    %82 = vector.load %arg11[%c0_40, %c0_41] : memref<1x8xf32, #tpu.memory_space<vmem>>, vector<1x8xf32>
    %83 = vector.broadcast %82 : vector<1x8xf32> to vector<128x8xf32>
    %84 = arith.addf %81, %83 : vector<128x8xf32>
    %85 = arith.addf %76, %84 : vector<128x8xf32>
    %86 = vector.shape_cast %85 : vector<128x8xf32> to vector<8x16x8xf32>
    %c0_42 = arith.constant 0 : index
    %c0_43 = arith.constant 0 : index
    %c0_44 = arith.constant 0 : index
    %c0_45 = arith.constant 0 : index
    %87 = vector.load %arg12[%c0_42, %c0_43, %c0_44, %c0_45] : memref<1x8x16x8xf32, #tpu.memory_space<vmem>>, vector<1x8x16x8xf32>
    %88 = vector.shape_cast %87 : vector<1x8x16x8xf32> to vector<8x16x8xf32>
    %89 = vector.shape_cast %86 : vector<8x16x8xf32> to vector<1x8x16x8xf32>
    tpu.vector_store %arg12[%c0_42, %c0_43, %c0_44, %c0_45], %89 {strides = array<i32>} : memref<1x8x16x8xf32, #tpu.memory_space<vmem>>, vector<1x8x16x8xf32>,
    return
  }
  func.func @transform_0(%arg0: i32, %arg1: i32) -> (i32, i32, i32, i32) {
    %c8_i32 = arith.constant 8 : i32
    %0 = arith.muli %arg1, %c8_i32 : i32
    %c1_i32 = arith.constant 1 : i32
    %1 = arith.subi %0, %c1_i32 : i32
    %c0_i32 = arith.constant 0 : i32
    %2 = arith.maxsi %1, %c0_i32 : i32
    %c0_i32_0 = arith.constant 0 : i32
    %c0_i32_1 = arith.constant 0 : i32
    %c0_i32_2 = arith.constant 0 : i32
    return %arg0, %2, %c0_i32_0, %c0_i32_1 : i32, i32, i32, i32
  }
  func.func @transform_1(%arg0: i32, %arg1: i32) -> (i32, i32, i32, i32) {
    %c0_i32 = arith.constant 0 : i32
    %c0_i32_0 = arith.constant 0 : i32
    %c0_i32_1 = arith.constant 0 : i32
    return %arg0, %arg1, %c0_i32, %c0_i32_0 : i32, i32, i32, i32
  }
  func.func @transform_2(%arg0: i32, %arg1: i32) -> (i32, i32, i32, i32) {
    %c1_i32 = arith.constant 1 : i32
    %0 = arith.addi %arg1, %c1_i32 : i32
    %c8_i32 = arith.constant 8 : i32
    %1 = arith.muli %0, %c8_i32 : i32
    %c15_i32 = arith.constant 15 : i32
    %2 = arith.minsi %1, %c15_i32 : i32
    %c0_i32 = arith.constant 0 : i32
    %c0_i32_0 = arith.constant 0 : i32
    %c0_i32_1 = arith.constant 0 : i32
    return %arg0, %2, %c0_i32, %c0_i32_0 : i32, i32, i32, i32
  }
  func.func @transform_3(%arg0: i32, %arg1: i32) -> (i32, i32, i32) {
    %c0_i32 = arith.constant 0 : i32
    %c0_i32_0 = arith.constant 0 : i32
    %c0_i32_1 = arith.constant 0 : i32
    return %arg0, %c0_i32, %c0_i32_0 : i32, i32, i32
  }
  func.func @transform_4(%arg0: i32, %arg1: i32) -> (i32, i32, i32) {
    %c0_i32 = arith.constant 0 : i32
    %c0_i32_0 = arith.constant 0 : i32
    %c0_i32_1 = arith.constant 0 : i32
    return %arg0, %c0_i32, %c0_i32_0 : i32, i32, i32
  }
  func.func @transform_5(%arg0: i32, %arg1: i32) -> (i32, i32, i32) {
    %c0_i32 = arith.constant 0 : i32
    %c0_i32_0 = arith.constant 0 : i32
    %c0_i32_1 = arith.constant 0 : i32
    %c0_i32_2 = arith.constant 0 : i32
    return %c0_i32, %c0_i32_0, %c0_i32_1 : i32, i32, i32
  }
  func.func @transform_6(%arg0: i32, %arg1: i32) -> (i32, i32) {
    %c0_i32 = arith.constant 0 : i32
    %c0_i32_0 = arith.constant 0 : i32
    %c0_i32_1 = arith.constant 0 : i32
    return %c0_i32, %c0_i32_0 : i32, i32
  }
  func.func @transform_7(%arg0: i32, %arg1: i32) -> (i32, i32, i32, i32) {
    %c0_i32 = arith.constant 0 : i32
    %c0_i32_0 = arith.constant 0 : i32
    %c0_i32_1 = arith.constant 0 : i32
    return %arg0, %arg1, %c0_i32, %c0_i32_0 : i32, i32, i32, i32
  }
  func.func @transform_8(%arg0: i32, %arg1: i32) -> (i32, i32) {
    %c0_i32 = arith.constant 0 : i32
    %c0_i32_0 = arith.constant 0 : i32
    %c0_i32_1 = arith.constant 0 : i32
    return %c0_i32, %c0_i32_0 : i32, i32
  }
  func.func @transform_9(%arg0: i32, %arg1: i32) -> (i32, i32) {
    %c0_i32 = arith.constant 0 : i32
    %c0_i32_0 = arith.constant 0 : i32
    %c0_i32_1 = arith.constant 0 : i32
    return %c0_i32, %c0_i32_0 : i32, i32
  }
  func.func @transform_10(%arg0: i32, %arg1: i32) -> (i32, i32, i32, i32) {
    %c0_i32 = arith.constant 0 : i32
    %c0_i32_0 = arith.constant 0 : i32
    %c0_i32_1 = arith.constant 0 : i32
    return %arg0, %arg1, %c0_i32, %c0_i32_0 : i32, i32, i32, i32
  }
}

</mosaic_0001>

<llo_original>
// kernel: squeeze.4
$region0: #{squeeze.4}
  %s0 = inlined_call_operand.vmem [shape: f32[2,4], index: 0, kind: input, shape index: {}]
  %s1 = inlined_call_operand.vmem [shape: f32[2,2,2], index: 1, kind: output, shape index: {}]
  $region1: #{squeeze.4} parent=0
    #allocation0 [shape = 'u8[8192]{0}', space=vmem, size = 0x2000, scoped, tag = 'scoped mem for output reshape']
    #allocation1 [shape = 'u8[4096]{0}', space=vmem, size = 0x1000, scoped, tag = 'scoped mem for input reshape']
    %s3 = ssub.s32 4, 1
    %v4 = vld [vmem:[%s0] sm:%s3]
    %5 = vst [vmem:[#allocation1] sm:%s3] %v4
    %v6 = vld [vmem:[#allocation1] sm:$0x3]
    %vm7 = vcmask 15360
    %8 = vst.msk [vmem:[#allocation0] ss:$8 sm:$0x3] %vm7, %v6
    %v9 = vld [vmem:[#allocation1] sm:$0x3]
    %10 = vrot.lane.b32.xlu0 %v9, 126
    %v11 = vpop.permute.xlu0 %10
    %vm12 = vcmask 15360
    %s13 = scalar_lea.vmem [#allocation0], 1
    %14 = vst.msk [vmem:[%s13] ss:$8 sm:$0x3] %vm12, %v11
    %s16 = ssub.s32 4, 1
    %v17 = vld [vmem:[#allocation0] sm:%s16]
    %s19 = ssub.s32 4, 1
    %20 = vst [vmem:[%s1] sm:%s19] %v17
    %s21 = scalar_lea.vmem [#allocation0], 8
    %v22 = vld [vmem:[%s21] sm:%s16]
    %s24 = ssub.s32 4, 1
    %s25 = scalar_lea.vmem %s1, 2
    %26 = vst [vmem:[%s25] sm:%s24] %v22

// kernel: squeeze.6
$region0: #{squeeze.6}
  %s0 = inlined_call_operand.vmem [shape: f32[2,8], index: 0, kind: input, shape index: {}]
  %s1 = inlined_call_operand.vmem [shape: f32[2,2,4], index: 1, kind: output, shape index: {}]
  $region1: #{squeeze.6} parent=0
    #allocation0 [shape = 'u8[8192]{0}', space=vmem, size = 0x2000, scoped, tag = 'scoped mem for output reshape']
    #allocation1 [shape = 'u8[4096]{0}', space=vmem, size = 0x1000, scoped, tag = 'scoped mem for input reshape']
    %s3 = ssub.s32 4, 1
    %v4 = vld [vmem:[%s0] sm:%s3]
    %5 = vst [vmem:[#allocation1] sm:%s3] %v4
    %v6 = vld [vmem:[#allocation1] sm:$0x3]
    %vm7 = vcmask 31744
    %8 = vst.msk [vmem:[#allocation0] ss:$8 sm:$0x3] %vm7, %v6
    %v9 = vld [vmem:[#allocation1] sm:$0x3]
    %10 = vrot.lane.b32.xlu0 %v9, 124
    %v11 = vpop.permute.xlu0 %10
    %vm12 = vcmask 31744
    %s13 = scalar_lea.vmem [#allocation0], 1
    %14 = vst.msk [vmem:[%s13] ss:$8 sm:$0x3] %vm12, %v11
    %s16 = ssub.s32 4, 1
    %v17 = vld [vmem:[#allocation0] sm:%s16]
    %s19 = ssub.s32 4, 1
    %20 = vst [vmem:[%s1] sm:%s19] %v17
    %s21 = scalar_lea.vmem [#allocation0], 8
    %v22 = vld [vmem:[%s21] sm:%s16]
    %s24 = ssub.s32 4, 1
    %s25 = scalar_lea.vmem %s1, 2
    %26 = vst [vmem:[%s25] sm:%s24] %v22

// kernel: resnet_block_2d.3
$region0: #{resnet_block_2d.3}
  #allocation0 [shape = 'u32[]', space=smem, size = 0x4, offset = 0x4, fixed_abs, tag = 'smem constant byte address 0x4 - core index']
  #allocation1 [shape = 'u32[72,128]{1,0:T(1,128)}', space=vmem, size = 0x9000, scoped, tag = 'internal scratch']
  %s0 = inlined_call_operand.vmem [shape: f32[2,16,16,4], index: 0, kind: input, shape index: {}]
  %s1 = inlined_call_operand.vmem [shape: f32[2,2,4], index: 1, kind: output, shape index: {}]
  %s2 = sld [smem:[#allocation0]]
  $region41: #{resnet_block_2d.3} parent=0
    _
  %s4 = ssub.s32 1, %s2
  %s5 = scalar_select 0, %s4, %s2
  loop: start=0, step=1, limit=6
  $region2: #{resnet_block_2d.3} parent=0 // loop_pre_header
    _
  $region3: #{resnet_block_2d.3} parent=0 // loop_header
    %s7 = sphi 0, %s11
    %p8 = scmp.ge.s32.totalorder %s7, 6
    %s14 = sphi 0, %s26
    %s15 = sphi 0, %s22
    %s16 = sphi 0, %s14
    %s17 = sphi 0, %s15
    %s18 = sphi 0, %s16
    %s19 = sphi 0, %s17
    %s31 = sphi 0, %s33
    %s34 = sphi 0, %s31
    %s35 = sphi 0, %s34
    %s51 = sphi 0, %s35
    %s57 = sphi 0, %s59
    %s60 = sphi 0, %s57
    %s61 = sphi 0, %s60
    %s77 = sphi 0, %s61
  $region4: #{resnet_block_2d.3} parent=0 // loop_header_branch
    %10 = sbr.rel (%p8) target = $region8
  $region5: #{resnet_block_2d.3} parent=0 // loop_body
    %s12 = ssub.s32 %s7, 1
    %s13 = ssub.s32 %s7, 2
    %s20 = sadd.s32 1, %s15
    %p21 = scmp.ge.s32.totalorder %s20, 2
    %s22 = scalar_select %p21, 0, %s20
    %s23 = sadd.s32 1, %s14
    %s24 = scalar_select %p21, %s23, %s14
    %p25 = scmp.ge.s32.totalorder %s24, 2
    %s26 = scalar_select %p25, 0, %s24
    %s27 = ssub.s32 %s14, %s26
    %s28 = ssub.s32 %s15, %s22
    %s29 = sor.u32 %s27, %s28
    %p30 = scmp.eq.s32.totalorder %s29, 0
    %s32 = sadd.s32 %s31, 1
    %s33 = scalar_select %p30, %s31, %s32
    %p36 = pneg %p30
    %p37 = scmp.eq.s32.totalorder %s7, 3
    %p38 = por %p36, %p37
    %p39 = scmp.ne.s32.totalorder %s31, %s34
    %p40 = scmp.eq.s32.totalorder %s7, 0
    %p41 = por %p39, %p40
    %p42 = scmp.ne.s32.totalorder %s31, %s34
    %p43 = scmp.eq.s32.totalorder %s12, 3
    %p44 = por %p42, %p43
    %p45 = scmp.ne.s32.totalorder %s34, %s35
    %p46 = scmp.eq.s32.totalorder %s12, 0
    %p47 = por %p45, %p46
    %p48 = scmp.ne.s32.totalorder %s34, %s35
    %p49 = scmp.eq.s32.totalorder %s13, 3
    %p50 = por %p48, %p49
    %p52 = scmp.ne.s32.totalorder %s35, %s51
    %p53 = scmp.eq.s32.totalorder %s13, 0
    %p54 = por %p52, %p53
    %s55 = ssub.s32 %s14, %s26
    %p56 = scmp.eq.s32.totalorder %s55, 0
    %s58 = sadd.s32 %s57, 1
    %s59 = scalar_select %p56, %s57, %s58
    %p62 = pneg %p56
    %p63 = scmp.eq.s32.totalorder %s7, 3
    %p64 = por %p62, %p63
    %p65 = scmp.ne.s32.totalorder %s57, %s60
    %p66 = scmp.eq.s32.totalorder %s7, 0
    %p67 = por %p65, %p66
    %p68 = scmp.ne.s32.totalorder %s57, %s60
    %p69 = scmp.eq.s32.totalorder %s12, 3
    %p70 = por %p68, %p69
    %p71 = scmp.ne.s32.totalorder %s60, %s61
    %p72 = scmp.eq.s32.totalorder %s12, 0
    %p73 = por %p71, %p72
    %p74 = scmp.ne.s32.totalorder %s60, %s61
    %p75 = scmp.eq.s32.totalorder %s13, 3
    %p76 = por %p74, %p75
    %p78 = scmp.ne.s32.totalorder %s61, %s77
    %p79 = scmp.eq.s32.totalorder %s13, 0
    %p80 = por %p78, %p79
    %p81 = scmp.le.s32.totalorder 1, %s7
    %p82 = scmp.lt.s32.totalorder %s7, 5
    %p83 = pnand %p81, %p82
    %p84 = pneg %p83
    // Predicated region
    $region9: #{resnet_block_2d.3} parent=5 // pred_check
      _
    $region10: #{resnet_block_2d.3} parent=5 // pred_check_branch
      %86 = sbr.rel (%p83) target = $region12
    $region11: #{resnet_block_2d.3} parent=5 // pred_region
      %s87 = ssub.s32 %s7, 1
    $region12: #{resnet_block_2d.3} parent=5 // pred_fallthru
      _
    %p88 = scmp.lt.s32.totalorder %s7, 4
    // Predicated region
    $region13: #{resnet_block_2d.3} parent=5 // pred_check
      %p89 = pneg %p88
    $region14: #{resnet_block_2d.3} parent=5 // pred_check_branch
      %91 = sbr.rel (%p89) target = $region16
    $region15: #{resnet_block_2d.3} parent=5 // pred_region
      // Predicated region
      $region17: #{resnet_block_2d.3} parent=15 // pred_check
        %p92 = pneg %p41
      $region18: #{resnet_block_2d.3} parent=15 // pred_check_branch
        %94 = sbr.rel (%p92) target = $region20
      $region19: #{resnet_block_2d.3} parent=15 // pred_region
        %s95 = smul.u32 8, %s15
        %p96 = scmp.lt.s32.totalorder %s14, 1
        %s97 = scalar_select %p96, %s14, 1
        %p98 = scmp.lt.s32.totalorder %s95, 15
        %s99 = scalar_select %p98, %s95, 15
        %s100 = smul.addr %s99, 2
        %s101 = smul.addr %s97, 32
        %s102 = sadd.s32 %s100, %s101
        %s103 = smul.addr %s102, 8
        %s104 = scalar_lea.vmem %s0, %s103
        %s105 = smul.u32 8, %s15
      $region20: #{resnet_block_2d.3} parent=15 // pred_fallthru
        _
    $region16: #{resnet_block_2d.3} parent=5 // pred_fallthru
      _
    %p106 = scmp.le.s32.totalorder 1, %s7
    %p107 = scmp.lt.s32.totalorder %s7, 5
    %p108 = pnand %p106, %p107
    %p109 = pneg %p108
    // Predicated region
    $region21: #{resnet_block_2d.3} parent=5 // pred_check
      _
    $region22: #{resnet_block_2d.3} parent=5 // pred_check_branch
      %111 = sbr.rel (%p108) target = $region24
    $region23: #{resnet_block_2d.3} parent=5 // pred_region
      %s112 = ssub.s32 %s7, 1
      %s113 = smul.u32 8, %s17
      %p114 = scmp.lt.s32.totalorder %s16, 1
      %s115 = scalar_select %p114, %s16, 1
      %p116 = scmp.lt.s32.totalorder %s113, 15
      %s117 = scalar_select %p116, %s113, 15
      %s118 = smul.addr %s117, 2
      %s119 = smul.addr %s115, 32
      %s120 = sadd.s32 %s118, %s119
      %s121 = smul.addr %s120, 8
      %s122 = scalar_lea.vmem %s0, %s121
      %p123 = pneg %p47
      %p124 = pneg %p44
      %p125 = pneg %p73
      %p126 = pneg %p70
      %p127 = scmp.lt.s32.totalorder %s16, 1
      %s128 = scalar_select %p127, %s16, 1
      %s129 = smul.addr %s128, 2
      %s130 = scalar_lea.vmem %s1, %s129
      %s131 = smul.u32 8, %s17
      %p132 = scmp.lt.s32.totalorder %s16, 1
      %s133 = scalar_select %p132, %s16, 1
      %p134 = scmp.lt.s32.totalorder %s131, 15
      %s135 = scalar_select %p134, %s131, 15
      %s136 = smul.addr %s135, 2
      %s137 = smul.addr %s133, 32
      %s138 = sadd.s32 %s136, %s137
      %s139 = smul.addr %s138, 8
      %s140 = scalar_lea.vmem %s0, %s139
      %s141 = smul.u32 8, %s17
      %p142 = scmp.lt.s32.totalorder %s16, 1
      %s143 = scalar_select %p142, %s16, 1
      %s144 = smul.addr %s143, 2
      %s145 = scalar_lea.vmem %s1, %s144
      %p146 = scmp.eq.s32.totalorder %s17, 0
      // Predicated region
      $region25: #{resnet_block_2d.3} parent=23 // pred_check
        %p147 = pneg %p146
      $region26: #{resnet_block_2d.3} parent=23 // pred_check_branch
        %149 = sbr.rel (%p147) target = $region28
      $region27: #{resnet_block_2d.3} parent=23 // pred_region
        %vm150 = vcmask 25600
        %151 = vst.msk [vmem:[%s145] sm:$0x3] %vm150, 0.0
      $region28: #{resnet_block_2d.3} parent=23 // pred_fallthru
        _
      %v152 = vld [vmem:[%s140] sm:$0xff]
      %v153 = vld [vmem:[%s140 + $0x8] sm:$0xff]
      %v154 = vld [vmem:[%s140 + $0x10] sm:$0xff]
      %v155 = vld [vmem:[%s140 + $0x18] sm:$0xff]
      %v156 = vld [vmem:[%s140 + $0x20] sm:$0xff]
      %v157 = vld [vmem:[%s140 + $0x28] sm:$0xff]
      %v158 = vld [vmem:[%s140 + $0x30] sm:$0xff]
      %v159 = vld [vmem:[%s140 + $0x38] sm:$0xff]
      %v160 = vld [vmem:[%s140 + $0x40] sm:$0xff]
      %v161 = vld [vmem:[%s140 + $0x48] sm:$0xff]
      %v162 = vld [vmem:[%s140 + $0x50] sm:$0xff]
      %v163 = vld [vmem:[%s140 + $0x58] sm:$0xff]
      %v164 = vld [vmem:[%s140 + $0x60] sm:$0xff]
      %v165 = vld [vmem:[%s140 + $0x68] sm:$0xff]
      %v166 = vld [vmem:[%s140 + $0x70] sm:$0xff]
      %v167 = vld [vmem:[%s140 + $0x78] sm:$0xff]
      %vm168 = vcmask 31744
      %v169 = vsel %vm168, %v152, 0.0
      %v170 = vsel %vm168, %v153, 0.0
      %v171 = vadd.f32 %v169, %v170
      %v172 = vsel %vm168, %v154, 0.0
      %v173 = vadd.f32 %v171, %v172
      %v174 = vsel %vm168, %v155, 0.0
      %v175 = vadd.f32 %v173, %v174
      %v176 = vsel %vm168, %v156, 0.0
      %v177 = vadd.f32 %v175, %v176
      %v178 = vsel %vm168, %v157, 0.0
      %v179 = vadd.f32 %v177, %v178
      %v180 = vsel %vm168, %v158, 0.0
      %v181 = vadd.f32 %v179, %v180
      %v182 = vsel %vm168, %v159, 0.0
      %v183 = vadd.f32 %v181, %v182
      %v184 = vsel %vm168, %v160, 0.0
      %v185 = vadd.f32 %v183, %v184
      %v186 = vsel %vm168, %v161, 0.0
      %v187 = vadd.f32 %v185, %v186
      %v188 = vsel %vm168, %v162, 0.0
      %v189 = vadd.f32 %v187, %v188
      %v190 = vsel %vm168, %v163, 0.0
      %v191 = vadd.f32 %v189, %v190
      %v192 = vsel %vm168, %v164, 0.0
      %v193 = vadd.f32 %v191, %v192
      %v194 = vsel %vm168, %v165, 0.0
      %v195 = vadd.f32 %v193, %v194
      %v196 = vsel %vm168, %v166, 0.0
      %v197 = vadd.f32 %v195, %v196
      %v198 = vsel %vm168, %v167, 0.0
      %v199 = vadd.f32 %v197, %v198
      %v200 = vrot.slane %v199, 4
      %v201 = vadd.f32 %v199, %v200
      %v202 = vrot.slane %v201, 2
      %v203 = vadd.f32 %v201, %v202
      %v204 = vrot.slane %v203, 1
      %v205 = vadd.f32 %v203, %v204
      %v206 = vmul.f32 %v152, %v152
      %v207 = vmul.f32 %v153, %v153
      %v208 = vmul.f32 %v154, %v154
      %v209 = vmul.f32 %v155, %v155
      %v210 = vmul.f32 %v156, %v156
      %v211 = vmul.f32 %v157, %v157
      %v212 = vmul.f32 %v158, %v158
      %v213 = vmul.f32 %v159, %v159
      %v214 = vmul.f32 %v160, %v160
      %v215 = vmul.f32 %v161, %v161
      %v216 = vmul.f32 %v162, %v162
      %v217 = vmul.f32 %v163, %v163
      %v218 = vmul.f32 %v164, %v164
      %v219 = vmul.f32 %v165, %v165
      %v220 = vmul.f32 %v166, %v166
      %v221 = vmul.f32 %v167, %v167
      %v222 = vsel %vm168, %v206, 0.0
      %v223 = vsel %vm168, %v207, 0.0
      %v224 = vadd.f32 %v222, %v223
      %v225 = vsel %vm168, %v208, 0.0
      %v226 = vadd.f32 %v224, %v225
      %v227 = vsel %vm168, %v209, 0.0
      %v228 = vadd.f32 %v226, %v227
      %v229 = vsel %vm168, %v210, 0.0
      %v230 = vadd.f32 %v228, %v229
      %v231 = vsel %vm168, %v211, 0.0
      %v232 = vadd.f32 %v230, %v231
      %v233 = vsel %vm168, %v212, 0.0
      %v234 = vadd.f32 %v232, %v233
      %v235 = vsel %vm168, %v213, 0.0
      %v236 = vadd.f32 %v234, %v235
      %v237 = vsel %vm168, %v214, 0.0
      %v238 = vadd.f32 %v236, %v237
      %v239 = vsel %vm168, %v215, 0.0
      %v240 = vadd.f32 %v238, %v239
      %v241 = vsel %vm168, %v216, 0.0
      %v242 = vadd.f32 %v240, %v241
      %v243 = vsel %vm168, %v217, 0.0
      %v244 = vadd.f32 %v242, %v243
      %v245 = vsel %vm168, %v218, 0.0
      %v246 = vadd.f32 %v244, %v245
      %v247 = vsel %vm168, %v219, 0.0
      %v248 = vadd.f32 %v246, %v247
      %v249 = vsel %vm168, %v220, 0.0
      %v250 = vadd.f32 %v248, %v249
      %v251 = vsel %vm168, %v221, 0.0
      %v252 = vadd.f32 %v250, %v251
      %v253 = vrot.slane %v252, 4
      %v254 = vadd.f32 %v252, %v253
      %v255 = vrot.slane %v254, 2
      %v256 = vadd.f32 %v254, %v255
      %v257 = vrot.slane %v256, 1
      %v258 = vadd.f32 %v256, %v257
      %v259 = vld [vmem:[%s145] sm:$0x3]
      %vm260 = vcmask 1040384
      %v261 = vsel %vm260, %v205, %v258
      %v262 = vadd.f32 %v259, %v261
      %vm263 = vcmask 25600
      %264 = vst.msk [vmem:[%s145] sm:$0x3] %vm263, %v262
      %p265 = scmp.lt.s32.totalorder %s16, 1
      %s266 = scalar_select %p265, %s16, 1
      %s267 = smul.addr %s266, 2
      %s268 = scalar_lea.vmem %s1, %s267
      // Predicated region
      $region29: #{resnet_block_2d.3} parent=23 // pred_check
        %p269 = pneg %p70
      $region30: #{resnet_block_2d.3} parent=23 // pred_check_branch
        %271 = sbr.rel (%p269) target = $region32
      $region31: #{resnet_block_2d.3} parent=23 // pred_region
        _
      $region32: #{resnet_block_2d.3} parent=23 // pred_fallthru
        _
    $region24: #{resnet_block_2d.3} parent=5 // pred_fallthru
      _
    %p272 = scmp.le.s32.totalorder 2, %s7
    // Predicated region
    $region33: #{resnet_block_2d.3} parent=5 // pred_check
      %p273 = pneg %p272
    $region34: #{resnet_block_2d.3} parent=5 // pred_check_branch
      %275 = sbr.rel (%p273) target = $region36
    $region35: #{resnet_block_2d.3} parent=5 // pred_region
      %s276 = ssub.s32 %s7, 2
      // Predicated region
      $region37: #{resnet_block_2d.3} parent=35 // pred_check
        %p277 = pneg %p76
      $region38: #{resnet_block_2d.3} parent=35 // pred_check_branch
        %279 = sbr.rel (%p277) target = $region40
      $region39: #{resnet_block_2d.3} parent=35 // pred_region
        %p280 = scmp.lt.s32.totalorder %s18, 1
        %s281 = scalar_select %p280, %s18, 1
        %s282 = smul.addr %s281, 2
        %s283 = scalar_lea.vmem %s1, %s282
      $region40: #{resnet_block_2d.3} parent=35 // pred_fallthru
        _
    $region36: #{resnet_block_2d.3} parent=5 // pred_fallthru
      _
  $region6: #{resnet_block_2d.3} parent=0 // loop_footer
    %s11 = sadd.s32 1, %s7
  $region7: #{resnet_block_2d.3} parent=0 // loop_footer_branch
    %6 = sbr.rel target = $region3
  $region8: #{resnet_block_2d.3} parent=0 // loop_exit
    _

// kernel: resnet_block_2d.5
$region0: #{resnet_block_2d.5}
  #allocation0 [shape = 'u32[]', space=smem, size = 0x4, offset = 0x4, fixed_abs, tag = 'smem constant byte address 0x4 - core index']
  #allocation1 [shape = 'u32[72,128]{1,0:T(1,128)}', space=vmem, size = 0x9000, scoped, tag = 'internal scratch']
  %s0 = inlined_call_operand.vmem [shape: f32[2,16,16,8], index: 0, kind: input, shape index: {}, may-alias: {0,1,2}]
  %s1 = inlined_call_operand.vmem [shape: f32[2,16,16,8], index: 1, kind: input, shape index: {}, may-alias: {0,1,2}]
  %s2 = inlined_call_operand.vmem [shape: f32[2,16,16,8], index: 2, kind: input, shape index: {}, may-alias: {0,1,2}]
  %s3 = inlined_call_operand.vmem [shape: f32[2,1,8], index: 3, kind: input, shape index: {}]
  %s4 = inlined_call_operand.vmem [shape: f32[2,1,8], index: 4, kind: input, shape index: {}]
  %s5 = inlined_call_operand.vmem [shape: f32[3,24,8], index: 5, kind: input, shape index: {}]
  %s6 = inlined_call_operand.vmem [shape: f32[1,8], index: 6, kind: input, shape index: {}]
  %s7 = inlined_call_operand.vmem [shape: f32[2,16,16,4], index: 7, kind: input, shape index: {}]
  %s8 = inlined_call_operand.vmem [shape: f32[4,8], index: 8, kind: input, shape index: {}]
  %s9 = inlined_call_operand.vmem [shape: f32[1,8], index: 9, kind: input, shape index: {}]
  %s10 = inlined_call_operand.vmem [shape: f32[2,16,16,8], index: 10, kind: output, shape index: {}]
  %s11 = sld [smem:[#allocation0]]
  $region73: #{resnet_block_2d.5} parent=0
    _
  %s13 = ssub.s32 1, %s11
  %s14 = scalar_select 0, %s13, %s11
  loop: start=0, step=1, limit=6
  $region2: #{resnet_block_2d.5} parent=0 // loop_pre_header
    _
  $region3: #{resnet_block_2d.5} parent=0 // loop_header
    %s16 = sphi 0, %s20
    %p17 = scmp.ge.s32.totalorder %s16, 6
    %s23 = sphi 0, %s35
    %s24 = sphi 0, %s31
    %s25 = sphi 0, %s23
    %s26 = sphi 0, %s24
    %s27 = sphi 0, %s25
    %s28 = sphi 0, %s26
    %s48 = sphi 0, %s50
    %s51 = sphi 0, %s48
    %s52 = sphi 0, %s51
    %s68 = sphi 0, %s52
    %s76 = sphi 0, %s78
    %s79 = sphi 0, %s76
    %s80 = sphi 0, %s79
    %s96 = sphi 0, %s80
    %s112 = sphi 0, %s114
    %s115 = sphi 0, %s112
    %s116 = sphi 0, %s115
    %s132 = sphi 0, %s116
    %s138 = sphi 0, %s140
    %s141 = sphi 0, %s138
    %s142 = sphi 0, %s141
    %s158 = sphi 0, %s142
    %s164 = sphi 0, %s166
    %s167 = sphi 0, %s164
    %s168 = sphi 0, %s167
    %s184 = sphi 0, %s168
    %s188 = sphi 0, %s188
    %s190 = sphi 0, %s188
    %s191 = sphi 0, %s190
    %s205 = sphi 0, %s191
    %s209 = sphi 0, %s209
    %s211 = sphi 0, %s209
    %s212 = sphi 0, %s211
    %s226 = sphi 0, %s212
    %s234 = sphi 0, %s236
    %s237 = sphi 0, %s234
    %s238 = sphi 0, %s237
    %s254 = sphi 0, %s238
    %s258 = sphi 0, %s258
    %s260 = sphi 0, %s258
    %s261 = sphi 0, %s260
    %s275 = sphi 0, %s261
    %s279 = sphi 0, %s279
    %s281 = sphi 0, %s279
    %s282 = sphi 0, %s281
    %s296 = sphi 0, %s282
    %s304 = sphi 0, %s306
    %s307 = sphi 0, %s304
    %s308 = sphi 0, %s307
    %s324 = sphi 0, %s308
  $region4: #{resnet_block_2d.5} parent=0 // loop_header_branch
    %19 = sbr.rel (%p17) target = $region8
  $region5: #{resnet_block_2d.5} parent=0 // loop_body
    %s21 = ssub.s32 %s16, 1
    %s22 = ssub.s32 %s16, 2
    %s29 = sadd.s32 1, %s24
    %p30 = scmp.ge.s32.totalorder %s29, 2
    %s31 = scalar_select %p30, 0, %s29
    %s32 = sadd.s32 1, %s23
    %s33 = scalar_select %p30, %s32, %s23
    %p34 = scmp.ge.s32.totalorder %s33, 2
    %s35 = scalar_select %p34, 0, %s33
    %s36 = smul.u32 %s24, 8
    %s37 = ssub.s32 %s36, 1
    %p38 = scmp.gt.s32.totalorder %s37, 0
    %s39 = scalar_select %p38, %s37, 0
    %s40 = smul.u32 %s31, 8
    %s41 = ssub.s32 %s40, 1
    %p42 = scmp.gt.s32.totalorder %s41, 0
    %s43 = scalar_select %p42, %s41, 0
    %s44 = ssub.s32 %s23, %s35
    %s45 = ssub.s32 %s39, %s43
    %s46 = sor.u32 %s44, %s45
    %p47 = scmp.eq.s32.totalorder %s46, 0
    %s49 = sadd.s32 %s48, 1
    %s50 = scalar_select %p47, %s48, %s49
    %p53 = pneg %p47
    %p54 = scmp.eq.s32.totalorder %s16, 3
    %p55 = por %p53, %p54
    %p56 = scmp.ne.s32.totalorder %s48, %s51
    %p57 = scmp.eq.s32.totalorder %s16, 0
    %p58 = por %p56, %p57
    %p59 = scmp.ne.s32.totalorder %s48, %s51
    %p60 = scmp.eq.s32.totalorder %s21, 3
    %p61 = por %p59, %p60
    %p62 = scmp.ne.s32.totalorder %s51, %s52
    %p63 = scmp.eq.s32.totalorder %s21, 0
    %p64 = por %p62, %p63
    %p65 = scmp.ne.s32.totalorder %s51, %s52
    %p66 = scmp.eq.s32.totalorder %s22, 3
    %p67 = por %p65, %p66
    %p69 = scmp.ne.s32.totalorder %s52, %s68
    %p70 = scmp.eq.s32.totalorder %s22, 0
    %p71 = por %p69, %p70
    %s72 = ssub.s32 %s23, %s35
    %s73 = ssub.s32 %s24, %s31
    %s74 = sor.u32 %s72, %s73
    %p75 = scmp.eq.s32.totalorder %s74, 0
    %s77 = sadd.s32 %s76, 1
    %s78 = scalar_select %p75, %s76, %s77
    %p81 = pneg %p75
    %p82 = scmp.eq.s32.totalorder %s16, 3
    %p83 = por %p81, %p82
    %p84 = scmp.ne.s32.totalorder %s76, %s79
    %p85 = scmp.eq.s32.totalorder %s16, 0
    %p86 = por %p84, %p85
    %p87 = scmp.ne.s32.totalorder %s76, %s79
    %p88 = scmp.eq.s32.totalorder %s21, 3
    %p89 = por %p87, %p88
    %p90 = scmp.ne.s32.totalorder %s79, %s80
    %p91 = scmp.eq.s32.totalorder %s21, 0
    %p92 = por %p90, %p91
    %p93 = scmp.ne.s32.totalorder %s79, %s80
    %p94 = scmp.eq.s32.totalorder %s22, 3
    %p95 = por %p93, %p94
    %p97 = scmp.ne.s32.totalorder %s80, %s96
    %p98 = scmp.eq.s32.totalorder %s22, 0
    %p99 = por %p97, %p98
    %s100 = sadd.s32 %s24, 1
    %s101 = smul.u32 %s100, 8
    %p102 = scmp.lt.s32.totalorder %s101, 15
    %s103 = scalar_select %p102, %s101, 15
    %s104 = sadd.s32 %s31, 1
    %s105 = smul.u32 %s104, 8
    %p106 = scmp.lt.s32.totalorder %s105, 15
    %s107 = scalar_select %p106, %s105, 15
    %s108 = ssub.s32 %s23, %s35
    %s109 = ssub.s32 %s103, %s107
    %s110 = sor.u32 %s108, %s109
    %p111 = scmp.eq.s32.totalorder %s110, 0
    %s113 = sadd.s32 %s112, 1
    %s114 = scalar_select %p111, %s112, %s113
    %p117 = pneg %p111
    %p118 = scmp.eq.s32.totalorder %s16, 3
    %p119 = por %p117, %p118
    %p120 = scmp.ne.s32.totalorder %s112, %s115
    %p121 = scmp.eq.s32.totalorder %s16, 0
    %p122 = por %p120, %p121
    %p123 = scmp.ne.s32.totalorder %s112, %s115
    %p124 = scmp.eq.s32.totalorder %s21, 3
    %p125 = por %p123, %p124
    %p126 = scmp.ne.s32.totalorder %s115, %s116
    %p127 = scmp.eq.s32.totalorder %s21, 0
    %p128 = por %p126, %p127
    %p129 = scmp.ne.s32.totalorder %s115, %s116
    %p130 = scmp.eq.s32.totalorder %s22, 3
    %p131 = por %p129, %p130
    %p133 = scmp.ne.s32.totalorder %s116, %s132
    %p134 = scmp.eq.s32.totalorder %s22, 0
    %p135 = por %p133, %p134
    %s136 = ssub.s32 %s23, %s35
    %p137 = scmp.eq.s32.totalorder %s136, 0
    %s139 = sadd.s32 %s138, 1
    %s140 = scalar_select %p137, %s138, %s139
    %p143 = pneg %p137
    %p144 = scmp.eq.s32.totalorder %s16, 3
    %p145 = por %p143, %p144
    %p146 = scmp.ne.s32.totalorder %s138, %s141
    %p147 = scmp.eq.s32.totalorder %s16, 0
    %p148 = por %p146, %p147
    %p149 = scmp.ne.s32.totalorder %s138, %s141
    %p150 = scmp.eq.s32.totalorder %s21, 3
    %p151 = por %p149, %p150
    %p152 = scmp.ne.s32.totalorder %s141, %s142
    %p153 = scmp.eq.s32.totalorder %s21, 0
    %p154 = por %p152, %p153
    %p155 = scmp.ne.s32.totalorder %s141, %s142
    %p156 = scmp.eq.s32.totalorder %s22, 3
    %p157 = por %p155, %p156
    %p159 = scmp.ne.s32.totalorder %s142, %s158
    %p160 = scmp.eq.s32.totalorder %s22, 0
    %p161 = por %p159, %p160
    %s162 = ssub.s32 %s23, %s35
    %p163 = scmp.eq.s32.totalorder %s162, 0
    %s165 = sadd.s32 %s164, 1
    %s166 = scalar_select %p163, %s164, %s165
    %p169 = pneg %p163
    %p170 = scmp.eq.s32.totalorder %s16, 3
    %p171 = por %p169, %p170
    %p172 = scmp.ne.s32.totalorder %s164, %s167
    %p173 = scmp.eq.s32.totalorder %s16, 0
    %p174 = por %p172, %p173
    %p175 = scmp.ne.s32.totalorder %s164, %s167
    %p176 = scmp.eq.s32.totalorder %s21, 3
    %p177 = por %p175, %p176
    %p178 = scmp.ne.s32.totalorder %s167, %s168
    %p179 = scmp.eq.s32.totalorder %s21, 0
    %p180 = por %p178, %p179
    %p181 = scmp.ne.s32.totalorder %s167, %s168
    %p182 = scmp.eq.s32.totalorder %s22, 3
    %p183 = por %p181, %p182
    %p185 = scmp.ne.s32.totalorder %s168, %s184
    %p186 = scmp.eq.s32.totalorder %s22, 0
    %p187 = por %p185, %p186
    %s189 = sadd.s32 %s188, 1
    %p192 = scmp.eq.s32.totalorder %s16, 3
    %p193 = scmp.ne.s32.totalorder %s188, %s190
    %p194 = scmp.eq.s32.totalorder %s16, 0
    %p195 = por %p193, %p194
    %p196 = scmp.ne.s32.totalorder %s188, %s190
    %p197 = scmp.eq.s32.totalorder %s21, 3
    %p198 = por %p196, %p197
    %p199 = scmp.ne.s32.totalorder %s190, %s191
    %p200 = scmp.eq.s32.totalorder %s21, 0
    %p201 = por %p199, %p200
    %p202 = scmp.ne.s32.totalorder %s190, %s191
    %p203 = scmp.eq.s32.totalorder %s22, 3
    %p204 = por %p202, %p203
    %p206 = scmp.ne.s32.totalorder %s191, %s205
    %p207 = scmp.eq.s32.totalorder %s22, 0
    %p208 = por %p206, %p207
    %s210 = sadd.s32 %s209, 1
    %p213 = scmp.eq.s32.totalorder %s16, 3
    %p214 = scmp.ne.s32.totalorder %s209, %s211
    %p215 = scmp.eq.s32.totalorder %s16, 0
    %p216 = por %p214, %p215
    %p217 = scmp.ne.s32.totalorder %s209, %s211
    %p218 = scmp.eq.s32.totalorder %s21, 3
    %p219 = por %p217, %p218
    %p220 = scmp.ne.s32.totalorder %s211, %s212
    %p221 = scmp.eq.s32.totalorder %s21, 0
    %p222 = por %p220, %p221
    %p223 = scmp.ne.s32.totalorder %s211, %s212
    %p224 = scmp.eq.s32.totalorder %s22, 3
    %p225 = por %p223, %p224
    %p227 = scmp.ne.s32.totalorder %s212, %s226
    %p228 = scmp.eq.s32.totalorder %s22, 0
    %p229 = por %p227, %p228
    %s230 = ssub.s32 %s23, %s35
    %s231 = ssub.s32 %s24, %s31
    %s232 = sor.u32 %s230, %s231
    %p233 = scmp.eq.s32.totalorder %s232, 0
    %s235 = sadd.s32 %s234, 1
    %s236 = scalar_select %p233, %s234, %s235
    %p239 = pneg %p233
    %p240 = scmp.eq.s32.totalorder %s16, 3
    %p241 = por %p239, %p240
    %p242 = scmp.ne.s32.totalorder %s234, %s237
    %p243 = scmp.eq.s32.totalorder %s16, 0
    %p244 = por %p242, %p243
    %p245 = scmp.ne.s32.totalorder %s234, %s237
    %p246 = scmp.eq.s32.totalorder %s21, 3
    %p247 = por %p245, %p246
    %p248 = scmp.ne.s32.totalorder %s237, %s238
    %p249 = scmp.eq.s32.totalorder %s21, 0
    %p250 = por %p248, %p249
    %p251 = scmp.ne.s32.totalorder %s237, %s238
    %p252 = scmp.eq.s32.totalorder %s22, 3
    %p253 = por %p251, %p252
    %p255 = scmp.ne.s32.totalorder %s238, %s254
    %p256 = scmp.eq.s32.totalorder %s22, 0
    %p257 = por %p255, %p256
    %s259 = sadd.s32 %s258, 1
    %p262 = scmp.eq.s32.totalorder %s16, 3
    %p263 = scmp.ne.s32.totalorder %s258, %s260
    %p264 = scmp.eq.s32.totalorder %s16, 0
    %p265 = por %p263, %p264
    %p266 = scmp.ne.s32.totalorder %s258, %s260
    %p267 = scmp.eq.s32.totalorder %s21, 3
    %p268 = por %p266, %p267
    %p269 = scmp.ne.s32.totalorder %s260, %s261
    %p270 = scmp.eq.s32.totalorder %s21, 0
    %p271 = por %p269, %p270
    %p272 = scmp.ne.s32.totalorder %s260, %s261
    %p273 = scmp.eq.s32.totalorder %s22, 3
    %p274 = por %p272, %p273
    %p276 = scmp.ne.s32.totalorder %s261, %s275
    %p277 = scmp.eq.s32.totalorder %s22, 0
    %p278 = por %p276, %p277
    %s280 = sadd.s32 %s279, 1
    %p283 = scmp.eq.s32.totalorder %s16, 3
    %p284 = scmp.ne.s32.totalorder %s279, %s281
    %p285 = scmp.eq.s32.totalorder %s16, 0
    %p286 = por %p284, %p285
    %p287 = scmp.ne.s32.totalorder %s279, %s281
    %p288 = scmp.eq.s32.totalorder %s21, 3
    %p289 = por %p287, %p288
    %p290 = scmp.ne.s32.totalorder %s281, %s282
    %p291 = scmp.eq.s32.totalorder %s21, 0
    %p292 = por %p290, %p291
    %p293 = scmp.ne.s32.totalorder %s281, %s282
    %p294 = scmp.eq.s32.totalorder %s22, 3
    %p295 = por %p293, %p294
    %p297 = scmp.ne.s32.totalorder %s282, %s296
    %p298 = scmp.eq.s32.totalorder %s22, 0
    %p299 = por %p297, %p298
    %s300 = ssub.s32 %s23, %s35
    %s301 = ssub.s32 %s24, %s31
    %s302 = sor.u32 %s300, %s301
    %p303 = scmp.eq.s32.totalorder %s302, 0
    %s305 = sadd.s32 %s304, 1
    %s306 = scalar_select %p303, %s304, %s305
    %p309 = pneg %p303
    %p310 = scmp.eq.s32.totalorder %s16, 3
    %p311 = por %p309, %p310
    %p312 = scmp.ne.s32.totalorder %s304, %s307
    %p313 = scmp.eq.s32.totalorder %s16, 0
    %p314 = por %p312, %p313
    %p315 = scmp.ne.s32.totalorder %s304, %s307
    %p316 = scmp.eq.s32.totalorder %s21, 3
    %p317 = por %p315, %p316
    %p318 = scmp.ne.s32.totalorder %s307, %s308
    %p319 = scmp.eq.s32.totalorder %s21, 0
    %p320 = por %p318, %p319
    %p321 = scmp.ne.s32.totalorder %s307, %s308
    %p322 = scmp.eq.s32.totalorder %s22, 3
    %p323 = por %p321, %p322
    %p325 = scmp.ne.s32.totalorder %s308, %s324
    %p326 = scmp.eq.s32.totalorder %s22, 0
    %p327 = por %p325, %p326
    %p328 = scmp.le.s32.totalorder 1, %s16
    %p329 = scmp.lt.s32.totalorder %s16, 5
    %p330 = pnand %p328, %p329
    %p331 = pneg %p330
    // Predicated region
    $region9: #{resnet_block_2d.5} parent=5 // pred_check
      _
    $region10: #{resnet_block_2d.5} parent=5 // pred_check_branch
      %333 = sbr.rel (%p330) target = $region12
    $region11: #{resnet_block_2d.5} parent=5 // pred_region
      %s334 = ssub.s32 %s16, 1
      // Predicated region
      $region13: #{resnet_block_2d.5} parent=11 // pred_check
        %p335 = pneg %p201
      $region14: #{resnet_block_2d.5} parent=11 // pred_check_branch
        %337 = sbr.rel (%p335) target = $region16
      $region15: #{resnet_block_2d.5} parent=11 // pred_region
        _
      $region16: #{resnet_block_2d.5} parent=11 // pred_fallthru
        _
      // Predicated region
      $region17: #{resnet_block_2d.5} parent=11 // pred_check
        %p338 = pneg %p222
      $region18: #{resnet_block_2d.5} parent=11 // pred_check_branch
        %340 = sbr.rel (%p338) target = $region20
      $region19: #{resnet_block_2d.5} parent=11 // pred_region
        _
      $region20: #{resnet_block_2d.5} parent=11 // pred_fallthru
        _
      // Predicated region
      $region21: #{resnet_block_2d.5} parent=11 // pred_check
        %p341 = pneg %p271
      $region22: #{resnet_block_2d.5} parent=11 // pred_check_branch
        %343 = sbr.rel (%p341) target = $region24
      $region23: #{resnet_block_2d.5} parent=11 // pred_region
        _
      $region24: #{resnet_block_2d.5} parent=11 // pred_fallthru
        _
      // Predicated region
      $region25: #{resnet_block_2d.5} parent=11 // pred_check
        %p344 = pneg %p292
      $region26: #{resnet_block_2d.5} parent=11 // pred_check_branch
        %346 = sbr.rel (%p344) target = $region28
      $region27: #{resnet_block_2d.5} parent=11 // pred_region
        _
      $region28: #{resnet_block_2d.5} parent=11 // pred_fallthru
        _
    $region12: #{resnet_block_2d.5} parent=5 // pred_fallthru
      _
    %p347 = scmp.lt.s32.totalorder %s16, 4
    // Predicated region
    $region29: #{resnet_block_2d.5} parent=5 // pred_check
      %p348 = pneg %p347
    $region30: #{resnet_block_2d.5} parent=5 // pred_check_branch
      %350 = sbr.rel (%p348) target = $region32
    $region31: #{resnet_block_2d.5} parent=5 // pred_region
      // Predicated region
      $region33: #{resnet_block_2d.5} parent=31 // pred_check
        %p351 = pneg %p58
      $region34: #{resnet_block_2d.5} parent=31 // pred_check_branch
        %353 = sbr.rel (%p351) target = $region36
      $region35: #{resnet_block_2d.5} parent=31 // pred_region
        %s354 = smul.u32 %s24, 8
        %s355 = ssub.s32 %s354, 1
        %p356 = scmp.gt.s32.totalorder %s355, 0
        %s357 = scalar_select %p356, %s355, 0
        %p358 = scmp.lt.s32.totalorder %s23, 1
        %s359 = scalar_select %p358, %s23, 1
        %p360 = scmp.lt.s32.totalorder %s357, 15
        %s361 = scalar_select %p360, %s357, 15
        %s362 = smul.addr %s361, 2
        %s363 = smul.addr %s359, 32
        %s364 = sadd.s32 %s362, %s363
        %s365 = smul.addr %s364, 8
        %s366 = scalar_lea.vmem %s0, %s365
        %s367 = smul.u32 %s24, 8
        %s368 = ssub.s32 %s367, 1
        %p369 = scmp.gt.s32.totalorder %s368, 0
        %s370 = scalar_select %p369, %s368, 0
      $region36: #{resnet_block_2d.5} parent=31 // pred_fallthru
        _
      // Predicated region
      $region37: #{resnet_block_2d.5} parent=31 // pred_check
        %p371 = pneg %p86
      $region38: #{resnet_block_2d.5} parent=31 // pred_check_branch
        %373 = sbr.rel (%p371) target = $region40
      $region39: #{resnet_block_2d.5} parent=31 // pred_region
        %s374 = smul.u32 8, %s24
        %p375 = scmp.lt.s32.totalorder %s23, 1
        %s376 = scalar_select %p375, %s23, 1
        %p377 = scmp.lt.s32.totalorder %s374, 15
        %s378 = scalar_select %p377, %s374, 15
        %s379 = smul.addr %s378, 2
        %s380 = smul.addr %s376, 32
        %s381 = sadd.s32 %s379, %s380
        %s382 = smul.addr %s381, 8
        %s383 = scalar_lea.vmem %s1, %s382
        %s384 = smul.u32 8, %s24
      $region40: #{resnet_block_2d.5} parent=31 // pred_fallthru
        _
      // Predicated region
      $region41: #{resnet_block_2d.5} parent=31 // pred_check
        %p385 = pneg %p122
      $region42: #{resnet_block_2d.5} parent=31 // pred_check_branch
        %387 = sbr.rel (%p385) target = $region44
      $region43: #{resnet_block_2d.5} parent=31 // pred_region
        %s388 = sadd.s32 %s24, 1
        %s389 = smul.u32 %s388, 8
        %p390 = scmp.lt.s32.totalorder %s389, 15
        %s391 = scalar_select %p390, %s389, 15
        %p392 = scmp.lt.s32.totalorder %s23, 1
        %s393 = scalar_select %p392, %s23, 1
        %p394 = scmp.lt.s32.totalorder %s391, 15
        %s395 = scalar_select %p394, %s391, 15
        %s396 = smul.addr %s395, 2
        %s397 = smul.addr %s393, 32
        %s398 = sadd.s32 %s396, %s397
        %s399 = smul.addr %s398, 8
        %s400 = scalar_lea.vmem %s2, %s399
        %s401 = sadd.s32 %s24, 1
        %s402 = smul.u32 %s401, 8
        %p403 = scmp.lt.s32.totalorder %s402, 15
        %s404 = scalar_select %p403, %s402, 15
      $region44: #{resnet_block_2d.5} parent=31 // pred_fallthru
        _
      // Predicated region
      $region45: #{resnet_block_2d.5} parent=31 // pred_check
        %p405 = pneg %p148
      $region46: #{resnet_block_2d.5} parent=31 // pred_check_branch
        %407 = sbr.rel (%p405) target = $region48
      $region47: #{resnet_block_2d.5} parent=31 // pred_region
        %p408 = scmp.lt.s32.totalorder %s23, 1
        %s409 = scalar_select %p408, %s23, 1
        %s410 = scalar_lea.vmem %s3, %s409
      $region48: #{resnet_block_2d.5} parent=31 // pred_fallthru
        _
      // Predicated region
      $region49: #{resnet_block_2d.5} parent=31 // pred_check
        %p411 = pneg %p174
      $region50: #{resnet_block_2d.5} parent=31 // pred_check_branch
        %413 = sbr.rel (%p411) target = $region52
      $region51: #{resnet_block_2d.5} parent=31 // pred_region
        %p414 = scmp.lt.s32.totalorder %s23, 1
        %s415 = scalar_select %p414, %s23, 1
        %s416 = scalar_lea.vmem %s4, %s415
      $region52: #{resnet_block_2d.5} parent=31 // pred_fallthru
        _
      // Predicated region
      $region53: #{resnet_block_2d.5} parent=31 // pred_check
        %p417 = pneg %p244
      $region54: #{resnet_block_2d.5} parent=31 // pred_check_branch
        %419 = sbr.rel (%p417) target = $region56
      $region55: #{resnet_block_2d.5} parent=31 // pred_region
        %s420 = smul.u32 8, %s24
        %p421 = scmp.lt.s32.totalorder %s23, 1
        %s422 = scalar_select %p421, %s23, 1
        %p423 = scmp.lt.s32.totalorder %s420, 15
        %s424 = scalar_select %p423, %s420, 15
        %s425 = smul.addr %s424, 2
        %s426 = smul.addr %s422, 32
        %s427 = sadd.s32 %s425, %s426
        %s428 = smul.addr %s427, 8
        %s429 = scalar_lea.vmem %s7, %s428
        %s430 = smul.u32 8, %s24
      $region56: #{resnet_block_2d.5} parent=31 // pred_fallthru
        _
    $region32: #{resnet_block_2d.5} parent=5 // pred_fallthru
      _
    %p431 = scmp.le.s32.totalorder 1, %s16
    %p432 = scmp.lt.s32.totalorder %s16, 5
    %p433 = pnand %p431, %p432
    %p434 = pneg %p433
    // Predicated region
    $region57: #{resnet_block_2d.5} parent=5 // pred_check
      _
    $region58: #{resnet_block_2d.5} parent=5 // pred_check_branch
      %436 = sbr.rel (%p433) target = $region60
    $region59: #{resnet_block_2d.5} parent=5 // pred_region
      %s437 = ssub.s32 %s16, 1
      %s438 = smul.u32 %s26, 8
      %s439 = ssub.s32 %s438, 1
      %p440 = scmp.gt.s32.totalorder %s439, 0
      %s441 = scalar_select %p440, %s439, 0
      %p442 = scmp.lt.s32.totalorder %s25, 1
      %s443 = scalar_select %p442, %s25, 1
      %p444 = scmp.lt.s32.totalorder %s441, 15
      %s445 = scalar_select %p444, %s441, 15
      %s446 = smul.addr %s445, 2
      %s447 = smul.addr %s443, 32
      %s448 = sadd.s32 %s446, %s447
      %s449 = smul.addr %s448, 8
      %s450 = scalar_lea.vmem %s0, %s449
      %p451 = pneg %p64
      %p452 = pneg %p61
      %s453 = smul.u32 8, %s26
      %p454 = scmp.lt.s32.totalorder %s25, 1
      %s455 = scalar_select %p454, %s25, 1
      %p456 = scmp.lt.s32.totalorder %s453, 15
      %s457 = scalar_select %p456, %s453, 15
      %s458 = smul.addr %s457, 2
      %s459 = smul.addr %s455, 32
      %s460 = sadd.s32 %s458, %s459
      %s461 = smul.addr %s460, 8
      %s462 = scalar_lea.vmem %s1, %s461
      %p463 = pneg %p92
      %p464 = pneg %p89
      %s465 = sadd.s32 %s26, 1
      %s466 = smul.u32 %s465, 8
      %p467 = scmp.lt.s32.totalorder %s466, 15
      %s468 = scalar_select %p467, %s466, 15
      %p469 = scmp.lt.s32.totalorder %s25, 1
      %s470 = scalar_select %p469, %s25, 1
      %p471 = scmp.lt.s32.totalorder %s468, 15
      %s472 = scalar_select %p471, %s468, 15
      %s473 = smul.addr %s472, 2
      %s474 = smul.addr %s470, 32
      %s475 = sadd.s32 %s473, %s474
      %s476 = smul.addr %s475, 8
      %s477 = scalar_lea.vmem %s2, %s476
      %p478 = pneg %p128
      %p479 = pneg %p125
      %p480 = scmp.lt.s32.totalorder %s25, 1
      %s481 = scalar_select %p480, %s25, 1
      %s482 = scalar_lea.vmem %s3, %s481
      %p483 = pneg %p154
      %p484 = pneg %p151
      %p485 = scmp.lt.s32.totalorder %s25, 1
      %s486 = scalar_select %p485, %s25, 1
      %s487 = scalar_lea.vmem %s4, %s486
      %p488 = pneg %p180
      %p489 = pneg %p177
      %p490 = pneg %p201
      %p491 = pneg %p198
      %p492 = pneg %p222
      %p493 = pneg %p219
      %s494 = smul.u32 8, %s26
      %p495 = scmp.lt.s32.totalorder %s25, 1
      %s496 = scalar_select %p495, %s25, 1
      %p497 = scmp.lt.s32.totalorder %s494, 15
      %s498 = scalar_select %p497, %s494, 15
      %s499 = smul.addr %s498, 2
      %s500 = smul.addr %s496, 32
      %s501 = sadd.s32 %s499, %s500
      %s502 = smul.addr %s501, 8
      %s503 = scalar_lea.vmem %s7, %s502
      %p504 = pneg %p250
      %p505 = pneg %p247
      %p506 = pneg %p271
      %p507 = pneg %p268
      %p508 = pneg %p292
      %p509 = pneg %p289
      %p510 = pneg %p320
      %p511 = pneg %p317
      %s512 = smul.u32 8, %s26
      %p513 = scmp.lt.s32.totalorder %s25, 1
      %s514 = scalar_select %p513, %s25, 1
      %p515 = scmp.lt.s32.totalorder %s512, 15
      %s516 = scalar_select %p515, %s512, 15
      %s517 = smul.addr %s516, 2
      %s518 = smul.addr %s514, 32
      %s519 = sadd.s32 %s517, %s518
      %s520 = smul.addr %s519, 8
      %s521 = scalar_lea.vmem %s10, %s520
      %s522 = smul.u32 %s26, 8
      %s523 = ssub.s32 %s522, 1
      %p524 = scmp.gt.s32.totalorder %s523, 0
      %s525 = scalar_select %p524, %s523, 0
      %p526 = scmp.lt.s32.totalorder %s25, 1
      %s527 = scalar_select %p526, %s25, 1
      %p528 = scmp.lt.s32.totalorder %s525, 15
      %s529 = scalar_select %p528, %s525, 15
      %s530 = smul.addr %s529, 2
      %s531 = smul.addr %s527, 32
      %s532 = sadd.s32 %s530, %s531
      %s533 = smul.addr %s532, 8
      %s534 = scalar_lea.vmem %s0, %s533
      %s535 = smul.u32 %s26, 8
      %s536 = ssub.s32 %s535, 1
      %p537 = scmp.gt.s32.totalorder %s536, 0
      %s538 = scalar_select %p537, %s536, 0
      %s539 = smul.u32 8, %s26
      %p540 = scmp.lt.s32.totalorder %s25, 1
      %s541 = scalar_select %p540, %s25, 1
      %p542 = scmp.lt.s32.totalorder %s539, 15
      %s543 = scalar_select %p542, %s539, 15
      %s544 = smul.addr %s543, 2
      %s545 = smul.addr %s541, 32
      %s546 = sadd.s32 %s544, %s545
      %s547 = smul.addr %s546, 8
      %s548 = scalar_lea.vmem %s1, %s547
      %s549 = smul.u32 8, %s26
      %s550 = sadd.s32 %s26, 1
      %s551 = smul.u32 %s550, 8
      %p552 = scmp.lt.s32.totalorder %s551, 15
      %s553 = scalar_select %p552, %s551, 15
      %p554 = scmp.lt.s32.totalorder %s25, 1
      %s555 = scalar_select %p554, %s25, 1
      %p556 = scmp.lt.s32.totalorder %s553, 15
      %s557 = scalar_select %p556, %s553, 15
      %s558 = smul.addr %s557, 2
      %s559 = smul.addr %s555, 32
      %s560 = sadd.s32 %s558, %s559
      %s561 = smul.addr %s560, 8
      %s562 = scalar_lea.vmem %s2, %s561
      %s563 = sadd.s32 %s26, 1
      %s564 = smul.u32 %s563, 8
      %p565 = scmp.lt.s32.totalorder %s564, 15
      %s566 = scalar_select %p565, %s564, 15
      %p567 = scmp.lt.s32.totalorder %s25, 1
      %s568 = scalar_select %p567, %s25, 1
      %s569 = scalar_lea.vmem %s3, %s568
      %p570 = scmp.lt.s32.totalorder %s25, 1
      %s571 = scalar_select %p570, %s25, 1
      %s572 = scalar_lea.vmem %s4, %s571
      %s573 = smul.u32 8, %s26
      %p574 = scmp.lt.s32.totalorder %s25, 1
      %s575 = scalar_select %p574, %s25, 1
      %p576 = scmp.lt.s32.totalorder %s573, 15
      %s577 = scalar_select %p576, %s573, 15
      %s578 = smul.addr %s577, 2
      %s579 = smul.addr %s575, 32
      %s580 = sadd.s32 %s578, %s579
      %s581 = smul.addr %s580, 8
      %s582 = scalar_lea.vmem %s7, %s581
      %s583 = smul.u32 8, %s26
      %s584 = smul.u32 8, %s26
      %p585 = scmp.lt.s32.totalorder %s25, 1
      %s586 = scalar_select %p585, %s25, 1
      %p587 = scmp.lt.s32.totalorder %s584, 15
      %s588 = scalar_select %p587, %s584, 15
      %s589 = smul.addr %s588, 2
      %s590 = smul.addr %s586, 32
      %s591 = sadd.s32 %s589, %s590
      %s592 = smul.addr %s591, 8
      %s593 = scalar_lea.vmem %s10, %s592
      %s594 = smul.u32 8, %s26
      %v595 = vld [vmem:[%s569] sm:$0x1]
      %v596 = vld [vmem:[%s572] sm:$0x1]
      %v597 = vld [vmem:[%s534] sm:$0xff]
      %v598 = vld [vmem:[%s534 + $0x8] sm:$0xff]
      %v600 = vperm.slane %v595, 0
      %v602 = vmul.f32 %v597, %v600
      %v603 = vmul.f32 %v598, %v600
      %v605 = vperm.slane %v596, 0
      %v607 = vadd.f32 %v602, %v605
      %v608 = vadd.f32 %v603, %v605
      %v609 = vxor.u32 %v607, 2147483648
      %v610 = vxor.u32 %v608, 2147483648
      %v611 = vmul.f32 %v609, 1.442695
      %v612 = vpow.pop %v611
      %v613 = vmul.f32 %v610, 1.442695
      %v614 = vpow.pop %v613
      %v615 = vadd.f32 %v612, 1.0
      %v616 = vadd.f32 %v614, 1.0
      %v617 = vrcp.pop %v615
      %v618 = vmul.f32 %v615, %v617
      %v619 = vsub.f32 1.0, %v618
      %v620 = vmul.f32 %v617, %v619
      %v621 = vadd.f32 %v617, %v620
      %vm622 = vweird.f32 %v615
      %vm623 = vweird.f32 %v617
      %vm624 = vmor %vm622, %vm623
      %v625 = vsel %vm624, %v617, %v621
      %v626 = vand.u32 2147483647, %v615
      %vm627 = vcmp.eq.f32.partialorder %v626, 8.507059e+37
      %v628 = vand.u32 %v615, 2147483648
      %v629 = vor.u32 1.1754944e-38, %v628
      %v630 = vsel %vm627, %v629, %v625
      %v631 = vmul.f32 1.0, %v630
      %v632 = vrcp.pop %v616
      %v633 = vmul.f32 %v616, %v632
      %v634 = vsub.f32 1.0, %v633
      %v635 = vmul.f32 %v632, %v634
      %v636 = vadd.f32 %v632, %v635
      %vm637 = vweird.f32 %v616
      %vm638 = vweird.f32 %v632
      %vm639 = vmor %vm637, %vm638
      %v640 = vsel %vm639, %v632, %v636
      %v641 = vand.u32 2147483647, %v616
      %vm642 = vcmp.eq.f32.partialorder %v641, 8.507059e+37
      %v643 = vand.u32 %v616, 2147483648
      %v644 = vor.u32 1.1754944e-38, %v643
      %v645 = vsel %vm642, %v644, %v640
      %v646 = vmul.f32 1.0, %v645
      %v647 = vmul.f32 %v607, %v631
      %v648 = vmul.f32 %v608, %v646
      %p649 = scmp.gt.s32.totalorder %s26, 0
      %s650 = scalar_select %p649, 1, 0
      %s651 = scvt.s32.f32 %s650
      %v652 = vstv %s651
      %v653 = vmul.f32 %v647, %v652
      %v654 = vmul.f32 %v648, %v652
      %v655 = vld [vmem:[%s562] sm:$0xff]
      %v656 = vld [vmem:[%s562 + $0x8] sm:$0xff]
      %v657 = vmul.f32 %v655, %v600
      %v658 = vmul.f32 %v656, %v600
      %v659 = vadd.f32 %v657, %v605
      %v660 = vadd.f32 %v658, %v605
      %v661 = vxor.u32 %v659, 2147483648
      %v662 = vxor.u32 %v660, 2147483648
      %v663 = vmul.f32 %v661, 1.442695
      %v664 = vpow.pop %v663
      %v665 = vmul.f32 %v662, 1.442695
      %v666 = vpow.pop %v665
      %v667 = vadd.f32 %v664, 1.0
      %v668 = vadd.f32 %v666, 1.0
      %v669 = vrcp.pop %v667
      %v670 = vmul.f32 %v667, %v669
      %v671 = vsub.f32 1.0, %v670
      %v672 = vmul.f32 %v669, %v671
      %v673 = vadd.f32 %v669, %v672
      %vm674 = vweird.f32 %v667
      %vm675 = vweird.f32 %v669
      %vm676 = vmor %vm674, %vm675
      %v677 = vsel %vm676, %v669, %v673
      %v678 = vand.u32 2147483647, %v667
      %vm679 = vcmp.eq.f32.partialorder %v678, 8.507059e+37
      %v680 = vand.u32 %v667, 2147483648
      %v681 = vor.u32 1.1754944e-38, %v680
      %v682 = vsel %vm679, %v681, %v677
      %v683 = vmul.f32 1.0, %v682
      %v684 = vrcp.pop %v668
      %v685 = vmul.f32 %v668, %v684
      %v686 = vsub.f32 1.0, %v685
      %v687 = vmul.f32 %v684, %v686
      %v688 = vadd.f32 %v684, %v687
      %vm689 = vweird.f32 %v668
      %vm690 = vweird.f32 %v684
      %vm691 = vmor %vm689, %vm690
      %v692 = vsel %vm691, %v684, %v688
      %v693 = vand.u32 2147483647, %v668
      %vm694 = vcmp.eq.f32.partialorder %v693, 8.507059e+37
      %v695 = vand.u32 %v668, 2147483648
      %v696 = vor.u32 1.1754944e-38, %v695
      %v697 = vsel %vm694, %v696, %v692
      %v698 = vmul.f32 1.0, %v697
      %v699 = vmul.f32 %v659, %v683
      %v700 = vmul.f32 %v660, %v698
      %p701 = scmp.lt.s32.totalorder %s26, 1
      %s702 = scalar_select %p701, 1, 0
      %s703 = scvt.s32.f32 %s702
      %v704 = vstv %s703
      %v705 = vmul.f32 %v699, %v704
      %v706 = vmul.f32 %v700, %v704
      %v707 = vld [vmem:[%s548] sm:$0xff]
      %v708 = vld [vmem:[%s548 + $0x8] sm:$0xff]
      %v709 = vld [vmem:[%s548 + $0x10] sm:$0xff]
      %v710 = vld [vmem:[%s548 + $0x18] sm:$0xff]
      %v711 = vld [vmem:[%s548 + $0x20] sm:$0xff]
      %v712 = vld [vmem:[%s548 + $0x28] sm:$0xff]
      %v713 = vld [vmem:[%s548 + $0x30] sm:$0xff]
      %v714 = vld [vmem:[%s548 + $0x38] sm:$0xff]
      %v715 = vld [vmem:[%s548 + $0x40] sm:$0xff]
      %v716 = vld [vmem:[%s548 + $0x48] sm:$0xff]
      %v717 = vld [vmem:[%s548 + $0x50] sm:$0xff]
      %v718 = vld [vmem:[%s548 + $0x58] sm:$0xff]
      %v719 = vld [vmem:[%s548 + $0x60] sm:$0xff]
      %v720 = vld [vmem:[%s548 + $0x68] sm:$0xff]
      %v721 = vld [vmem:[%s548 + $0x70] sm:$0xff]
      %v722 = vld [vmem:[%s548 + $0x78] sm:$0xff]
      %v723 = vmul.f32 %v707, %v600
      %v724 = vmul.f32 %v708, %v600
      %v725 = vmul.f32 %v709, %v600
      %v726 = vmul.f32 %v710, %v600
      %v727 = vmul.f32 %v711, %v600
      %v728 = vmul.f32 %v712, %v600
      %v729 = vmul.f32 %v713, %v600
      %v730 = vmul.f32 %v714, %v600
      %v731 = vmul.f32 %v715, %v600
      %v732 = vmul.f32 %v716, %v600
      %v733 = vmul.f32 %v717, %v600
      %v734 = vmul.f32 %v718, %v600
      %v735 = vmul.f32 %v719, %v600
      %v736 = vmul.f32 %v720, %v600
      %v737 = vmul.f32 %v721, %v600
      %v738 = vmul.f32 %v722, %v600
      %v739 = vadd.f32 %v723, %v605
      %v740 = vadd.f32 %v724, %v605
      %v741 = vadd.f32 %v725, %v605
      %v742 = vadd.f32 %v726, %v605
      %v743 = vadd.f32 %v727, %v605
      %v744 = vadd.f32 %v728, %v605
      %v745 = vadd.f32 %v729, %v605
      %v746 = vadd.f32 %v730, %v605
      %v747 = vadd.f32 %v731, %v605
      %v748 = vadd.f32 %v732, %v605
      %v749 = vadd.f32 %v733, %v605
      %v750 = vadd.f32 %v734, %v605
      %v751 = vadd.f32 %v735, %v605
      %v752 = vadd.f32 %v736, %v605
      %v753 = vadd.f32 %v737, %v605
      %v754 = vadd.f32 %v738, %v605
      %v755 = vxor.u32 %v739, 2147483648
      %v756 = vxor.u32 %v740, 2147483648
      %v757 = vxor.u32 %v741, 2147483648
      %v758 = vxor.u32 %v742, 2147483648
      %v759 = vxor.u32 %v743, 2147483648
      %v760 = vxor.u32 %v744, 2147483648
      %v761 = vxor.u32 %v745, 2147483648
      %v762 = vxor.u32 %v746, 2147483648
      %v763 = vxor.u32 %v747, 2147483648
      %v764 = vxor.u32 %v748, 2147483648
      %v765 = vxor.u32 %v749, 2147483648
      %v766 = vxor.u32 %v750, 2147483648
      %v767 = vxor.u32 %v751, 2147483648
      %v768 = vxor.u32 %v752, 2147483648
      %v769 = vxor.u32 %v753, 2147483648
      %v770 = vxor.u32 %v754, 2147483648
      %v771 = vmul.f32 %v755, 1.442695
      %v772 = vpow.pop %v771
      %v773 = vmul.f32 %v756, 1.442695
      %v774 = vpow.pop %v773
      %v775 = vmul.f32 %v757, 1.442695
      %v776 = vpow.pop %v775
      %v777 = vmul.f32 %v758, 1.442695
      %v778 = vpow.pop %v777
      %v779 = vmul.f32 %v759, 1.442695
      %v780 = vpow.pop %v779
      %v781 = vmul.f32 %v760, 1.442695
      %v782 = vpow.pop %v781
      %v783 = vmul.f32 %v761, 1.442695
      %v784 = vpow.pop %v783
      %v785 = vmul.f32 %v762, 1.442695
      %v786 = vpow.pop %v785
      %v787 = vmul.f32 %v763, 1.442695
      %v788 = vpow.pop %v787
      %v789 = vmul.f32 %v764, 1.442695
      %v790 = vpow.pop %v789
      %v791 = vmul.f32 %v765, 1.442695
      %v792 = vpow.pop %v791
      %v793 = vmul.f32 %v766, 1.442695
      %v794 = vpow.pop %v793
      %v795 = vmul.f32 %v767, 1.442695
      %v796 = vpow.pop %v795
      %v797 = vmul.f32 %v768, 1.442695
      %v798 = vpow.pop %v797
      %v799 = vmul.f32 %v769, 1.442695
      %v800 = vpow.pop %v799
      %v801 = vmul.f32 %v770, 1.442695
      %v802 = vpow.pop %v801
      %v803 = vadd.f32 %v772, 1.0
      %v804 = vadd.f32 %v774, 1.0
      %v805 = vadd.f32 %v776, 1.0
      %v806 = vadd.f32 %v778, 1.0
      %v807 = vadd.f32 %v780, 1.0
      %v808 = vadd.f32 %v782, 1.0
      %v809 = vadd.f32 %v784, 1.0
      %v810 = vadd.f32 %v786, 1.0
      %v811 = vadd.f32 %v788, 1.0
      %v812 = vadd.f32 %v790, 1.0
      %v813 = vadd.f32 %v792, 1.0
      %v814 = vadd.f32 %v794, 1.0
      %v815 = vadd.f32 %v796, 1.0
      %v816 = vadd.f32 %v798, 1.0
      %v817 = vadd.f32 %v800, 1.0
      %v818 = vadd.f32 %v802, 1.0
      %v819 = vrcp.pop %v803
      %v820 = vmul.f32 %v803, %v819
      %v821 = vsub.f32 1.0, %v820
      %v822 = vmul.f32 %v819, %v821
      %v823 = vadd.f32 %v819, %v822
      %vm824 = vweird.f32 %v803
      %vm825 = vweird.f32 %v819
      %vm826 = vmor %vm824, %vm825
      %v827 = vsel %vm826, %v819, %v823
      %v828 = vand.u32 2147483647, %v803
      %vm829 = vcmp.eq.f32.partialorder %v828, 8.507059e+37
      %v830 = vand.u32 %v803, 2147483648
      %v831 = vor.u32 1.1754944e-38, %v830
      %v832 = vsel %vm829, %v831, %v827
      %v833 = vmul.f32 1.0, %v832
      %v834 = vrcp.pop %v804
      %v835 = vmul.f32 %v804, %v834
      %v836 = vsub.f32 1.0, %v835
      %v837 = vmul.f32 %v834, %v836
      %v838 = vadd.f32 %v834, %v837
      %vm839 = vweird.f32 %v804
      %vm840 = vweird.f32 %v834
      %vm841 = vmor %vm839, %vm840
      %v842 = vsel %vm841, %v834, %v838
      %v843 = vand.u32 2147483647, %v804
      %vm844 = vcmp.eq.f32.partialorder %v843, 8.507059e+37
      %v845 = vand.u32 %v804, 2147483648
      %v846 = vor.u32 1.1754944e-38, %v845
      %v847 = vsel %vm844, %v846, %v842
      %v848 = vmul.f32 1.0, %v847
      %v849 = vrcp.pop %v805
      %v850 = vmul.f32 %v805, %v849
      %v851 = vsub.f32 1.0, %v850
      %v852 = vmul.f32 %v849, %v851
      %v853 = vadd.f32 %v849, %v852
      %vm854 = vweird.f32 %v805
      %vm855 = vweird.f32 %v849
      %vm856 = vmor %vm854, %vm855
      %v857 = vsel %vm856, %v849, %v853
      %v858 = vand.u32 2147483647, %v805
      %vm859 = vcmp.eq.f32.partialorder %v858, 8.507059e+37
      %v860 = vand.u32 %v805, 2147483648
      %v861 = vor.u32 1.1754944e-38, %v860
      %v862 = vsel %vm859, %v861, %v857
      %v863 = vmul.f32 1.0, %v862
      %v864 = vrcp.pop %v806
      %v865 = vmul.f32 %v806, %v864
      %v866 = vsub.f32 1.0, %v865
      %v867 = vmul.f32 %v864, %v866
      %v868 = vadd.f32 %v864, %v867
      %vm869 = vweird.f32 %v806
      %vm870 = vweird.f32 %v864
      %vm871 = vmor %vm869, %vm870
      %v872 = vsel %vm871, %v864, %v868
      %v873 = vand.u32 2147483647, %v806
      %vm874 = vcmp.eq.f32.partialorder %v873, 8.507059e+37
      %v875 = vand.u32 %v806, 2147483648
      %v876 = vor.u32 1.1754944e-38, %v875
      %v877 = vsel %vm874, %v876, %v872
      %v878 = vmul.f32 1.0, %v877
      %v879 = vrcp.pop %v807
      %v880 = vmul.f32 %v807, %v879
      %v881 = vsub.f32 1.0, %v880
      %v882 = vmul.f32 %v879, %v881
      %v883 = vadd.f32 %v879, %v882
      %vm884 = vweird.f32 %v807
      %vm885 = vweird.f32 %v879
      %vm886 = vmor %vm884, %vm885
      %v887 = vsel %vm886, %v879, %v883
      %v888 = vand.u32 2147483647, %v807
      %vm889 = vcmp.eq.f32.partialorder %v888, 8.507059e+37
      %v890 = vand.u32 %v807, 2147483648
      %v891 = vor.u32 1.1754944e-38, %v890
      %v892 = vsel %vm889, %v891, %v887
      %v893 = vmul.f32 1.0, %v892
      %v894 = vrcp.pop %v808
      %v895 = vmul.f32 %v808, %v894
      %v896 = vsub.f32 1.0, %v895
      %v897 = vmul.f32 %v894, %v896
      %v898 = vadd.f32 %v894, %v897
      %vm899 = vweird.f32 %v808
      %vm900 = vweird.f32 %v894
      %vm901 = vmor %vm899, %vm900
      %v902 = vsel %vm901, %v894, %v898
      %v903 = vand.u32 2147483647, %v808
      %vm904 = vcmp.eq.f32.partialorder %v903, 8.507059e+37
      %v905 = vand.u32 %v808, 2147483648
      %v906 = vor.u32 1.1754944e-38, %v905
      %v907 = vsel %vm904, %v906, %v902
      %v908 = vmul.f32 1.0, %v907
      %v909 = vrcp.pop %v809
      %v910 = vmul.f32 %v809, %v909
      %v911 = vsub.f32 1.0, %v910
      %v912 = vmul.f32 %v909, %v911
      %v913 = vadd.f32 %v909, %v912
      %vm914 = vweird.f32 %v809
      %vm915 = vweird.f32 %v909
      %vm916 = vmor %vm914, %vm915
      %v917 = vsel %vm916, %v909, %v913
      %v918 = vand.u32 2147483647, %v809
      %vm919 = vcmp.eq.f32.partialorder %v918, 8.507059e+37
      %v920 = vand.u32 %v809, 2147483648
      %v921 = vor.u32 1.1754944e-38, %v920
      %v922 = vsel %vm919, %v921, %v917
      %v923 = vmul.f32 1.0, %v922
      %v924 = vrcp.pop %v810
      %v925 = vmul.f32 %v810, %v924
      %v926 = vsub.f32 1.0, %v925
      %v927 = vmul.f32 %v924, %v926
      %v928 = vadd.f32 %v924, %v927
      %vm929 = vweird.f32 %v810
      %vm930 = vweird.f32 %v924
      %vm931 = vmor %vm929, %vm930
      %v932 = vsel %vm931, %v924, %v928
      %v933 = vand.u32 2147483647, %v810
      %vm934 = vcmp.eq.f32.partialorder %v933, 8.507059e+37
      %v935 = vand.u32 %v810, 2147483648
      %v936 = vor.u32 1.1754944e-38, %v935
      %v937 = vsel %vm934, %v936, %v932
      %v938 = vmul.f32 1.0, %v937
      %v939 = vrcp.pop %v811
      %v940 = vmul.f32 %v811, %v939
      %v941 = vsub.f32 1.0, %v940
      %v942 = vmul.f32 %v939, %v941
      %v943 = vadd.f32 %v939, %v942
      %vm944 = vweird.f32 %v811
      %vm945 = vweird.f32 %v939
      %vm946 = vmor %vm944, %vm945
      %v947 = vsel %vm946, %v939, %v943
      %v948 = vand.u32 2147483647, %v811
      %vm949 = vcmp.eq.f32.partialorder %v948, 8.507059e+37
      %v950 = vand.u32 %v811, 2147483648
      %v951 = vor.u32 1.1754944e-38, %v950
      %v952 = vsel %vm949, %v951, %v947
      %v953 = vmul.f32 1.0, %v952
      %v954 = vrcp.pop %v812
      %v955 = vmul.f32 %v812, %v954
      %v956 = vsub.f32 1.0, %v955
      %v957 = vmul.f32 %v954, %v956
      %v958 = vadd.f32 %v954, %v957
      %vm959 = vweird.f32 %v812
      %vm960 = vweird.f32 %v954
      %vm961 = vmor %vm959, %vm960
      %v962 = vsel %vm961, %v954, %v958
      %v963 = vand.u32 2147483647, %v812
      %vm964 = vcmp.eq.f32.partialorder %v963, 8.507059e+37
      %v965 = vand.u32 %v812, 2147483648
      %v966 = vor.u32 1.1754944e-38, %v965
      %v967 = vsel %vm964, %v966, %v962
      %v968 = vmul.f32 1.0, %v967
      %v969 = vrcp.pop %v813
      %v970 = vmul.f32 %v813, %v969
      %v971 = vsub.f32 1.0, %v970
      %v972 = vmul.f32 %v969, %v971
      %v973 = vadd.f32 %v969, %v972
      %vm974 = vweird.f32 %v813
      %vm975 = vweird.f32 %v969
      %vm976 = vmor %vm974, %vm975
      %v977 = vsel %vm976, %v969, %v973
      %v978 = vand.u32 2147483647, %v813
      %vm979 = vcmp.eq.f32.partialorder %v978, 8.507059e+37
      %v980 = vand.u32 %v813, 2147483648
      %v981 = vor.u32 1.1754944e-38, %v980
      %v982 = vsel %vm979, %v981, %v977
      %v983 = vmul.f32 1.0, %v982
      %v984 = vrcp.pop %v814
      %v985 = vmul.f32 %v814, %v984
      %v986 = vsub.f32 1.0, %v985
      %v987 = vmul.f32 %v984, %v986
      %v988 = vadd.f32 %v984, %v987
      %vm989 = vweird.f32 %v814
      %vm990 = vweird.f32 %v984
      %vm991 = vmor %vm989, %vm990
      %v992 = vsel %vm991, %v984, %v988
      %v993 = vand.u32 2147483647, %v814
      %vm994 = vcmp.eq.f32.partialorder %v993, 8.507059e+37
      %v995 = vand.u32 %v814, 2147483648
      %v996 = vor.u32 1.1754944e-38, %v995
      %v997 = vsel %vm994, %v996, %v992
      %v998 = vmul.f32 1.0, %v997
      %v999 = vrcp.pop %v815
      %v1000 = vmul.f32 %v815, %v999
      %v1001 = vsub.f32 1.0, %v1000
      %v1002 = vmul.f32 %v999, %v1001
      %v1003 = vadd.f32 %v999, %v1002
      %vm1004 = vweird.f32 %v815
      %vm1005 = vweird.f32 %v999
      %vm1006 = vmor %vm1004, %vm1005
      %v1007 = vsel %vm1006, %v999, %v1003
      %v1008 = vand.u32 2147483647, %v815
      %vm1009 = vcmp.eq.f32.partialorder %v1008, 8.507059e+37
      %v1010 = vand.u32 %v815, 2147483648
      %v1011 = vor.u32 1.1754944e-38, %v1010
      %v1012 = vsel %vm1009, %v1011, %v1007
      %v1013 = vmul.f32 1.0, %v1012
      %v1014 = vrcp.pop %v816
      %v1015 = vmul.f32 %v816, %v1014
      %v1016 = vsub.f32 1.0, %v1015
      %v1017 = vmul.f32 %v1014, %v1016
      %v1018 = vadd.f32 %v1014, %v1017
      %vm1019 = vweird.f32 %v816
      %vm1020 = vweird.f32 %v1014
      %vm1021 = vmor %vm1019, %vm1020
      %v1022 = vsel %vm1021, %v1014, %v1018
      %v1023 = vand.u32 2147483647, %v816
      %vm1024 = vcmp.eq.f32.partialorder %v1023, 8.507059e+37
      %v1025 = vand.u32 %v816, 2147483648
      %v1026 = vor.u32 1.1754944e-38, %v1025
      %v1027 = vsel %vm1024, %v1026, %v1022
      %v1028 = vmul.f32 1.0, %v1027
      %v1029 = vrcp.pop %v817
      %v1030 = vmul.f32 %v817, %v1029
      %v1031 = vsub.f32 1.0, %v1030
      %v1032 = vmul.f32 %v1029, %v1031
      %v1033 = vadd.f32 %v1029, %v1032
      %vm1034 = vweird.f32 %v817
      %vm1035 = vweird.f32 %v1029
      %vm1036 = vmor %vm1034, %vm1035
      %v1037 = vsel %vm1036, %v1029, %v1033
      %v1038 = vand.u32 2147483647, %v817
      %vm1039 = vcmp.eq.f32.partialorder %v1038, 8.507059e+37
      %v1040 = vand.u32 %v817, 2147483648
      %v1041 = vor.u32 1.1754944e-38, %v1040
      %v1042 = vsel %vm1039, %v1041, %v1037
      %v1043 = vmul.f32 1.0, %v1042
      %v1044 = vrcp.pop %v818
      %v1045 = vmul.f32 %v818, %v1044
      %v1046 = vsub.f32 1.0, %v1045
      %v1047 = vmul.f32 %v1044, %v1046
      %v1048 = vadd.f32 %v1044, %v1047
      %vm1049 = vweird.f32 %v818
      %vm1050 = vweird.f32 %v1044
      %vm1051 = vmor %vm1049, %vm1050
      %v1052 = vsel %vm1051, %v1044, %v1048
      %v1053 = vand.u32 2147483647, %v818
      %vm1054 = vcmp.eq.f32.partialorder %v1053, 8.507059e+37
      %v1055 = vand.u32 %v818, 2147483648
      %v1056 = vor.u32 1.1754944e-38, %v1055
      %v1057 = vsel %vm1054, %v1056, %v1052
      %v1058 = vmul.f32 1.0, %v1057
      %v1059 = vmul.f32 %v739, %v833
      %v1060 = vmul.f32 %v740, %v848
      %v1061 = vmul.f32 %v741, %v863
      %v1062 = vmul.f32 %v742, %v878
      %v1063 = vmul.f32 %v743, %v893
      %v1064 = vmul.f32 %v744, %v908
      %v1065 = vmul.f32 %v745, %v923
      %v1066 = vmul.f32 %v746, %v938
      %v1067 = vmul.f32 %v747, %v953
      %v1068 = vmul.f32 %v748, %v968
      %v1069 = vmul.f32 %v749, %v983
      %v1070 = vmul.f32 %v750, %v998
      %v1071 = vmul.f32 %v751, %v1013
      %v1072 = vmul.f32 %v752, %v1028
      %v1073 = vmul.f32 %v753, %v1043
      %v1074 = vmul.f32 %v754, %v1058
      %vm1095 = vcmask 1040384
      %v1096 = vrot.slane %v653, 7
      %v1097 = vrot.slane %v654, 7
      %v1098 = vsel %vm1095, %v1096, %v1097
      %v1099 = vrot.slane %v1059, 7
      %v1100 = vrot.slane %v1060, 7
      %v1101 = vsel %vm1095, %v1099, %v1100
      %v1102 = vrot.slane %v1061, 7
      %v1103 = vrot.slane %v1062, 7
      %v1104 = vsel %vm1095, %v1102, %v1103
      %v1105 = vrot.slane %v1063, 7
      %v1106 = vrot.slane %v1064, 7
      %v1107 = vsel %vm1095, %v1105, %v1106
      %v1108 = vrot.slane %v1065, 7
      %v1109 = vrot.slane %v1066, 7
      %v1110 = vsel %vm1095, %v1108, %v1109
      %v1111 = vrot.slane %v1067, 7
      %v1112 = vrot.slane %v1068, 7
      %v1113 = vsel %vm1095, %v1111, %v1112
      %v1114 = vrot.slane %v1069, 7
      %v1115 = vrot.slane %v1070, 7
      %v1116 = vsel %vm1095, %v1114, %v1115
      %v1117 = vrot.slane %v1071, 7
      %v1118 = vrot.slane %v1072, 7
      %v1119 = vsel %vm1095, %v1117, %v1118
      %v1120 = vrot.slane %v1073, 7
      %v1121 = vrot.slane %v1074, 7
      %v1122 = vsel %vm1095, %v1120, %v1121
      %v1123 = vrot.slane %v705, 7
      %v1124 = vrot.slane %v706, 7
      %v1125 = vsel %vm1095, %v1123, %v1124
      %v1146 = vsel %vm1095, 0.0, %v1096
      %v1147 = vsel %vm1095, 0.0, %v1099
      %v1148 = vsel %vm1095, 0.0, %v1102
      %v1149 = vsel %vm1095, 0.0, %v1105
      %v1150 = vsel %vm1095, 0.0, %v1108
      %v1151 = vsel %vm1095, 0.0, %v1111
      %v1152 = vsel %vm1095, 0.0, %v1114
      %v1153 = vsel %vm1095, 0.0, %v1117
      %v1154 = vsel %vm1095, 0.0, %v1120
      %v1155 = vsel %vm1095, 0.0, %v1123
      %vm1156 = vcmask 1046528
      %v1157 = vrot.slane %v653, 1
      %v1158 = vrot.slane %v654, 1
      %v1159 = vsel %vm1156, %v1157, %v1158
      %v1160 = vrot.slane %v1059, 1
      %v1161 = vrot.slane %v1060, 1
      %v1162 = vsel %vm1156, %v1160, %v1161
      %v1163 = vrot.slane %v1061, 1
      %v1164 = vrot.slane %v1062, 1
      %v1165 = vsel %vm1156, %v1163, %v1164
      %v1166 = vrot.slane %v1063, 1
      %v1167 = vrot.slane %v1064, 1
      %v1168 = vsel %vm1156, %v1166, %v1167
      %v1169 = vrot.slane %v1065, 1
      %v1170 = vrot.slane %v1066, 1
      %v1171 = vsel %vm1156, %v1169, %v1170
      %v1172 = vrot.slane %v1067, 1
      %v1173 = vrot.slane %v1068, 1
      %v1174 = vsel %vm1156, %v1172, %v1173
      %v1175 = vrot.slane %v1069, 1
      %v1176 = vrot.slane %v1070, 1
      %v1177 = vsel %vm1156, %v1175, %v1176
      %v1178 = vrot.slane %v1071, 1
      %v1179 = vrot.slane %v1072, 1
      %v1180 = vsel %vm1156, %v1178, %v1179
      %v1181 = vrot.slane %v1073, 1
      %v1182 = vrot.slane %v1074, 1
      %v1183 = vsel %vm1156, %v1181, %v1182
      %v1184 = vrot.slane %v705, 1
      %v1185 = vrot.slane %v706, 1
      %v1186 = vsel %vm1156, %v1184, %v1185
      %v1197 = vsel %vm1156, %v1158, 0.0
      %v1198 = vsel %vm1156, %v1161, 0.0
      %v1199 = vsel %vm1156, %v1164, 0.0
      %v1200 = vsel %vm1156, %v1167, 0.0
      %v1201 = vsel %vm1156, %v1170, 0.0
      %v1202 = vsel %vm1156, %v1173, 0.0
      %v1203 = vsel %vm1156, %v1176, 0.0
      %v1204 = vsel %vm1156, %v1179, 0.0
      %v1205 = vsel %vm1156, %v1182, 0.0
      %v1206 = vsel %vm1156, %v1185, 0.0
      %1207 = vrot.lane.b32.xlu0 %v653, 8
      %v1208 = vpop.permute.xlu0 %1207
      %1209 = vrot.lane.b32.xlu0 %v654, 8
      %v1210 = vpop.permute.xlu0 %1209
      %1211 = vrot.lane.b32.xlu0 %v1059, 8
      %v1212 = vpop.permute.xlu0 %1211
      %1213 = vrot.lane.b32.xlu0 %v1060, 8
      %v1214 = vpop.permute.xlu0 %1213
      %1215 = vrot.lane.b32.xlu0 %v1061, 8
      %v1216 = vpop.permute.xlu0 %1215
      %1217 = vrot.lane.b32.xlu0 %v1062, 8
      %v1218 = vpop.permute.xlu0 %1217
      %1219 = vrot.lane.b32.xlu0 %v1063, 8
      %v1220 = vpop.permute.xlu0 %1219
      %1221 = vrot.lane.b32.xlu0 %v1064, 8
      %v1222 = vpop.permute.xlu0 %1221
      %1223 = vrot.lane.b32.xlu0 %v1065, 8
      %v1224 = vpop.permute.xlu0 %1223
      %1225 = vrot.lane.b32.xlu0 %v1066, 8
      %v1226 = vpop.permute.xlu0 %1225
      %1227 = vrot.lane.b32.xlu0 %v1067, 8
      %v1228 = vpop.permute.xlu0 %1227
      %1229 = vrot.lane.b32.xlu0 %v1068, 8
      %v1230 = vpop.permute.xlu0 %1229
      %1231 = vrot.lane.b32.xlu0 %v1069, 8
      %v1232 = vpop.permute.xlu0 %1231
      %1233 = vrot.lane.b32.xlu0 %v1070, 8
      %v1234 = vpop.permute.xlu0 %1233
      %1235 = vrot.lane.b32.xlu0 %v1071, 8
      %v1236 = vpop.permute.xlu0 %1235
      %1237 = vrot.lane.b32.xlu0 %v1072, 8
      %v1238 = vpop.permute.xlu0 %1237
      %1239 = vrot.lane.b32.xlu0 %v1073, 8
      %v1240 = vpop.permute.xlu0 %1239
      %1241 = vrot.lane.b32.xlu0 %v1074, 8
      %v1242 = vpop.permute.xlu0 %1241
      %1243 = vrot.lane.b32.xlu0 %v705, 8
      %v1244 = vpop.permute.xlu0 %1243
      %1245 = vrot.lane.b32.xlu0 %v706, 8
      %v1246 = vpop.permute.xlu0 %1245
      %1277 = vrot.lane.b32.xlu0 %v1159, 16
      %v1278 = vpop.permute.xlu0 %1277
      %1279 = vrot.lane.b32.xlu0 %v1197, 16
      %v1280 = vpop.permute.xlu0 %1279
      %1281 = vrot.lane.b32.xlu0 %v1162, 16
      %v1282 = vpop.permute.xlu0 %1281
      %1283 = vrot.lane.b32.xlu0 %v1198, 16
      %v1284 = vpop.permute.xlu0 %1283
      %1285 = vrot.lane.b32.xlu0 %v1165, 16
      %v1286 = vpop.permute.xlu0 %1285
      %1287 = vrot.lane.b32.xlu0 %v1199, 16
      %v1288 = vpop.permute.xlu0 %1287
      %1289 = vrot.lane.b32.xlu0 %v1168, 16
      %v1290 = vpop.permute.xlu0 %1289
      %1291 = vrot.lane.b32.xlu0 %v1200, 16
      %v1292 = vpop.permute.xlu0 %1291
      %1293 = vrot.lane.b32.xlu0 %v1171, 16
      %v1294 = vpop.permute.xlu0 %1293
      %1295 = vrot.lane.b32.xlu0 %v1201, 16
      %v1296 = vpop.permute.xlu0 %1295
      %1297 = vrot.lane.b32.xlu0 %v1174, 16
      %v1298 = vpop.permute.xlu0 %1297
      %1299 = vrot.lane.b32.xlu0 %v1202, 16
      %v1300 = vpop.permute.xlu0 %1299
      %1301 = vrot.lane.b32.xlu0 %v1177, 16
      %v1302 = vpop.permute.xlu0 %1301
      %1303 = vrot.lane.b32.xlu0 %v1203, 16
      %v1304 = vpop.permute.xlu0 %1303
      %1305 = vrot.lane.b32.xlu0 %v1180, 16
      %v1306 = vpop.permute.xlu0 %1305
      %1307 = vrot.lane.b32.xlu0 %v1204, 16
      %v1308 = vpop.permute.xlu0 %1307
      %1309 = vrot.lane.b32.xlu0 %v1183, 16
      %v1310 = vpop.permute.xlu0 %1309
      %1311 = vrot.lane.b32.xlu0 %v1205, 16
      %v1312 = vpop.permute.xlu0 %1311
      %1313 = vrot.lane.b32.xlu0 %v1186, 16
      %v1314 = vpop.permute.xlu0 %1313
      %1315 = vrot.lane.b32.xlu0 %v1206, 16
      %v1316 = vpop.permute.xlu0 %1315
      %vm1337 = vcmask 64512
      %v1338 = vsel %vm1337, %v1146, %v1208
      %v1339 = vsel %vm1337, %v1098, %v1210
      %v1340 = vsel %vm1337, %v1147, %v1212
      %v1341 = vsel %vm1337, %v1101, %v1214
      %v1342 = vsel %vm1337, %v1148, %v1216
      %v1343 = vsel %vm1337, %v1104, %v1218
      %v1344 = vsel %vm1337, %v1149, %v1220
      %v1345 = vsel %vm1337, %v1107, %v1222
      %v1346 = vsel %vm1337, %v1150, %v1224
      %v1347 = vsel %vm1337, %v1110, %v1226
      %v1348 = vsel %vm1337, %v1151, %v1228
      %v1349 = vsel %vm1337, %v1113, %v1230
      %v1350 = vsel %vm1337, %v1152, %v1232
      %v1351 = vsel %vm1337, %v1116, %v1234
      %v1352 = vsel %vm1337, %v1153, %v1236
      %v1353 = vsel %vm1337, %v1119, %v1238
      %v1354 = vsel %vm1337, %v1154, %v1240
      %v1355 = vsel %vm1337, %v1122, %v1242
      %v1356 = vsel %vm1337, %v1155, %v1244
      %v1357 = vsel %vm1337, %v1125, %v1246
      %vm1358 = vcmask 130048
      %v1359 = vsel %vm1358, %v1338, %v1278
      %v1360 = vsel %vm1358, %v1339, %v1280
      %v1361 = vsel %vm1358, %v1340, %v1282
      %v1362 = vsel %vm1358, %v1341, %v1284
      %v1363 = vsel %vm1358, %v1342, %v1286
      %v1364 = vsel %vm1358, %v1343, %v1288
      %v1365 = vsel %vm1358, %v1344, %v1290
      %v1366 = vsel %vm1358, %v1345, %v1292
      %v1367 = vsel %vm1358, %v1346, %v1294
      %v1368 = vsel %vm1358, %v1347, %v1296
      %v1369 = vsel %vm1358, %v1348, %v1298
      %v1370 = vsel %vm1358, %v1349, %v1300
      %v1371 = vsel %vm1358, %v1350, %v1302
      %v1372 = vsel %vm1358, %v1351, %v1304
      %v1373 = vsel %vm1358, %v1352, %v1306
      %v1374 = vsel %vm1358, %v1353, %v1308
      %v1375 = vsel %vm1358, %v1354, %v1310
      %v1376 = vsel %vm1358, %v1355, %v1312
      %v1377 = vsel %vm1358, %v1356, %v1314
      %v1378 = vsel %vm1358, %v1357, %v1316
      %v1379 = vld [vmem:[%s5] sm:$0xff]
      %v1380 = vld [vmem:[%s5 + $0x8] sm:$0xff]
      %v1381 = vld [vmem:[%s5 + $0x10] sm:$0xff]
      %s1382 = scalar_lea.vmem %s5, 24
      %v1383 = vld [vmem:[%s1382] sm:$0xff]
      %v1384 = vld [vmem:[%s1382 + $0x8] sm:$0xff]
      %v1385 = vld [vmem:[%s1382 + $0x10] sm:$0xff]
      %vm1386 = vcmask 195584
      %v1388 = vsel %vm1386, %v1361, 0
      %v1391 = vsel %vm1386, %v1362, 0
      %v1394 = vsel %vm1386, %v1363, 0
      %v1397 = vsel %vm1386, %v1364, 0
      %v1400 = vsel %vm1386, %v1365, 0
      %v1403 = vsel %vm1386, %v1366, 0
      %v1406 = vsel %vm1386, %v1367, 0
      %v1409 = vsel %vm1386, %v1368, 0
      %v1412 = vsel %vm1386, %v1369, 0
      %v1415 = vsel %vm1386, %v1370, 0
      %v1418 = vsel %vm1386, %v1371, 0
      %v1421 = vsel %vm1386, %v1372, 0
      %v1424 = vsel %vm1386, %v1373, 0
      %v1427 = vsel %vm1386, %v1374, 0
      %v1430 = vsel %vm1386, %v1375, 0
      %v1433 = vsel %vm1386, %v1376, 0
      %1435 = vmatpush.msra.mxu0 0.0
      %1436 = vmatpush.msra.mxu0 0.0
      %1437 = vmatpush.msra.mxu0 0.0
      %1438 = vmatpush.msra.mxu0 0.0
      %1439 = vmatpush.msra.mxu0 0.0
      %1440 = vmatpush.msra.mxu0 0.0
      %1441 = vmatpush.msra.mxu0 0.0
      %1442 = vmatpush.msra.mxu0 0.0
      %1443 = vmatpush.msra.mxu0 0.0
      %1444 = vmatpush.msra.mxu0 0.0
      %1445 = vmatpush.msra.mxu0 0.0
      %1446 = vmatpush.msra.mxu0 0.0
      %1447 = vmatpush.msra.mxu0 0.0
      %1448 = vmatpush.msra.mxu0 %v1385
      %1449 = vmatpush.msra.mxu0 %v1384
      %1450 = vmatpush.msra.mxu0 %v1383
      %1451 = vmatmul.f32.gmra.mxu0 %v1388
      %v1452 = vpop.f32.mrf.mxu0
      %v1453 = vadd.f32 0.0, %v1452
      %1454 = vmatmul.f32.gmra.mxu0 %v1391
      %v1455 = vpop.f32.mrf.mxu0
      %v1456 = vadd.f32 0.0, %v1455
      %1457 = vmatmul.f32.gmra.mxu0 %v1394
      %v1458 = vpop.f32.mrf.mxu0
      %v1459 = vadd.f32 0.0, %v1458
      %1460 = vmatmul.f32.gmra.mxu0 %v1397
      %v1461 = vpop.f32.mrf.mxu0
      %v1462 = vadd.f32 0.0, %v1461
      %1463 = vmatmul.f32.gmra.mxu0 %v1400
      %v1464 = vpop.f32.mrf.mxu0
      %v1465 = vadd.f32 0.0, %v1464
      %1466 = vmatmul.f32.gmra.mxu0 %v1403
      %v1467 = vpop.f32.mrf.mxu0
      %v1468 = vadd.f32 0.0, %v1467
      %1469 = vmatmul.f32.gmra.mxu0 %v1406
      %v1470 = vpop.f32.mrf.mxu0
      %v1471 = vadd.f32 0.0, %v1470
      %1472 = vmatmul.f32.gmra.mxu0 %v1409
      %v1473 = vpop.f32.mrf.mxu0
      %v1474 = vadd.f32 0.0, %v1473
      %1475 = vmatmul.f32.gmra.mxu0 %v1412
      %v1476 = vpop.f32.mrf.mxu0
      %v1477 = vadd.f32 0.0, %v1476
      %1478 = vmatmul.f32.gmra.mxu0 %v1415
      %v1479 = vpop.f32.mrf.mxu0
      %v1480 = vadd.f32 0.0, %v1479
      %1481 = vmatmul.f32.gmra.mxu0 %v1418
      %v1482 = vpop.f32.mrf.mxu0
      %v1483 = vadd.f32 0.0, %v1482
      %1484 = vmatmul.f32.gmra.mxu0 %v1421
      %v1485 = vpop.f32.mrf.mxu0
      %v1486 = vadd.f32 0.0, %v1485
      %1487 = vmatmul.f32.gmra.mxu0 %v1424
      %v1488 = vpop.f32.mrf.mxu0
      %v1489 = vadd.f32 0.0, %v1488
      %1490 = vmatmul.f32.gmra.mxu0 %v1427
      %v1491 = vpop.f32.mrf.mxu0
      %v1492 = vadd.f32 0.0, %v1491
      %1493 = vmatmul.f32.gmra.mxu0 %v1430
      %v1494 = vpop.f32.mrf.mxu0
      %v1495 = vadd.f32 0.0, %v1494
      %1496 = vmatmul.f32.gmra.mxu0 %v1433
      %v1497 = vpop.f32.mrf.mxu0
      %v1498 = vadd.f32 0.0, %v1497
      %1499 = vdwg.mxu0
      %v1501 = vsel %vm1386, %v1359, 0
      %v1504 = vsel %vm1386, %v1360, 0
      %1506 = vmatpush.msra.mxu0 0.0
      %1507 = vmatpush.msra.mxu0 0.0
      %1508 = vmatpush.msra.mxu0 0.0
      %1509 = vmatpush.msra.mxu0 0.0
      %1510 = vmatpush.msra.mxu0 0.0
      %1511 = vmatpush.msra.mxu0 0.0
      %1512 = vmatpush.msra.mxu0 0.0
      %1513 = vmatpush.msra.mxu0 0.0
      %1514 = vmatpush.msra.mxu0 0.0
      %1515 = vmatpush.msra.mxu0 0.0
      %1516 = vmatpush.msra.mxu0 0.0
      %1517 = vmatpush.msra.mxu0 0.0
      %1518 = vmatpush.msra.mxu0 0.0
      %1519 = vmatpush.msra.mxu0 %v1381
      %1520 = vmatpush.msra.mxu0 %v1380
      %1521 = vmatpush.msra.mxu0 %v1379
      %1522 = vmatmul.f32.gmra.mxu0 %v1501
      %v1523 = vpop.f32.mrf.mxu0
      %v1524 = vadd.f32 %v1453, %v1523
      %1525 = vmatmul.f32.gmra.mxu0 %v1504
      %v1526 = vpop.f32.mrf.mxu0
      %v1527 = vadd.f32 %v1456, %v1526
      %1528 = vmatmul.f32.gmra.mxu0 %v1388
      %v1529 = vpop.f32.mrf.mxu0
      %v1530 = vadd.f32 %v1459, %v1529
      %1531 = vmatmul.f32.gmra.mxu0 %v1391
      %v1532 = vpop.f32.mrf.mxu0
      %v1533 = vadd.f32 %v1462, %v1532
      %1534 = vmatmul.f32.gmra.mxu0 %v1394
      %v1535 = vpop.f32.mrf.mxu0
      %v1536 = vadd.f32 %v1465, %v1535
      %1537 = vmatmul.f32.gmra.mxu0 %v1397
      %v1538 = vpop.f32.mrf.mxu0
      %v1539 = vadd.f32 %v1468, %v1538
      %1540 = vmatmul.f32.gmra.mxu0 %v1400
      %v1541 = vpop.f32.mrf.mxu0
      %v1542 = vadd.f32 %v1471, %v1541
      %1543 = vmatmul.f32.gmra.mxu0 %v1403
      %v1544 = vpop.f32.mrf.mxu0
      %v1545 = vadd.f32 %v1474, %v1544
      %1546 = vmatmul.f32.gmra.mxu0 %v1406
      %v1547 = vpop.f32.mrf.mxu0
      %v1548 = vadd.f32 %v1477, %v1547
      %1549 = vmatmul.f32.gmra.mxu0 %v1409
      %v1550 = vpop.f32.mrf.mxu0
      %v1551 = vadd.f32 %v1480, %v1550
      %1552 = vmatmul.f32.gmra.mxu0 %v1412
      %v1553 = vpop.f32.mrf.mxu0
      %v1554 = vadd.f32 %v1483, %v1553
      %1555 = vmatmul.f32.gmra.mxu0 %v1415
      %v1556 = vpop.f32.mrf.mxu0
      %v1557 = vadd.f32 %v1486, %v1556
      %1558 = vmatmul.f32.gmra.mxu0 %v1418
      %v1559 = vpop.f32.mrf.mxu0
      %v1560 = vadd.f32 %v1489, %v1559
      %1561 = vmatmul.f32.gmra.mxu0 %v1421
      %v1562 = vpop.f32.mrf.mxu0
      %v1563 = vadd.f32 %v1492, %v1562
      %1564 = vmatmul.f32.gmra.mxu0 %v1424
      %v1565 = vpop.f32.mrf.mxu0
      %v1566 = vadd.f32 %v1495, %v1565
      %1567 = vmatmul.f32.gmra.mxu0 %v1427
      %v1568 = vpop.f32.mrf.mxu0
      %v1569 = vadd.f32 %v1498, %v1568
      %1570 = vdwg.mxu0
      %s1571 = scalar_lea.vmem %s5, 48
      %v1572 = vld [vmem:[%s1571] sm:$0xff]
      %v1573 = vld [vmem:[%s1571 + $0x8] sm:$0xff]
      %v1574 = vld [vmem:[%s1571 + $0x10] sm:$0xff]
      %v1576 = vsel %vm1386, %v1377, 0
      %v1579 = vsel %vm1386, %v1378, 0
      %1581 = vmatpush.msra.mxu0 0.0
      %1582 = vmatpush.msra.mxu0 0.0
      %1583 = vmatpush.msra.mxu0 0.0
      %1584 = vmatpush.msra.mxu0 0.0
      %1585 = vmatpush.msra.mxu0 0.0
      %1586 = vmatpush.msra.mxu0 0.0
      %1587 = vmatpush.msra.mxu0 0.0
      %1588 = vmatpush.msra.mxu0 0.0
      %1589 = vmatpush.msra.mxu0 0.0
      %1590 = vmatpush.msra.mxu0 0.0
      %1591 = vmatpush.msra.mxu0 0.0
      %1592 = vmatpush.msra.mxu0 0.0
      %1593 = vmatpush.msra.mxu0 0.0
      %1594 = vmatpush.msra.mxu0 %v1574
      %1595 = vmatpush.msra.mxu0 %v1573
      %1596 = vmatpush.msra.mxu0 %v1572
      %1597 = vmatmul.f32.gmra.mxu0 %v1394
      %v1598 = vpop.f32.mrf.mxu0
      %v1599 = vadd.f32 0.0, %v1598
      %1600 = vmatmul.f32.gmra.mxu0 %v1397
      %v1601 = vpop.f32.mrf.mxu0
      %v1602 = vadd.f32 0.0, %v1601
      %1603 = vmatmul.f32.gmra.mxu0 %v1400
      %v1604 = vpop.f32.mrf.mxu0
      %v1605 = vadd.f32 0.0, %v1604
      %1606 = vmatmul.f32.gmra.mxu0 %v1403
      %v1607 = vpop.f32.mrf.mxu0
      %v1608 = vadd.f32 0.0, %v1607
      %1609 = vmatmul.f32.gmra.mxu0 %v1406
      %v1610 = vpop.f32.mrf.mxu0
      %v1611 = vadd.f32 0.0, %v1610
      %1612 = vmatmul.f32.gmra.mxu0 %v1409
      %v1613 = vpop.f32.mrf.mxu0
      %v1614 = vadd.f32 0.0, %v1613
      %1615 = vmatmul.f32.gmra.mxu0 %v1412
      %v1616 = vpop.f32.mrf.mxu0
      %v1617 = vadd.f32 0.0, %v1616
      %1618 = vmatmul.f32.gmra.mxu0 %v1415
      %v1619 = vpop.f32.mrf.mxu0
      %v1620 = vadd.f32 0.0, %v1619
      %1621 = vmatmul.f32.gmra.mxu0 %v1418
      %v1622 = vpop.f32.mrf.mxu0
      %v1623 = vadd.f32 0.0, %v1622
      %1624 = vmatmul.f32.gmra.mxu0 %v1421
      %v1625 = vpop.f32.mrf.mxu0
      %v1626 = vadd.f32 0.0, %v1625
      %1627 = vmatmul.f32.gmra.mxu0 %v1424
      %v1628 = vpop.f32.mrf.mxu0
      %v1629 = vadd.f32 0.0, %v1628
      %1630 = vmatmul.f32.gmra.mxu0 %v1427
      %v1631 = vpop.f32.mrf.mxu0
      %v1632 = vadd.f32 0.0, %v1631
      %1633 = vmatmul.f32.gmra.mxu0 %v1430
      %v1634 = vpop.f32.mrf.mxu0
      %v1635 = vadd.f32 0.0, %v1634
      %1636 = vmatmul.f32.gmra.mxu0 %v1433
      %v1637 = vpop.f32.mrf.mxu0
      %v1638 = vadd.f32 0.0, %v1637
      %1639 = vmatmul.f32.gmra.mxu0 %v1576
      %v1640 = vpop.f32.mrf.mxu0
      %v1641 = vadd.f32 0.0, %v1640
      %1642 = vmatmul.f32.gmra.mxu0 %v1579
      %v1643 = vpop.f32.mrf.mxu0
      %v1644 = vadd.f32 0.0, %v1643
      %1645 = vdwg.mxu0
      %v1646 = vadd.f32 %v1524, %v1599
      %v1647 = vadd.f32 %v1527, %v1602
      %v1648 = vadd.f32 %v1530, %v1605
      %v1649 = vadd.f32 %v1533, %v1608
      %v1650 = vadd.f32 %v1536, %v1611
      %v1651 = vadd.f32 %v1539, %v1614
      %v1652 = vadd.f32 %v1542, %v1617
      %v1653 = vadd.f32 %v1545, %v1620
      %v1654 = vadd.f32 %v1548, %v1623
      %v1655 = vadd.f32 %v1551, %v1626
      %v1656 = vadd.f32 %v1554, %v1629
      %v1657 = vadd.f32 %v1557, %v1632
      %v1658 = vadd.f32 %v1560, %v1635
      %v1659 = vadd.f32 %v1563, %v1638
      %v1660 = vadd.f32 %v1566, %v1641
      %v1661 = vadd.f32 %v1569, %v1644
      %v1662 = vld [vmem:[%s6] sm:$0x1]
      %v1664 = vperm.slane %v1662, 0
      %v1666 = vadd.f32 %v1646, %v1664
      %v1667 = vadd.f32 %v1647, %v1664
      %v1668 = vadd.f32 %v1648, %v1664
      %v1669 = vadd.f32 %v1649, %v1664
      %v1670 = vadd.f32 %v1650, %v1664
      %v1671 = vadd.f32 %v1651, %v1664
      %v1672 = vadd.f32 %v1652, %v1664
      %v1673 = vadd.f32 %v1653, %v1664
      %v1674 = vadd.f32 %v1654, %v1664
      %v1675 = vadd.f32 %v1655, %v1664
      %v1676 = vadd.f32 %v1656, %v1664
      %v1677 = vadd.f32 %v1657, %v1664
      %v1678 = vadd.f32 %v1658, %v1664
      %v1679 = vadd.f32 %v1659, %v1664
      %v1680 = vadd.f32 %v1660, %v1664
      %v1681 = vadd.f32 %v1661, %v1664
      %v1682 = vld [vmem:[%s582] sm:$0xff]
      %v1683 = vld [vmem:[%s582 + $0x8] sm:$0xff]
      %v1684 = vld [vmem:[%s582 + $0x10] sm:$0xff]
      %v1685 = vld [vmem:[%s582 + $0x18] sm:$0xff]
      %v1686 = vld [vmem:[%s582 + $0x20] sm:$0xff]
      %v1687 = vld [vmem:[%s582 + $0x28] sm:$0xff]
      %v1688 = vld [vmem:[%s582 + $0x30] sm:$0xff]
      %v1689 = vld [vmem:[%s582 + $0x38] sm:$0xff]
      %v1690 = vld [vmem:[%s582 + $0x40] sm:$0xff]
      %v1691 = vld [vmem:[%s582 + $0x48] sm:$0xff]
      %v1692 = vld [vmem:[%s582 + $0x50] sm:$0xff]
      %v1693 = vld [vmem:[%s582 + $0x58] sm:$0xff]
      %v1694 = vld [vmem:[%s582 + $0x60] sm:$0xff]
      %v1695 = vld [vmem:[%s582 + $0x68] sm:$0xff]
      %v1696 = vld [vmem:[%s582 + $0x70] sm:$0xff]
      %v1697 = vld [vmem:[%s582 + $0x78] sm:$0xff]
      %v1698 = vld [vmem:[%s8] sm:$0xf]
      %v1699 = vld [vmem:[%s9] sm:$0x1]
      %v1701 = vperm.slane %v1699, 0
      %vm1703 = vcmask 31744
      %v1705 = vsel %vm1703, %v1682, 0
      %v1708 = vsel %vm1703, %v1683, 0
      %v1711 = vsel %vm1703, %v1684, 0
      %v1714 = vsel %vm1703, %v1685, 0
      %v1717 = vsel %vm1703, %v1686, 0
      %v1720 = vsel %vm1703, %v1687, 0
      %v1723 = vsel %vm1703, %v1688, 0
      %v1726 = vsel %vm1703, %v1689, 0
      %v1729 = vsel %vm1703, %v1690, 0
      %v1732 = vsel %vm1703, %v1691, 0
      %v1735 = vsel %vm1703, %v1692, 0
      %v1738 = vsel %vm1703, %v1693, 0
      %v1741 = vsel %vm1703, %v1694, 0
      %v1744 = vsel %vm1703, %v1695, 0
      %v1747 = vsel %vm1703, %v1696, 0
      %v1750 = vsel %vm1703, %v1697, 0
      %vm1752 = vcmask 1043456
      %v1754 = vsel %vm1752, %v1698, 0
      %1756 = vmatpush.msra.mxu0 0.0
      %1757 = vmatpush.msra.mxu0 0.0
      %1758 = vmatpush.msra.mxu0 0.0
      %1759 = vmatpush.msra.mxu0 0.0
      %1760 = vmatpush.msra.mxu0 0.0
      %1761 = vmatpush.msra.mxu0 0.0
      %1762 = vmatpush.msra.mxu0 0.0
      %1763 = vmatpush.msra.mxu0 0.0
      %1764 = vmatpush.msra.mxu0 0.0
      %1765 = vmatpush.msra.mxu0 0.0
      %1766 = vmatpush.msra.mxu0 0.0
      %1767 = vmatpush.msra.mxu0 0.0
      %1768 = vmatpush.msra.mxu0 0.0
      %1769 = vmatpush.msra.mxu0 0.0
      %1770 = vmatpush.msra.mxu0 0.0
      %1771 = vmatpush.msra.mxu0 %v1754
      %1772 = vmatmul.f32.gmra.mxu0 %v1705
      %v1773 = vpop.f32.mrf.mxu0
      %v1774 = vadd.f32 %v1701, %v1773
      %1775 = vmatmul.f32.gmra.mxu0 %v1708
      %v1776 = vpop.f32.mrf.mxu0
      %v1777 = vadd.f32 %v1701, %v1776
      %1778 = vmatmul.f32.gmra.mxu0 %v1711
      %v1779 = vpop.f32.mrf.mxu0
      %v1780 = vadd.f32 %v1701, %v1779
      %1781 = vmatmul.f32.gmra.mxu0 %v1714
      %v1782 = vpop.f32.mrf.mxu0
      %v1783 = vadd.f32 %v1701, %v1782
      %1784 = vmatmul.f32.gmra.mxu0 %v1717
      %v1785 = vpop.f32.mrf.mxu0
      %v1786 = vadd.f32 %v1701, %v1785
      %1787 = vmatmul.f32.gmra.mxu0 %v1720
      %v1788 = vpop.f32.mrf.mxu0
      %v1789 = vadd.f32 %v1701, %v1788
      %1790 = vmatmul.f32.gmra.mxu0 %v1723
      %v1791 = vpop.f32.mrf.mxu0
      %v1792 = vadd.f32 %v1701, %v1791
      %1793 = vmatmul.f32.gmra.mxu0 %v1726
      %v1794 = vpop.f32.mrf.mxu0
      %v1795 = vadd.f32 %v1701, %v1794
      %1796 = vmatmul.f32.gmra.mxu0 %v1729
      %v1797 = vpop.f32.mrf.mxu0
      %v1798 = vadd.f32 %v1701, %v1797
      %1799 = vmatmul.f32.gmra.mxu0 %v1732
      %v1800 = vpop.f32.mrf.mxu0
      %v1801 = vadd.f32 %v1701, %v1800
      %1802 = vmatmul.f32.gmra.mxu0 %v1735
      %v1803 = vpop.f32.mrf.mxu0
      %v1804 = vadd.f32 %v1701, %v1803
      %1805 = vmatmul.f32.gmra.mxu0 %v1738
      %v1806 = vpop.f32.mrf.mxu0
      %v1807 = vadd.f32 %v1701, %v1806
      %1808 = vmatmul.f32.gmra.mxu0 %v1741
      %v1809 = vpop.f32.mrf.mxu0
      %v1810 = vadd.f32 %v1701, %v1809
      %1811 = vmatmul.f32.gmra.mxu0 %v1744
      %v1812 = vpop.f32.mrf.mxu0
      %v1813 = vadd.f32 %v1701, %v1812
      %1814 = vmatmul.f32.gmra.mxu0 %v1747
      %v1815 = vpop.f32.mrf.mxu0
      %v1816 = vadd.f32 %v1701, %v1815
      %1817 = vmatmul.f32.gmra.mxu0 %v1750
      %v1818 = vpop.f32.mrf.mxu0
      %v1819 = vadd.f32 %v1701, %v1818
      %1820 = vdwg.mxu0
      %v1821 = vadd.f32 %v1666, %v1774
      %v1822 = vadd.f32 %v1667, %v1777
      %v1823 = vadd.f32 %v1668, %v1780
      %v1824 = vadd.f32 %v1669, %v1783
      %v1825 = vadd.f32 %v1670, %v1786
      %v1826 = vadd.f32 %v1671, %v1789
      %v1827 = vadd.f32 %v1672, %v1792
      %v1828 = vadd.f32 %v1673, %v1795
      %v1829 = vadd.f32 %v1674, %v1798
      %v1830 = vadd.f32 %v1675, %v1801
      %v1831 = vadd.f32 %v1676, %v1804
      %v1832 = vadd.f32 %v1677, %v1807
      %v1833 = vadd.f32 %v1678, %v1810
      %v1834 = vadd.f32 %v1679, %v1813
      %v1835 = vadd.f32 %v1680, %v1816
      %v1836 = vadd.f32 %v1681, %v1819
      %1837 = vst.msk [vmem:[%s593] sm:$0xff] %vm1337, %v1821
      %1838 = vst.msk [vmem:[%s593 + $0x8] sm:$0xff] %vm1337, %v1822
      %1839 = vst.msk [vmem:[%s593 + $0x10] sm:$0xff] %vm1337, %v1823
      %1840 = vst.msk [vmem:[%s593 + $0x18] sm:$0xff] %vm1337, %v1824
      %1841 = vst.msk [vmem:[%s593 + $0x20] sm:$0xff] %vm1337, %v1825
      %1842 = vst.msk [vmem:[%s593 + $0x28] sm:$0xff] %vm1337, %v1826
      %1843 = vst.msk [vmem:[%s593 + $0x30] sm:$0xff] %vm1337, %v1827
      %1844 = vst.msk [vmem:[%s593 + $0x38] sm:$0xff] %vm1337, %v1828
      %1845 = vst.msk [vmem:[%s593 + $0x40] sm:$0xff] %vm1337, %v1829
      %1846 = vst.msk [vmem:[%s593 + $0x48] sm:$0xff] %vm1337, %v1830
      %1847 = vst.msk [vmem:[%s593 + $0x50] sm:$0xff] %vm1337, %v1831
      %1848 = vst.msk [vmem:[%s593 + $0x58] sm:$0xff] %vm1337, %v1832
      %1849 = vst.msk [vmem:[%s593 + $0x60] sm:$0xff] %vm1337, %v1833
      %1850 = vst.msk [vmem:[%s593 + $0x68] sm:$0xff] %vm1337, %v1834
      %1851 = vst.msk [vmem:[%s593 + $0x70] sm:$0xff] %vm1337, %v1835
      %1852 = vst.msk [vmem:[%s593 + $0x78] sm:$0xff] %vm1337, %v1836
      %s1853 = smul.u32 8, %s26
      %p1854 = scmp.lt.s32.totalorder %s25, 1
      %s1855 = scalar_select %p1854, %s25, 1
      %p1856 = scmp.lt.s32.totalorder %s1853, 15
      %s1857 = scalar_select %p1856, %s1853, 15
      %s1858 = smul.addr %s1857, 2
      %s1859 = smul.addr %s1855, 32
      %s1860 = sadd.s32 %s1858, %s1859
      %s1861 = smul.addr %s1860, 8
      %s1862 = scalar_lea.vmem %s10, %s1861
      // Predicated region
      $region61: #{resnet_block_2d.5} parent=59 // pred_check
        %p1863 = pneg %p317
      $region62: #{resnet_block_2d.5} parent=59 // pred_check_branch
        %1865 = sbr.rel (%p1863) target = $region64
      $region63: #{resnet_block_2d.5} parent=59 // pred_region
        %s1866 = smul.u32 8, %s26
      $region64: #{resnet_block_2d.5} parent=59 // pred_fallthru
        _
    $region60: #{resnet_block_2d.5} parent=5 // pred_fallthru
      _
    %p1867 = scmp.le.s32.totalorder 2, %s16
    // Predicated region
    $region65: #{resnet_block_2d.5} parent=5 // pred_check
      %p1868 = pneg %p1867
    $region66: #{resnet_block_2d.5} parent=5 // pred_check_branch
      %1870 = sbr.rel (%p1868) target = $region68
    $region67: #{resnet_block_2d.5} parent=5 // pred_region
      %s1871 = ssub.s32 %s16, 2
      // Predicated region
      $region69: #{resnet_block_2d.5} parent=67 // pred_check
        %p1872 = pneg %p323
      $region70: #{resnet_block_2d.5} parent=67 // pred_check_branch
        %1874 = sbr.rel (%p1872) target = $region72
      $region71: #{resnet_block_2d.5} parent=67 // pred_region
        %s1875 = smul.u32 8, %s28
        %p1876 = scmp.lt.s32.totalorder %s27, 1
        %s1877 = scalar_select %p1876, %s27, 1
        %p1878 = scmp.lt.s32.totalorder %s1875, 15
        %s1879 = scalar_select %p1878, %s1875, 15
        %s1880 = smul.addr %s1879, 2
        %s1881 = smul.addr %s1877, 32
        %s1882 = sadd.s32 %s1880, %s1881
        %s1883 = smul.addr %s1882, 8
        %s1884 = scalar_lea.vmem %s10, %s1883
      $region72: #{resnet_block_2d.5} parent=67 // pred_fallthru
        _
    $region68: #{resnet_block_2d.5} parent=5 // pred_fallthru
      _
  $region6: #{resnet_block_2d.5} parent=0 // loop_footer
    %s20 = sadd.s32 1, %s16
  $region7: #{resnet_block_2d.5} parent=0 // loop_footer_branch
    %15 = sbr.rel target = $region3
  $region8: #{resnet_block_2d.5} parent=0 // loop_exit
    _

// kernel: resnet_block_2d.4
$region0: #{resnet_block_2d.4}
  #allocation0 [shape = 'u32[]', space=smem, size = 0x4, offset = 0x4, fixed_abs, tag = 'smem constant byte address 0x4 - core index']
  #allocation1 [shape = 'u32[72,128]{1,0:T(1,128)}', space=vmem, size = 0x9000, scoped, tag = 'internal scratch']
  %s0 = inlined_call_operand.vmem [shape: f32[2,16,16,4], index: 0, kind: input, shape index: {}, may-alias: {0,1,2}]
  %s1 = inlined_call_operand.vmem [shape: f32[2,16,16,4], index: 1, kind: input, shape index: {}, may-alias: {0,1,2}]
  %s2 = inlined_call_operand.vmem [shape: f32[2,16,16,4], index: 2, kind: input, shape index: {}, may-alias: {0,1,2}]
  %s3 = inlined_call_operand.vmem [shape: f32[2,1,4], index: 3, kind: input, shape index: {}]
  %s4 = inlined_call_operand.vmem [shape: f32[2,1,4], index: 4, kind: input, shape index: {}]
  %s5 = inlined_call_operand.vmem [shape: f32[3,12,8], index: 5, kind: input, shape index: {}]
  %s6 = inlined_call_operand.vmem [shape: f32[1,8], index: 6, kind: input, shape index: {}]
  %s7 = inlined_call_operand.vmem [shape: f32[2,16,16,8], index: 7, kind: output, shape index: {0}]
  %s8 = inlined_call_operand.vmem [shape: f32[2,2,8], index: 8, kind: output, shape index: {1}]
  %9 = xla_tuple %s7, %s8
  %s10 = sld [smem:[#allocation0]]
  $region73: #{resnet_block_2d.4} parent=0
    _
  %s12 = ssub.s32 1, %s10
  %s13 = scalar_select 0, %s12, %s10
  loop: start=0, step=1, limit=6
  $region2: #{resnet_block_2d.4} parent=0 // loop_pre_header
    _
  $region3: #{resnet_block_2d.4} parent=0 // loop_header
    %s15 = sphi 0, %s19
    %p16 = scmp.ge.s32.totalorder %s15, 6
    %s22 = sphi 0, %s34
    %s23 = sphi 0, %s30
    %s24 = sphi 0, %s22
    %s25 = sphi 0, %s23
    %s26 = sphi 0, %s24
    %s27 = sphi 0, %s25
    %s47 = sphi 0, %s49
    %s50 = sphi 0, %s47
    %s51 = sphi 0, %s50
    %s67 = sphi 0, %s51
    %s75 = sphi 0, %s77
    %s78 = sphi 0, %s75
    %s79 = sphi 0, %s78
    %s95 = sphi 0, %s79
    %s111 = sphi 0, %s113
    %s114 = sphi 0, %s111
    %s115 = sphi 0, %s114
    %s131 = sphi 0, %s115
    %s137 = sphi 0, %s139
    %s140 = sphi 0, %s137
    %s141 = sphi 0, %s140
    %s157 = sphi 0, %s141
    %s163 = sphi 0, %s165
    %s166 = sphi 0, %s163
    %s167 = sphi 0, %s166
    %s183 = sphi 0, %s167
    %s187 = sphi 0, %s187
    %s189 = sphi 0, %s187
    %s190 = sphi 0, %s189
    %s204 = sphi 0, %s190
    %s208 = sphi 0, %s208
    %s210 = sphi 0, %s208
    %s211 = sphi 0, %s210
    %s225 = sphi 0, %s211
    %s233 = sphi 0, %s235
    %s236 = sphi 0, %s233
    %s237 = sphi 0, %s236
    %s253 = sphi 0, %s237
    %s259 = sphi 0, %s261
    %s262 = sphi 0, %s259
    %s263 = sphi 0, %s262
    %s279 = sphi 0, %s263
  $region4: #{resnet_block_2d.4} parent=0 // loop_header_branch
    %18 = sbr.rel (%p16) target = $region8
  $region5: #{resnet_block_2d.4} parent=0 // loop_body
    %s20 = ssub.s32 %s15, 1
    %s21 = ssub.s32 %s15, 2
    %s28 = sadd.s32 1, %s23
    %p29 = scmp.ge.s32.totalorder %s28, 2
    %s30 = scalar_select %p29, 0, %s28
    %s31 = sadd.s32 1, %s22
    %s32 = scalar_select %p29, %s31, %s22
    %p33 = scmp.ge.s32.totalorder %s32, 2
    %s34 = scalar_select %p33, 0, %s32
    %s35 = smul.u32 %s23, 8
    %s36 = ssub.s32 %s35, 1
    %p37 = scmp.gt.s32.totalorder %s36, 0
    %s38 = scalar_select %p37, %s36, 0
    %s39 = smul.u32 %s30, 8
    %s40 = ssub.s32 %s39, 1
    %p41 = scmp.gt.s32.totalorder %s40, 0
    %s42 = scalar_select %p41, %s40, 0
    %s43 = ssub.s32 %s22, %s34
    %s44 = ssub.s32 %s38, %s42
    %s45 = sor.u32 %s43, %s44
    %p46 = scmp.eq.s32.totalorder %s45, 0
    %s48 = sadd.s32 %s47, 1
    %s49 = scalar_select %p46, %s47, %s48
    %p52 = pneg %p46
    %p53 = scmp.eq.s32.totalorder %s15, 3
    %p54 = por %p52, %p53
    %p55 = scmp.ne.s32.totalorder %s47, %s50
    %p56 = scmp.eq.s32.totalorder %s15, 0
    %p57 = por %p55, %p56
    %p58 = scmp.ne.s32.totalorder %s47, %s50
    %p59 = scmp.eq.s32.totalorder %s20, 3
    %p60 = por %p58, %p59
    %p61 = scmp.ne.s32.totalorder %s50, %s51
    %p62 = scmp.eq.s32.totalorder %s20, 0
    %p63 = por %p61, %p62
    %p64 = scmp.ne.s32.totalorder %s50, %s51
    %p65 = scmp.eq.s32.totalorder %s21, 3
    %p66 = por %p64, %p65
    %p68 = scmp.ne.s32.totalorder %s51, %s67
    %p69 = scmp.eq.s32.totalorder %s21, 0
    %p70 = por %p68, %p69
    %s71 = ssub.s32 %s22, %s34
    %s72 = ssub.s32 %s23, %s30
    %s73 = sor.u32 %s71, %s72
    %p74 = scmp.eq.s32.totalorder %s73, 0
    %s76 = sadd.s32 %s75, 1
    %s77 = scalar_select %p74, %s75, %s76
    %p80 = pneg %p74
    %p81 = scmp.eq.s32.totalorder %s15, 3
    %p82 = por %p80, %p81
    %p83 = scmp.ne.s32.totalorder %s75, %s78
    %p84 = scmp.eq.s32.totalorder %s15, 0
    %p85 = por %p83, %p84
    %p86 = scmp.ne.s32.totalorder %s75, %s78
    %p87 = scmp.eq.s32.totalorder %s20, 3
    %p88 = por %p86, %p87
    %p89 = scmp.ne.s32.totalorder %s78, %s79
    %p90 = scmp.eq.s32.totalorder %s20, 0
    %p91 = por %p89, %p90
    %p92 = scmp.ne.s32.totalorder %s78, %s79
    %p93 = scmp.eq.s32.totalorder %s21, 3
    %p94 = por %p92, %p93
    %p96 = scmp.ne.s32.totalorder %s79, %s95
    %p97 = scmp.eq.s32.totalorder %s21, 0
    %p98 = por %p96, %p97
    %s99 = sadd.s32 %s23, 1
    %s100 = smul.u32 %s99, 8
    %p101 = scmp.lt.s32.totalorder %s100, 15
    %s102 = scalar_select %p101, %s100, 15
    %s103 = sadd.s32 %s30, 1
    %s104 = smul.u32 %s103, 8
    %p105 = scmp.lt.s32.totalorder %s104, 15
    %s106 = scalar_select %p105, %s104, 15
    %s107 = ssub.s32 %s22, %s34
    %s108 = ssub.s32 %s102, %s106
    %s109 = sor.u32 %s107, %s108
    %p110 = scmp.eq.s32.totalorder %s109, 0
    %s112 = sadd.s32 %s111, 1
    %s113 = scalar_select %p110, %s111, %s112
    %p116 = pneg %p110
    %p117 = scmp.eq.s32.totalorder %s15, 3
    %p118 = por %p116, %p117
    %p119 = scmp.ne.s32.totalorder %s111, %s114
    %p120 = scmp.eq.s32.totalorder %s15, 0
    %p121 = por %p119, %p120
    %p122 = scmp.ne.s32.totalorder %s111, %s114
    %p123 = scmp.eq.s32.totalorder %s20, 3
    %p124 = por %p122, %p123
    %p125 = scmp.ne.s32.totalorder %s114, %s115
    %p126 = scmp.eq.s32.totalorder %s20, 0
    %p127 = por %p125, %p126
    %p128 = scmp.ne.s32.totalorder %s114, %s115
    %p129 = scmp.eq.s32.totalorder %s21, 3
    %p130 = por %p128, %p129
    %p132 = scmp.ne.s32.totalorder %s115, %s131
    %p133 = scmp.eq.s32.totalorder %s21, 0
    %p134 = por %p132, %p133
    %s135 = ssub.s32 %s22, %s34
    %p136 = scmp.eq.s32.totalorder %s135, 0
    %s138 = sadd.s32 %s137, 1
    %s139 = scalar_select %p136, %s137, %s138
    %p142 = pneg %p136
    %p143 = scmp.eq.s32.totalorder %s15, 3
    %p144 = por %p142, %p143
    %p145 = scmp.ne.s32.totalorder %s137, %s140
    %p146 = scmp.eq.s32.totalorder %s15, 0
    %p147 = por %p145, %p146
    %p148 = scmp.ne.s32.totalorder %s137, %s140
    %p149 = scmp.eq.s32.totalorder %s20, 3
    %p150 = por %p148, %p149
    %p151 = scmp.ne.s32.totalorder %s140, %s141
    %p152 = scmp.eq.s32.totalorder %s20, 0
    %p153 = por %p151, %p152
    %p154 = scmp.ne.s32.totalorder %s140, %s141
    %p155 = scmp.eq.s32.totalorder %s21, 3
    %p156 = por %p154, %p155
    %p158 = scmp.ne.s32.totalorder %s141, %s157
    %p159 = scmp.eq.s32.totalorder %s21, 0
    %p160 = por %p158, %p159
    %s161 = ssub.s32 %s22, %s34
    %p162 = scmp.eq.s32.totalorder %s161, 0
    %s164 = sadd.s32 %s163, 1
    %s165 = scalar_select %p162, %s163, %s164
    %p168 = pneg %p162
    %p169 = scmp.eq.s32.totalorder %s15, 3
    %p170 = por %p168, %p169
    %p171 = scmp.ne.s32.totalorder %s163, %s166
    %p172 = scmp.eq.s32.totalorder %s15, 0
    %p173 = por %p171, %p172
    %p174 = scmp.ne.s32.totalorder %s163, %s166
    %p175 = scmp.eq.s32.totalorder %s20, 3
    %p176 = por %p174, %p175
    %p177 = scmp.ne.s32.totalorder %s166, %s167
    %p178 = scmp.eq.s32.totalorder %s20, 0
    %p179 = por %p177, %p178
    %p180 = scmp.ne.s32.totalorder %s166, %s167
    %p181 = scmp.eq.s32.totalorder %s21, 3
    %p182 = por %p180, %p181
    %p184 = scmp.ne.s32.totalorder %s167, %s183
    %p185 = scmp.eq.s32.totalorder %s21, 0
    %p186 = por %p184, %p185
    %s188 = sadd.s32 %s187, 1
    %p191 = scmp.eq.s32.totalorder %s15, 3
    %p192 = scmp.ne.s32.totalorder %s187, %s189
    %p193 = scmp.eq.s32.totalorder %s15, 0
    %p194 = por %p192, %p193
    %p195 = scmp.ne.s32.totalorder %s187, %s189
    %p196 = scmp.eq.s32.totalorder %s20, 3
    %p197 = por %p195, %p196
    %p198 = scmp.ne.s32.totalorder %s189, %s190
    %p199 = scmp.eq.s32.totalorder %s20, 0
    %p200 = por %p198, %p199
    %p201 = scmp.ne.s32.totalorder %s189, %s190
    %p202 = scmp.eq.s32.totalorder %s21, 3
    %p203 = por %p201, %p202
    %p205 = scmp.ne.s32.totalorder %s190, %s204
    %p206 = scmp.eq.s32.totalorder %s21, 0
    %p207 = por %p205, %p206
    %s209 = sadd.s32 %s208, 1
    %p212 = scmp.eq.s32.totalorder %s15, 3
    %p213 = scmp.ne.s32.totalorder %s208, %s210
    %p214 = scmp.eq.s32.totalorder %s15, 0
    %p215 = por %p213, %p214
    %p216 = scmp.ne.s32.totalorder %s208, %s210
    %p217 = scmp.eq.s32.totalorder %s20, 3
    %p218 = por %p216, %p217
    %p219 = scmp.ne.s32.totalorder %s210, %s211
    %p220 = scmp.eq.s32.totalorder %s20, 0
    %p221 = por %p219, %p220
    %p222 = scmp.ne.s32.totalorder %s210, %s211
    %p223 = scmp.eq.s32.totalorder %s21, 3
    %p224 = por %p222, %p223
    %p226 = scmp.ne.s32.totalorder %s211, %s225
    %p227 = scmp.eq.s32.totalorder %s21, 0
    %p228 = por %p226, %p227
    %s229 = ssub.s32 %s22, %s34
    %s230 = ssub.s32 %s23, %s30
    %s231 = sor.u32 %s229, %s230
    %p232 = scmp.eq.s32.totalorder %s231, 0
    %s234 = sadd.s32 %s233, 1
    %s235 = scalar_select %p232, %s233, %s234
    %p238 = pneg %p232
    %p239 = scmp.eq.s32.totalorder %s15, 3
    %p240 = por %p238, %p239
    %p241 = scmp.ne.s32.totalorder %s233, %s236
    %p242 = scmp.eq.s32.totalorder %s15, 0
    %p243 = por %p241, %p242
    %p244 = scmp.ne.s32.totalorder %s233, %s236
    %p245 = scmp.eq.s32.totalorder %s20, 3
    %p246 = por %p244, %p245
    %p247 = scmp.ne.s32.totalorder %s236, %s237
    %p248 = scmp.eq.s32.totalorder %s20, 0
    %p249 = por %p247, %p248
    %p250 = scmp.ne.s32.totalorder %s236, %s237
    %p251 = scmp.eq.s32.totalorder %s21, 3
    %p252 = por %p250, %p251
    %p254 = scmp.ne.s32.totalorder %s237, %s253
    %p255 = scmp.eq.s32.totalorder %s21, 0
    %p256 = por %p254, %p255
    %s257 = ssub.s32 %s22, %s34
    %p258 = scmp.eq.s32.totalorder %s257, 0
    %s260 = sadd.s32 %s259, 1
    %s261 = scalar_select %p258, %s259, %s260
    %p264 = pneg %p258
    %p265 = scmp.eq.s32.totalorder %s15, 3
    %p266 = por %p264, %p265
    %p267 = scmp.ne.s32.totalorder %s259, %s262
    %p268 = scmp.eq.s32.totalorder %s15, 0
    %p269 = por %p267, %p268
    %p270 = scmp.ne.s32.totalorder %s259, %s262
    %p271 = scmp.eq.s32.totalorder %s20, 3
    %p272 = por %p270, %p271
    %p273 = scmp.ne.s32.totalorder %s262, %s263
    %p274 = scmp.eq.s32.totalorder %s20, 0
    %p275 = por %p273, %p274
    %p276 = scmp.ne.s32.totalorder %s262, %s263
    %p277 = scmp.eq.s32.totalorder %s21, 3
    %p278 = por %p276, %p277
    %p280 = scmp.ne.s32.totalorder %s263, %s279
    %p281 = scmp.eq.s32.totalorder %s21, 0
    %p282 = por %p280, %p281
    %p283 = scmp.le.s32.totalorder 1, %s15
    %p284 = scmp.lt.s32.totalorder %s15, 5
    %p285 = pnand %p283, %p284
    %p286 = pneg %p285
    // Predicated region
    $region9: #{resnet_block_2d.4} parent=5 // pred_check
      _
    $region10: #{resnet_block_2d.4} parent=5 // pred_check_branch
      %288 = sbr.rel (%p285) target = $region12
    $region11: #{resnet_block_2d.4} parent=5 // pred_region
      %s289 = ssub.s32 %s15, 1
      // Predicated region
      $region13: #{resnet_block_2d.4} parent=11 // pred_check
        %p290 = pneg %p200
      $region14: #{resnet_block_2d.4} parent=11 // pred_check_branch
        %292 = sbr.rel (%p290) target = $region16
      $region15: #{resnet_block_2d.4} parent=11 // pred_region
        _
      $region16: #{resnet_block_2d.4} parent=11 // pred_fallthru
        _
      // Predicated region
      $region17: #{resnet_block_2d.4} parent=11 // pred_check
        %p293 = pneg %p221
      $region18: #{resnet_block_2d.4} parent=11 // pred_check_branch
        %295 = sbr.rel (%p293) target = $region20
      $region19: #{resnet_block_2d.4} parent=11 // pred_region
        _
      $region20: #{resnet_block_2d.4} parent=11 // pred_fallthru
        _
    $region12: #{resnet_block_2d.4} parent=5 // pred_fallthru
      _
    %p296 = scmp.lt.s32.totalorder %s15, 4
    // Predicated region
    $region21: #{resnet_block_2d.4} parent=5 // pred_check
      %p297 = pneg %p296
    $region22: #{resnet_block_2d.4} parent=5 // pred_check_branch
      %299 = sbr.rel (%p297) target = $region24
    $region23: #{resnet_block_2d.4} parent=5 // pred_region
      // Predicated region
      $region25: #{resnet_block_2d.4} parent=23 // pred_check
        %p300 = pneg %p57
      $region26: #{resnet_block_2d.4} parent=23 // pred_check_branch
        %302 = sbr.rel (%p300) target = $region28
      $region27: #{resnet_block_2d.4} parent=23 // pred_region
        %s303 = smul.u32 %s23, 8
        %s304 = ssub.s32 %s303, 1
        %p305 = scmp.gt.s32.totalorder %s304, 0
        %s306 = scalar_select %p305, %s304, 0
        %p307 = scmp.lt.s32.totalorder %s22, 1
        %s308 = scalar_select %p307, %s22, 1
        %p309 = scmp.lt.s32.totalorder %s306, 15
        %s310 = scalar_select %p309, %s306, 15
        %s311 = smul.addr %s310, 2
        %s312 = smul.addr %s308, 32
        %s313 = sadd.s32 %s311, %s312
        %s314 = smul.addr %s313, 8
        %s315 = scalar_lea.vmem %s0, %s314
        %s316 = smul.u32 %s23, 8
        %s317 = ssub.s32 %s316, 1
        %p318 = scmp.gt.s32.totalorder %s317, 0
        %s319 = scalar_select %p318, %s317, 0
      $region28: #{resnet_block_2d.4} parent=23 // pred_fallthru
        _
      // Predicated region
      $region29: #{resnet_block_2d.4} parent=23 // pred_check
        %p320 = pneg %p85
      $region30: #{resnet_block_2d.4} parent=23 // pred_check_branch
        %322 = sbr.rel (%p320) target = $region32
      $region31: #{resnet_block_2d.4} parent=23 // pred_region
        %s323 = smul.u32 8, %s23
        %p324 = scmp.lt.s32.totalorder %s22, 1
        %s325 = scalar_select %p324, %s22, 1
        %p326 = scmp.lt.s32.totalorder %s323, 15
        %s327 = scalar_select %p326, %s323, 15
        %s328 = smul.addr %s327, 2
        %s329 = smul.addr %s325, 32
        %s330 = sadd.s32 %s328, %s329
        %s331 = smul.addr %s330, 8
        %s332 = scalar_lea.vmem %s1, %s331
        %s333 = smul.u32 8, %s23
      $region32: #{resnet_block_2d.4} parent=23 // pred_fallthru
        _
      // Predicated region
      $region33: #{resnet_block_2d.4} parent=23 // pred_check
        %p334 = pneg %p121
      $region34: #{resnet_block_2d.4} parent=23 // pred_check_branch
        %336 = sbr.rel (%p334) target = $region36
      $region35: #{resnet_block_2d.4} parent=23 // pred_region
        %s337 = sadd.s32 %s23, 1
        %s338 = smul.u32 %s337, 8
        %p339 = scmp.lt.s32.totalorder %s338, 15
        %s340 = scalar_select %p339, %s338, 15
        %p341 = scmp.lt.s32.totalorder %s22, 1
        %s342 = scalar_select %p341, %s22, 1
        %p343 = scmp.lt.s32.totalorder %s340, 15
        %s344 = scalar_select %p343, %s340, 15
        %s345 = smul.addr %s344, 2
        %s346 = smul.addr %s342, 32
        %s347 = sadd.s32 %s345, %s346
        %s348 = smul.addr %s347, 8
        %s349 = scalar_lea.vmem %s2, %s348
        %s350 = sadd.s32 %s23, 1
        %s351 = smul.u32 %s350, 8
        %p352 = scmp.lt.s32.totalorder %s351, 15
        %s353 = scalar_select %p352, %s351, 15
      $region36: #{resnet_block_2d.4} parent=23 // pred_fallthru
        _
      // Predicated region
      $region37: #{resnet_block_2d.4} parent=23 // pred_check
        %p354 = pneg %p147
      $region38: #{resnet_block_2d.4} parent=23 // pred_check_branch
        %356 = sbr.rel (%p354) target = $region40
      $region39: #{resnet_block_2d.4} parent=23 // pred_region
        %p357 = scmp.lt.s32.totalorder %s22, 1
        %s358 = scalar_select %p357, %s22, 1
        %s359 = scalar_lea.vmem %s3, %s358
      $region40: #{resnet_block_2d.4} parent=23 // pred_fallthru
        _
      // Predicated region
      $region41: #{resnet_block_2d.4} parent=23 // pred_check
        %p360 = pneg %p173
      $region42: #{resnet_block_2d.4} parent=23 // pred_check_branch
        %362 = sbr.rel (%p360) target = $region44
      $region43: #{resnet_block_2d.4} parent=23 // pred_region
        %p363 = scmp.lt.s32.totalorder %s22, 1
        %s364 = scalar_select %p363, %s22, 1
        %s365 = scalar_lea.vmem %s4, %s364
      $region44: #{resnet_block_2d.4} parent=23 // pred_fallthru
        _
    $region24: #{resnet_block_2d.4} parent=5 // pred_fallthru
      _
    %p366 = scmp.le.s32.totalorder 1, %s15
    %p367 = scmp.lt.s32.totalorder %s15, 5
    %p368 = pnand %p366, %p367
    %p369 = pneg %p368
    // Predicated region
    $region45: #{resnet_block_2d.4} parent=5 // pred_check
      _
    $region46: #{resnet_block_2d.4} parent=5 // pred_check_branch
      %371 = sbr.rel (%p368) target = $region48
    $region47: #{resnet_block_2d.4} parent=5 // pred_region
      %s372 = ssub.s32 %s15, 1
      %s373 = smul.u32 %s25, 8
      %s374 = ssub.s32 %s373, 1
      %p375 = scmp.gt.s32.totalorder %s374, 0
      %s376 = scalar_select %p375, %s374, 0
      %p377 = scmp.lt.s32.totalorder %s24, 1
      %s378 = scalar_select %p377, %s24, 1
      %p379 = scmp.lt.s32.totalorder %s376, 15
      %s380 = scalar_select %p379, %s376, 15
      %s381 = smul.addr %s380, 2
      %s382 = smul.addr %s378, 32
      %s383 = sadd.s32 %s381, %s382
      %s384 = smul.addr %s383, 8
      %s385 = scalar_lea.vmem %s0, %s384
      %p386 = pneg %p63
      %p387 = pneg %p60
      %s388 = smul.u32 8, %s25
      %p389 = scmp.lt.s32.totalorder %s24, 1
      %s390 = scalar_select %p389, %s24, 1
      %p391 = scmp.lt.s32.totalorder %s388, 15
      %s392 = scalar_select %p391, %s388, 15
      %s393 = smul.addr %s392, 2
      %s394 = smul.addr %s390, 32
      %s395 = sadd.s32 %s393, %s394
      %s396 = smul.addr %s395, 8
      %s397 = scalar_lea.vmem %s1, %s396
      %p398 = pneg %p91
      %p399 = pneg %p88
      %s400 = sadd.s32 %s25, 1
      %s401 = smul.u32 %s400, 8
      %p402 = scmp.lt.s32.totalorder %s401, 15
      %s403 = scalar_select %p402, %s401, 15
      %p404 = scmp.lt.s32.totalorder %s24, 1
      %s405 = scalar_select %p404, %s24, 1
      %p406 = scmp.lt.s32.totalorder %s403, 15
      %s407 = scalar_select %p406, %s403, 15
      %s408 = smul.addr %s407, 2
      %s409 = smul.addr %s405, 32
      %s410 = sadd.s32 %s408, %s409
      %s411 = smul.addr %s410, 8
      %s412 = scalar_lea.vmem %s2, %s411
      %p413 = pneg %p127
      %p414 = pneg %p124
      %p415 = scmp.lt.s32.totalorder %s24, 1
      %s416 = scalar_select %p415, %s24, 1
      %s417 = scalar_lea.vmem %s3, %s416
      %p418 = pneg %p153
      %p419 = pneg %p150
      %p420 = scmp.lt.s32.totalorder %s24, 1
      %s421 = scalar_select %p420, %s24, 1
      %s422 = scalar_lea.vmem %s4, %s421
      %p423 = pneg %p179
      %p424 = pneg %p176
      %p425 = pneg %p200
      %p426 = pneg %p197
      %p427 = pneg %p221
      %p428 = pneg %p218
      %p429 = pneg %p249
      %p430 = pneg %p246
      %s431 = smul.u32 8, %s25
      %p432 = scmp.lt.s32.totalorder %s24, 1
      %s433 = scalar_select %p432, %s24, 1
      %p434 = scmp.lt.s32.totalorder %s431, 15
      %s435 = scalar_select %p434, %s431, 15
      %s436 = smul.addr %s435, 2
      %s437 = smul.addr %s433, 32
      %s438 = sadd.s32 %s436, %s437
      %s439 = smul.addr %s438, 8
      %s440 = scalar_lea.vmem %s7, %s439
      %p441 = pneg %p275
      %p442 = pneg %p272
      %p443 = scmp.lt.s32.totalorder %s24, 1
      %s444 = scalar_select %p443, %s24, 1
      %s445 = smul.addr %s444, 2
      %s446 = scalar_lea.vmem %s8, %s445
      %s447 = smul.u32 %s25, 8
      %s448 = ssub.s32 %s447, 1
      %p449 = scmp.gt.s32.totalorder %s448, 0
      %s450 = scalar_select %p449, %s448, 0
      %p451 = scmp.lt.s32.totalorder %s24, 1
      %s452 = scalar_select %p451, %s24, 1
      %p453 = scmp.lt.s32.totalorder %s450, 15
      %s454 = scalar_select %p453, %s450, 15
      %s455 = smul.addr %s454, 2
      %s456 = smul.addr %s452, 32
      %s457 = sadd.s32 %s455, %s456
      %s458 = smul.addr %s457, 8
      %s459 = scalar_lea.vmem %s0, %s458
      %s460 = smul.u32 %s25, 8
      %s461 = ssub.s32 %s460, 1
      %p462 = scmp.gt.s32.totalorder %s461, 0
      %s463 = scalar_select %p462, %s461, 0
      %s464 = smul.u32 8, %s25
      %p465 = scmp.lt.s32.totalorder %s24, 1
      %s466 = scalar_select %p465, %s24, 1
      %p467 = scmp.lt.s32.totalorder %s464, 15
      %s468 = scalar_select %p467, %s464, 15
      %s469 = smul.addr %s468, 2
      %s470 = smul.addr %s466, 32
      %s471 = sadd.s32 %s469, %s470
      %s472 = smul.addr %s471, 8
      %s473 = scalar_lea.vmem %s1, %s472
      %s474 = smul.u32 8, %s25
      %s475 = sadd.s32 %s25, 1
      %s476 = smul.u32 %s475, 8
      %p477 = scmp.lt.s32.totalorder %s476, 15
      %s478 = scalar_select %p477, %s476, 15
      %p479 = scmp.lt.s32.totalorder %s24, 1
      %s480 = scalar_select %p479, %s24, 1
      %p481 = scmp.lt.s32.totalorder %s478, 15
      %s482 = scalar_select %p481, %s478, 15
      %s483 = smul.addr %s482, 2
      %s484 = smul.addr %s480, 32
      %s485 = sadd.s32 %s483, %s484
      %s486 = smul.addr %s485, 8
      %s487 = scalar_lea.vmem %s2, %s486
      %s488 = sadd.s32 %s25, 1
      %s489 = smul.u32 %s488, 8
      %p490 = scmp.lt.s32.totalorder %s489, 15
      %s491 = scalar_select %p490, %s489, 15
      %p492 = scmp.lt.s32.totalorder %s24, 1
      %s493 = scalar_select %p492, %s24, 1
      %s494 = scalar_lea.vmem %s3, %s493
      %p495 = scmp.lt.s32.totalorder %s24, 1
      %s496 = scalar_select %p495, %s24, 1
      %s497 = scalar_lea.vmem %s4, %s496
      %s498 = smul.u32 8, %s25
      %p499 = scmp.lt.s32.totalorder %s24, 1
      %s500 = scalar_select %p499, %s24, 1
      %p501 = scmp.lt.s32.totalorder %s498, 15
      %s502 = scalar_select %p501, %s498, 15
      %s503 = smul.addr %s502, 2
      %s504 = smul.addr %s500, 32
      %s505 = sadd.s32 %s503, %s504
      %s506 = smul.addr %s505, 8
      %s507 = scalar_lea.vmem %s7, %s506
      %s508 = smul.u32 8, %s25
      %p509 = scmp.lt.s32.totalorder %s24, 1
      %s510 = scalar_select %p509, %s24, 1
      %s511 = smul.addr %s510, 2
      %s512 = scalar_lea.vmem %s8, %s511
      %p513 = scmp.eq.s32.totalorder %s25, 0
      // Predicated region
      $region49: #{resnet_block_2d.4} parent=47 // pred_check
        %p514 = pneg %p513
      $region50: #{resnet_block_2d.4} parent=47 // pred_check_branch
        %516 = sbr.rel (%p514) target = $region52
      $region51: #{resnet_block_2d.4} parent=47 // pred_region
        %vm517 = vcmask 58368
        %518 = vst.msk [vmem:[%s512] sm:$0x3] %vm517, 0.0
      $region52: #{resnet_block_2d.4} parent=47 // pred_fallthru
        _
      %v519 = vld [vmem:[%s494] sm:$0x1]
      %v520 = vld [vmem:[%s497] sm:$0x1]
      %v521 = vld [vmem:[%s459] sm:$0xff]
      %v522 = vld [vmem:[%s459 + $0x8] sm:$0xff]
      %v524 = vperm.slane %v519, 0
      %v526 = vmul.f32 %v521, %v524
      %v527 = vmul.f32 %v522, %v524
      %v529 = vperm.slane %v520, 0
      %v531 = vadd.f32 %v526, %v529
      %v532 = vadd.f32 %v527, %v529
      %v533 = vxor.u32 %v531, 2147483648
      %v534 = vxor.u32 %v532, 2147483648
      %v535 = vmul.f32 %v533, 1.442695
      %v536 = vpow.pop %v535
      %v537 = vmul.f32 %v534, 1.442695
      %v538 = vpow.pop %v537
      %v539 = vadd.f32 %v536, 1.0
      %v540 = vadd.f32 %v538, 1.0
      %v541 = vrcp.pop %v539
      %v542 = vmul.f32 %v539, %v541
      %v543 = vsub.f32 1.0, %v542
      %v544 = vmul.f32 %v541, %v543
      %v545 = vadd.f32 %v541, %v544
      %vm546 = vweird.f32 %v539
      %vm547 = vweird.f32 %v541
      %vm548 = vmor %vm546, %vm547
      %v549 = vsel %vm548, %v541, %v545
      %v550 = vand.u32 2147483647, %v539
      %vm551 = vcmp.eq.f32.partialorder %v550, 8.507059e+37
      %v552 = vand.u32 %v539, 2147483648
      %v553 = vor.u32 1.1754944e-38, %v552
      %v554 = vsel %vm551, %v553, %v549
      %v555 = vmul.f32 1.0, %v554
      %v556 = vrcp.pop %v540
      %v557 = vmul.f32 %v540, %v556
      %v558 = vsub.f32 1.0, %v557
      %v559 = vmul.f32 %v556, %v558
      %v560 = vadd.f32 %v556, %v559
      %vm561 = vweird.f32 %v540
      %vm562 = vweird.f32 %v556
      %vm563 = vmor %vm561, %vm562
      %v564 = vsel %vm563, %v556, %v560
      %v565 = vand.u32 2147483647, %v540
      %vm566 = vcmp.eq.f32.partialorder %v565, 8.507059e+37
      %v567 = vand.u32 %v540, 2147483648
      %v568 = vor.u32 1.1754944e-38, %v567
      %v569 = vsel %vm566, %v568, %v564
      %v570 = vmul.f32 1.0, %v569
      %v571 = vmul.f32 %v531, %v555
      %v572 = vmul.f32 %v532, %v570
      %p573 = scmp.gt.s32.totalorder %s25, 0
      %s574 = scalar_select %p573, 1, 0
      %s575 = scvt.s32.f32 %s574
      %v576 = vstv %s575
      %v577 = vmul.f32 %v571, %v576
      %v578 = vmul.f32 %v572, %v576
      %v579 = vld [vmem:[%s487] sm:$0xff]
      %v580 = vld [vmem:[%s487 + $0x8] sm:$0xff]
      %v581 = vmul.f32 %v579, %v524
      %v582 = vmul.f32 %v580, %v524
      %v583 = vadd.f32 %v581, %v529
      %v584 = vadd.f32 %v582, %v529
      %v585 = vxor.u32 %v583, 2147483648
      %v586 = vxor.u32 %v584, 2147483648
      %v587 = vmul.f32 %v585, 1.442695
      %v588 = vpow.pop %v587
      %v589 = vmul.f32 %v586, 1.442695
      %v590 = vpow.pop %v589
      %v591 = vadd.f32 %v588, 1.0
      %v592 = vadd.f32 %v590, 1.0
      %v593 = vrcp.pop %v591
      %v594 = vmul.f32 %v591, %v593
      %v595 = vsub.f32 1.0, %v594
      %v596 = vmul.f32 %v593, %v595
      %v597 = vadd.f32 %v593, %v596
      %vm598 = vweird.f32 %v591
      %vm599 = vweird.f32 %v593
      %vm600 = vmor %vm598, %vm599
      %v601 = vsel %vm600, %v593, %v597
      %v602 = vand.u32 2147483647, %v591
      %vm603 = vcmp.eq.f32.partialorder %v602, 8.507059e+37
      %v604 = vand.u32 %v591, 2147483648
      %v605 = vor.u32 1.1754944e-38, %v604
      %v606 = vsel %vm603, %v605, %v601
      %v607 = vmul.f32 1.0, %v606
      %v608 = vrcp.pop %v592
      %v609 = vmul.f32 %v592, %v608
      %v610 = vsub.f32 1.0, %v609
      %v611 = vmul.f32 %v608, %v610
      %v612 = vadd.f32 %v608, %v611
      %vm613 = vweird.f32 %v592
      %vm614 = vweird.f32 %v608
      %vm615 = vmor %vm613, %vm614
      %v616 = vsel %vm615, %v608, %v612
      %v617 = vand.u32 2147483647, %v592
      %vm618 = vcmp.eq.f32.partialorder %v617, 8.507059e+37
      %v619 = vand.u32 %v592, 2147483648
      %v620 = vor.u32 1.1754944e-38, %v619
      %v621 = vsel %vm618, %v620, %v616
      %v622 = vmul.f32 1.0, %v621
      %v623 = vmul.f32 %v583, %v607
      %v624 = vmul.f32 %v584, %v622
      %p625 = scmp.lt.s32.totalorder %s25, 1
      %s626 = scalar_select %p625, 1, 0
      %s627 = scvt.s32.f32 %s626
      %v628 = vstv %s627
      %v629 = vmul.f32 %v623, %v628
      %v630 = vmul.f32 %v624, %v628
      %v631 = vld [vmem:[%s473] sm:$0xff]
      %v632 = vld [vmem:[%s473 + $0x8] sm:$0xff]
      %v633 = vld [vmem:[%s473 + $0x10] sm:$0xff]
      %v634 = vld [vmem:[%s473 + $0x18] sm:$0xff]
      %v635 = vld [vmem:[%s473 + $0x20] sm:$0xff]
      %v636 = vld [vmem:[%s473 + $0x28] sm:$0xff]
      %v637 = vld [vmem:[%s473 + $0x30] sm:$0xff]
      %v638 = vld [vmem:[%s473 + $0x38] sm:$0xff]
      %v639 = vld [vmem:[%s473 + $0x40] sm:$0xff]
      %v640 = vld [vmem:[%s473 + $0x48] sm:$0xff]
      %v641 = vld [vmem:[%s473 + $0x50] sm:$0xff]
      %v642 = vld [vmem:[%s473 + $0x58] sm:$0xff]
      %v643 = vld [vmem:[%s473 + $0x60] sm:$0xff]
      %v644 = vld [vmem:[%s473 + $0x68] sm:$0xff]
      %v645 = vld [vmem:[%s473 + $0x70] sm:$0xff]
      %v646 = vld [vmem:[%s473 + $0x78] sm:$0xff]
      %v647 = vmul.f32 %v631, %v524
      %v648 = vmul.f32 %v632, %v524
      %v649 = vmul.f32 %v633, %v524
      %v650 = vmul.f32 %v634, %v524
      %v651 = vmul.f32 %v635, %v524
      %v652 = vmul.f32 %v636, %v524
      %v653 = vmul.f32 %v637, %v524
      %v654 = vmul.f32 %v638, %v524
      %v655 = vmul.f32 %v639, %v524
      %v656 = vmul.f32 %v640, %v524
      %v657 = vmul.f32 %v641, %v524
      %v658 = vmul.f32 %v642, %v524
      %v659 = vmul.f32 %v643, %v524
      %v660 = vmul.f32 %v644, %v524
      %v661 = vmul.f32 %v645, %v524
      %v662 = vmul.f32 %v646, %v524
      %v663 = vadd.f32 %v647, %v529
      %v664 = vadd.f32 %v648, %v529
      %v665 = vadd.f32 %v649, %v529
      %v666 = vadd.f32 %v650, %v529
      %v667 = vadd.f32 %v651, %v529
      %v668 = vadd.f32 %v652, %v529
      %v669 = vadd.f32 %v653, %v529
      %v670 = vadd.f32 %v654, %v529
      %v671 = vadd.f32 %v655, %v529
      %v672 = vadd.f32 %v656, %v529
      %v673 = vadd.f32 %v657, %v529
      %v674 = vadd.f32 %v658, %v529
      %v675 = vadd.f32 %v659, %v529
      %v676 = vadd.f32 %v660, %v529
      %v677 = vadd.f32 %v661, %v529
      %v678 = vadd.f32 %v662, %v529
      %v679 = vxor.u32 %v663, 2147483648
      %v680 = vxor.u32 %v664, 2147483648
      %v681 = vxor.u32 %v665, 2147483648
      %v682 = vxor.u32 %v666, 2147483648
      %v683 = vxor.u32 %v667, 2147483648
      %v684 = vxor.u32 %v668, 2147483648
      %v685 = vxor.u32 %v669, 2147483648
      %v686 = vxor.u32 %v670, 2147483648
      %v687 = vxor.u32 %v671, 2147483648
      %v688 = vxor.u32 %v672, 2147483648
      %v689 = vxor.u32 %v673, 2147483648
      %v690 = vxor.u32 %v674, 2147483648
      %v691 = vxor.u32 %v675, 2147483648
      %v692 = vxor.u32 %v676, 2147483648
      %v693 = vxor.u32 %v677, 2147483648
      %v694 = vxor.u32 %v678, 2147483648
      %v695 = vmul.f32 %v679, 1.442695
      %v696 = vpow.pop %v695
      %v697 = vmul.f32 %v680, 1.442695
      %v698 = vpow.pop %v697
      %v699 = vmul.f32 %v681, 1.442695
      %v700 = vpow.pop %v699
      %v701 = vmul.f32 %v682, 1.442695
      %v702 = vpow.pop %v701
      %v703 = vmul.f32 %v683, 1.442695
      %v704 = vpow.pop %v703
      %v705 = vmul.f32 %v684, 1.442695
      %v706 = vpow.pop %v705
      %v707 = vmul.f32 %v685, 1.442695
      %v708 = vpow.pop %v707
      %v709 = vmul.f32 %v686, 1.442695
      %v710 = vpow.pop %v709
      %v711 = vmul.f32 %v687, 1.442695
      %v712 = vpow.pop %v711
      %v713 = vmul.f32 %v688, 1.442695
      %v714 = vpow.pop %v713
      %v715 = vmul.f32 %v689, 1.442695
      %v716 = vpow.pop %v715
      %v717 = vmul.f32 %v690, 1.442695
      %v718 = vpow.pop %v717
      %v719 = vmul.f32 %v691, 1.442695
      %v720 = vpow.pop %v719
      %v721 = vmul.f32 %v692, 1.442695
      %v722 = vpow.pop %v721
      %v723 = vmul.f32 %v693, 1.442695
      %v724 = vpow.pop %v723
      %v725 = vmul.f32 %v694, 1.442695
      %v726 = vpow.pop %v725
      %v727 = vadd.f32 %v696, 1.0
      %v728 = vadd.f32 %v698, 1.0
      %v729 = vadd.f32 %v700, 1.0
      %v730 = vadd.f32 %v702, 1.0
      %v731 = vadd.f32 %v704, 1.0
      %v732 = vadd.f32 %v706, 1.0
      %v733 = vadd.f32 %v708, 1.0
      %v734 = vadd.f32 %v710, 1.0
      %v735 = vadd.f32 %v712, 1.0
      %v736 = vadd.f32 %v714, 1.0
      %v737 = vadd.f32 %v716, 1.0
      %v738 = vadd.f32 %v718, 1.0
      %v739 = vadd.f32 %v720, 1.0
      %v740 = vadd.f32 %v722, 1.0
      %v741 = vadd.f32 %v724, 1.0
      %v742 = vadd.f32 %v726, 1.0
      %v743 = vrcp.pop %v727
      %v744 = vmul.f32 %v727, %v743
      %v745 = vsub.f32 1.0, %v744
      %v746 = vmul.f32 %v743, %v745
      %v747 = vadd.f32 %v743, %v746
      %vm748 = vweird.f32 %v727
      %vm749 = vweird.f32 %v743
      %vm750 = vmor %vm748, %vm749
      %v751 = vsel %vm750, %v743, %v747
      %v752 = vand.u32 2147483647, %v727
      %vm753 = vcmp.eq.f32.partialorder %v752, 8.507059e+37
      %v754 = vand.u32 %v727, 2147483648
      %v755 = vor.u32 1.1754944e-38, %v754
      %v756 = vsel %vm753, %v755, %v751
      %v757 = vmul.f32 1.0, %v756
      %v758 = vrcp.pop %v728
      %v759 = vmul.f32 %v728, %v758
      %v760 = vsub.f32 1.0, %v759
      %v761 = vmul.f32 %v758, %v760
      %v762 = vadd.f32 %v758, %v761
      %vm763 = vweird.f32 %v728
      %vm764 = vweird.f32 %v758
      %vm765 = vmor %vm763, %vm764
      %v766 = vsel %vm765, %v758, %v762
      %v767 = vand.u32 2147483647, %v728
      %vm768 = vcmp.eq.f32.partialorder %v767, 8.507059e+37
      %v769 = vand.u32 %v728, 2147483648
      %v770 = vor.u32 1.1754944e-38, %v769
      %v771 = vsel %vm768, %v770, %v766
      %v772 = vmul.f32 1.0, %v771
      %v773 = vrcp.pop %v729
      %v774 = vmul.f32 %v729, %v773
      %v775 = vsub.f32 1.0, %v774
      %v776 = vmul.f32 %v773, %v775
      %v777 = vadd.f32 %v773, %v776
      %vm778 = vweird.f32 %v729
      %vm779 = vweird.f32 %v773
      %vm780 = vmor %vm778, %vm779
      %v781 = vsel %vm780, %v773, %v777
      %v782 = vand.u32 2147483647, %v729
      %vm783 = vcmp.eq.f32.partialorder %v782, 8.507059e+37
      %v784 = vand.u32 %v729, 2147483648
      %v785 = vor.u32 1.1754944e-38, %v784
      %v786 = vsel %vm783, %v785, %v781
      %v787 = vmul.f32 1.0, %v786
      %v788 = vrcp.pop %v730
      %v789 = vmul.f32 %v730, %v788
      %v790 = vsub.f32 1.0, %v789
      %v791 = vmul.f32 %v788, %v790
      %v792 = vadd.f32 %v788, %v791
      %vm793 = vweird.f32 %v730
      %vm794 = vweird.f32 %v788
      %vm795 = vmor %vm793, %vm794
      %v796 = vsel %vm795, %v788, %v792
      %v797 = vand.u32 2147483647, %v730
      %vm798 = vcmp.eq.f32.partialorder %v797, 8.507059e+37
      %v799 = vand.u32 %v730, 2147483648
      %v800 = vor.u32 1.1754944e-38, %v799
      %v801 = vsel %vm798, %v800, %v796
      %v802 = vmul.f32 1.0, %v801
      %v803 = vrcp.pop %v731
      %v804 = vmul.f32 %v731, %v803
      %v805 = vsub.f32 1.0, %v804
      %v806 = vmul.f32 %v803, %v805
      %v807 = vadd.f32 %v803, %v806
      %vm808 = vweird.f32 %v731
      %vm809 = vweird.f32 %v803
      %vm810 = vmor %vm808, %vm809
      %v811 = vsel %vm810, %v803, %v807
      %v812 = vand.u32 2147483647, %v731
      %vm813 = vcmp.eq.f32.partialorder %v812, 8.507059e+37
      %v814 = vand.u32 %v731, 2147483648
      %v815 = vor.u32 1.1754944e-38, %v814
      %v816 = vsel %vm813, %v815, %v811
      %v817 = vmul.f32 1.0, %v816
      %v818 = vrcp.pop %v732
      %v819 = vmul.f32 %v732, %v818
      %v820 = vsub.f32 1.0, %v819
      %v821 = vmul.f32 %v818, %v820
      %v822 = vadd.f32 %v818, %v821
      %vm823 = vweird.f32 %v732
      %vm824 = vweird.f32 %v818
      %vm825 = vmor %vm823, %vm824
      %v826 = vsel %vm825, %v818, %v822
      %v827 = vand.u32 2147483647, %v732
      %vm828 = vcmp.eq.f32.partialorder %v827, 8.507059e+37
      %v829 = vand.u32 %v732, 2147483648
      %v830 = vor.u32 1.1754944e-38, %v829
      %v831 = vsel %vm828, %v830, %v826
      %v832 = vmul.f32 1.0, %v831
      %v833 = vrcp.pop %v733
      %v834 = vmul.f32 %v733, %v833
      %v835 = vsub.f32 1.0, %v834
      %v836 = vmul.f32 %v833, %v835
      %v837 = vadd.f32 %v833, %v836
      %vm838 = vweird.f32 %v733
      %vm839 = vweird.f32 %v833
      %vm840 = vmor %vm838, %vm839
      %v841 = vsel %vm840, %v833, %v837
      %v842 = vand.u32 2147483647, %v733
      %vm843 = vcmp.eq.f32.partialorder %v842, 8.507059e+37
      %v844 = vand.u32 %v733, 2147483648
      %v845 = vor.u32 1.1754944e-38, %v844
      %v846 = vsel %vm843, %v845, %v841
      %v847 = vmul.f32 1.0, %v846
      %v848 = vrcp.pop %v734
      %v849 = vmul.f32 %v734, %v848
      %v850 = vsub.f32 1.0, %v849
      %v851 = vmul.f32 %v848, %v850
      %v852 = vadd.f32 %v848, %v851
      %vm853 = vweird.f32 %v734
      %vm854 = vweird.f32 %v848
      %vm855 = vmor %vm853, %vm854
      %v856 = vsel %vm855, %v848, %v852
      %v857 = vand.u32 2147483647, %v734
      %vm858 = vcmp.eq.f32.partialorder %v857, 8.507059e+37
      %v859 = vand.u32 %v734, 2147483648
      %v860 = vor.u32 1.1754944e-38, %v859
      %v861 = vsel %vm858, %v860, %v856
      %v862 = vmul.f32 1.0, %v861
      %v863 = vrcp.pop %v735
      %v864 = vmul.f32 %v735, %v863
      %v865 = vsub.f32 1.0, %v864
      %v866 = vmul.f32 %v863, %v865
      %v867 = vadd.f32 %v863, %v866
      %vm868 = vweird.f32 %v735
      %vm869 = vweird.f32 %v863
      %vm870 = vmor %vm868, %vm869
      %v871 = vsel %vm870, %v863, %v867
      %v872 = vand.u32 2147483647, %v735
      %vm873 = vcmp.eq.f32.partialorder %v872, 8.507059e+37
      %v874 = vand.u32 %v735, 2147483648
      %v875 = vor.u32 1.1754944e-38, %v874
      %v876 = vsel %vm873, %v875, %v871
      %v877 = vmul.f32 1.0, %v876
      %v878 = vrcp.pop %v736
      %v879 = vmul.f32 %v736, %v878
      %v880 = vsub.f32 1.0, %v879
      %v881 = vmul.f32 %v878, %v880
      %v882 = vadd.f32 %v878, %v881
      %vm883 = vweird.f32 %v736
      %vm884 = vweird.f32 %v878
      %vm885 = vmor %vm883, %vm884
      %v886 = vsel %vm885, %v878, %v882
      %v887 = vand.u32 2147483647, %v736
      %vm888 = vcmp.eq.f32.partialorder %v887, 8.507059e+37
      %v889 = vand.u32 %v736, 2147483648
      %v890 = vor.u32 1.1754944e-38, %v889
      %v891 = vsel %vm888, %v890, %v886
      %v892 = vmul.f32 1.0, %v891
      %v893 = vrcp.pop %v737
      %v894 = vmul.f32 %v737, %v893
      %v895 = vsub.f32 1.0, %v894
      %v896 = vmul.f32 %v893, %v895
      %v897 = vadd.f32 %v893, %v896
      %vm898 = vweird.f32 %v737
      %vm899 = vweird.f32 %v893
      %vm900 = vmor %vm898, %vm899
      %v901 = vsel %vm900, %v893, %v897
      %v902 = vand.u32 2147483647, %v737
      %vm903 = vcmp.eq.f32.partialorder %v902, 8.507059e+37
      %v904 = vand.u32 %v737, 2147483648
      %v905 = vor.u32 1.1754944e-38, %v904
      %v906 = vsel %vm903, %v905, %v901
      %v907 = vmul.f32 1.0, %v906
      %v908 = vrcp.pop %v738
      %v909 = vmul.f32 %v738, %v908
      %v910 = vsub.f32 1.0, %v909
      %v911 = vmul.f32 %v908, %v910
      %v912 = vadd.f32 %v908, %v911
      %vm913 = vweird.f32 %v738
      %vm914 = vweird.f32 %v908
      %vm915 = vmor %vm913, %vm914
      %v916 = vsel %vm915, %v908, %v912
      %v917 = vand.u32 2147483647, %v738
      %vm918 = vcmp.eq.f32.partialorder %v917, 8.507059e+37
      %v919 = vand.u32 %v738, 2147483648
      %v920 = vor.u32 1.1754944e-38, %v919
      %v921 = vsel %vm918, %v920, %v916
      %v922 = vmul.f32 1.0, %v921
      %v923 = vrcp.pop %v739
      %v924 = vmul.f32 %v739, %v923
      %v925 = vsub.f32 1.0, %v924
      %v926 = vmul.f32 %v923, %v925
      %v927 = vadd.f32 %v923, %v926
      %vm928 = vweird.f32 %v739
      %vm929 = vweird.f32 %v923
      %vm930 = vmor %vm928, %vm929
      %v931 = vsel %vm930, %v923, %v927
      %v932 = vand.u32 2147483647, %v739
      %vm933 = vcmp.eq.f32.partialorder %v932, 8.507059e+37
      %v934 = vand.u32 %v739, 2147483648
      %v935 = vor.u32 1.1754944e-38, %v934
      %v936 = vsel %vm933, %v935, %v931
      %v937 = vmul.f32 1.0, %v936
      %v938 = vrcp.pop %v740
      %v939 = vmul.f32 %v740, %v938
      %v940 = vsub.f32 1.0, %v939
      %v941 = vmul.f32 %v938, %v940
      %v942 = vadd.f32 %v938, %v941
      %vm943 = vweird.f32 %v740
      %vm944 = vweird.f32 %v938
      %vm945 = vmor %vm943, %vm944
      %v946 = vsel %vm945, %v938, %v942
      %v947 = vand.u32 2147483647, %v740
      %vm948 = vcmp.eq.f32.partialorder %v947, 8.507059e+37
      %v949 = vand.u32 %v740, 2147483648
      %v950 = vor.u32 1.1754944e-38, %v949
      %v951 = vsel %vm948, %v950, %v946
      %v952 = vmul.f32 1.0, %v951
      %v953 = vrcp.pop %v741
      %v954 = vmul.f32 %v741, %v953
      %v955 = vsub.f32 1.0, %v954
      %v956 = vmul.f32 %v953, %v955
      %v957 = vadd.f32 %v953, %v956
      %vm958 = vweird.f32 %v741
      %vm959 = vweird.f32 %v953
      %vm960 = vmor %vm958, %vm959
      %v961 = vsel %vm960, %v953, %v957
      %v962 = vand.u32 2147483647, %v741
      %vm963 = vcmp.eq.f32.partialorder %v962, 8.507059e+37
      %v964 = vand.u32 %v741, 2147483648
      %v965 = vor.u32 1.1754944e-38, %v964
      %v966 = vsel %vm963, %v965, %v961
      %v967 = vmul.f32 1.0, %v966
      %v968 = vrcp.pop %v742
      %v969 = vmul.f32 %v742, %v968
      %v970 = vsub.f32 1.0, %v969
      %v971 = vmul.f32 %v968, %v970
      %v972 = vadd.f32 %v968, %v971
      %vm973 = vweird.f32 %v742
      %vm974 = vweird.f32 %v968
      %vm975 = vmor %vm973, %vm974
      %v976 = vsel %vm975, %v968, %v972
      %v977 = vand.u32 2147483647, %v742
      %vm978 = vcmp.eq.f32.partialorder %v977, 8.507059e+37
      %v979 = vand.u32 %v742, 2147483648
      %v980 = vor.u32 1.1754944e-38, %v979
      %v981 = vsel %vm978, %v980, %v976
      %v982 = vmul.f32 1.0, %v981
      %v983 = vmul.f32 %v663, %v757
      %v984 = vmul.f32 %v664, %v772
      %v985 = vmul.f32 %v665, %v787
      %v986 = vmul.f32 %v666, %v802
      %v987 = vmul.f32 %v667, %v817
      %v988 = vmul.f32 %v668, %v832
      %v989 = vmul.f32 %v669, %v847
      %v990 = vmul.f32 %v670, %v862
      %v991 = vmul.f32 %v671, %v877
      %v992 = vmul.f32 %v672, %v892
      %v993 = vmul.f32 %v673, %v907
      %v994 = vmul.f32 %v674, %v922
      %v995 = vmul.f32 %v675, %v937
      %v996 = vmul.f32 %v676, %v952
      %v997 = vmul.f32 %v677, %v967
      %v998 = vmul.f32 %v678, %v982
      %vm1019 = vcmask 1040384
      %v1020 = vrot.slane %v577, 7
      %v1021 = vrot.slane %v578, 7
      %v1022 = vsel %vm1019, %v1020, %v1021
      %v1023 = vrot.slane %v983, 7
      %v1024 = vrot.slane %v984, 7
      %v1025 = vsel %vm1019, %v1023, %v1024
      %v1026 = vrot.slane %v985, 7
      %v1027 = vrot.slane %v986, 7
      %v1028 = vsel %vm1019, %v1026, %v1027
      %v1029 = vrot.slane %v987, 7
      %v1030 = vrot.slane %v988, 7
      %v1031 = vsel %vm1019, %v1029, %v1030
      %v1032 = vrot.slane %v989, 7
      %v1033 = vrot.slane %v990, 7
      %v1034 = vsel %vm1019, %v1032, %v1033
      %v1035 = vrot.slane %v991, 7
      %v1036 = vrot.slane %v992, 7
      %v1037 = vsel %vm1019, %v1035, %v1036
      %v1038 = vrot.slane %v993, 7
      %v1039 = vrot.slane %v994, 7
      %v1040 = vsel %vm1019, %v1038, %v1039
      %v1041 = vrot.slane %v995, 7
      %v1042 = vrot.slane %v996, 7
      %v1043 = vsel %vm1019, %v1041, %v1042
      %v1044 = vrot.slane %v997, 7
      %v1045 = vrot.slane %v998, 7
      %v1046 = vsel %vm1019, %v1044, %v1045
      %v1047 = vrot.slane %v629, 7
      %v1048 = vrot.slane %v630, 7
      %v1049 = vsel %vm1019, %v1047, %v1048
      %v1070 = vsel %vm1019, 0.0, %v1020
      %v1071 = vsel %vm1019, 0.0, %v1023
      %v1072 = vsel %vm1019, 0.0, %v1026
      %v1073 = vsel %vm1019, 0.0, %v1029
      %v1074 = vsel %vm1019, 0.0, %v1032
      %v1075 = vsel %vm1019, 0.0, %v1035
      %v1076 = vsel %vm1019, 0.0, %v1038
      %v1077 = vsel %vm1019, 0.0, %v1041
      %v1078 = vsel %vm1019, 0.0, %v1044
      %v1079 = vsel %vm1019, 0.0, %v1047
      %vm1080 = vcmask 1046528
      %v1081 = vrot.slane %v577, 1
      %v1082 = vrot.slane %v578, 1
      %v1083 = vsel %vm1080, %v1081, %v1082
      %v1084 = vrot.slane %v983, 1
      %v1085 = vrot.slane %v984, 1
      %v1086 = vsel %vm1080, %v1084, %v1085
      %v1087 = vrot.slane %v985, 1
      %v1088 = vrot.slane %v986, 1
      %v1089 = vsel %vm1080, %v1087, %v1088
      %v1090 = vrot.slane %v987, 1
      %v1091 = vrot.slane %v988, 1
      %v1092 = vsel %vm1080, %v1090, %v1091
      %v1093 = vrot.slane %v989, 1
      %v1094 = vrot.slane %v990, 1
      %v1095 = vsel %vm1080, %v1093, %v1094
      %v1096 = vrot.slane %v991, 1
      %v1097 = vrot.slane %v992, 1
      %v1098 = vsel %vm1080, %v1096, %v1097
      %v1099 = vrot.slane %v993, 1
      %v1100 = vrot.slane %v994, 1
      %v1101 = vsel %vm1080, %v1099, %v1100
      %v1102 = vrot.slane %v995, 1
      %v1103 = vrot.slane %v996, 1
      %v1104 = vsel %vm1080, %v1102, %v1103
      %v1105 = vrot.slane %v997, 1
      %v1106 = vrot.slane %v998, 1
      %v1107 = vsel %vm1080, %v1105, %v1106
      %v1108 = vrot.slane %v629, 1
      %v1109 = vrot.slane %v630, 1
      %v1110 = vsel %vm1080, %v1108, %v1109
      %v1121 = vsel %vm1080, %v1082, 0.0
      %v1122 = vsel %vm1080, %v1085, 0.0
      %v1123 = vsel %vm1080, %v1088, 0.0
      %v1124 = vsel %vm1080, %v1091, 0.0
      %v1125 = vsel %vm1080, %v1094, 0.0
      %v1126 = vsel %vm1080, %v1097, 0.0
      %v1127 = vsel %vm1080, %v1100, 0.0
      %v1128 = vsel %vm1080, %v1103, 0.0
      %v1129 = vsel %vm1080, %v1106, 0.0
      %v1130 = vsel %vm1080, %v1109, 0.0
      %1131 = vrot.lane.b32.xlu0 %v577, 4
      %v1132 = vpop.permute.xlu0 %1131
      %1133 = vrot.lane.b32.xlu0 %v578, 4
      %v1134 = vpop.permute.xlu0 %1133
      %1135 = vrot.lane.b32.xlu0 %v983, 4
      %v1136 = vpop.permute.xlu0 %1135
      %1137 = vrot.lane.b32.xlu0 %v984, 4
      %v1138 = vpop.permute.xlu0 %1137
      %1139 = vrot.lane.b32.xlu0 %v985, 4
      %v1140 = vpop.permute.xlu0 %1139
      %1141 = vrot.lane.b32.xlu0 %v986, 4
      %v1142 = vpop.permute.xlu0 %1141
      %1143 = vrot.lane.b32.xlu0 %v987, 4
      %v1144 = vpop.permute.xlu0 %1143
      %1145 = vrot.lane.b32.xlu0 %v988, 4
      %v1146 = vpop.permute.xlu0 %1145
      %1147 = vrot.lane.b32.xlu0 %v989, 4
      %v1148 = vpop.permute.xlu0 %1147
      %1149 = vrot.lane.b32.xlu0 %v990, 4
      %v1150 = vpop.permute.xlu0 %1149
      %1151 = vrot.lane.b32.xlu0 %v991, 4
      %v1152 = vpop.permute.xlu0 %1151
      %1153 = vrot.lane.b32.xlu0 %v992, 4
      %v1154 = vpop.permute.xlu0 %1153
      %1155 = vrot.lane.b32.xlu0 %v993, 4
      %v1156 = vpop.permute.xlu0 %1155
      %1157 = vrot.lane.b32.xlu0 %v994, 4
      %v1158 = vpop.permute.xlu0 %1157
      %1159 = vrot.lane.b32.xlu0 %v995, 4
      %v1160 = vpop.permute.xlu0 %1159
      %1161 = vrot.lane.b32.xlu0 %v996, 4
      %v1162 = vpop.permute.xlu0 %1161
      %1163 = vrot.lane.b32.xlu0 %v997, 4
      %v1164 = vpop.permute.xlu0 %1163
      %1165 = vrot.lane.b32.xlu0 %v998, 4
      %v1166 = vpop.permute.xlu0 %1165
      %1167 = vrot.lane.b32.xlu0 %v629, 4
      %v1168 = vpop.permute.xlu0 %1167
      %1169 = vrot.lane.b32.xlu0 %v630, 4
      %v1170 = vpop.permute.xlu0 %1169
      %1201 = vrot.lane.b32.xlu0 %v1083, 8
      %v1202 = vpop.permute.xlu0 %1201
      %1203 = vrot.lane.b32.xlu0 %v1121, 8
      %v1204 = vpop.permute.xlu0 %1203
      %1205 = vrot.lane.b32.xlu0 %v1086, 8
      %v1206 = vpop.permute.xlu0 %1205
      %1207 = vrot.lane.b32.xlu0 %v1122, 8
      %v1208 = vpop.permute.xlu0 %1207
      %1209 = vrot.lane.b32.xlu0 %v1089, 8
      %v1210 = vpop.permute.xlu0 %1209
      %1211 = vrot.lane.b32.xlu0 %v1123, 8
      %v1212 = vpop.permute.xlu0 %1211
      %1213 = vrot.lane.b32.xlu0 %v1092, 8
      %v1214 = vpop.permute.xlu0 %1213
      %1215 = vrot.lane.b32.xlu0 %v1124, 8
      %v1216 = vpop.permute.xlu0 %1215
      %1217 = vrot.lane.b32.xlu0 %v1095, 8
      %v1218 = vpop.permute.xlu0 %1217
      %1219 = vrot.lane.b32.xlu0 %v1125, 8
      %v1220 = vpop.permute.xlu0 %1219
      %1221 = vrot.lane.b32.xlu0 %v1098, 8
      %v1222 = vpop.permute.xlu0 %1221
      %1223 = vrot.lane.b32.xlu0 %v1126, 8
      %v1224 = vpop.permute.xlu0 %1223
      %1225 = vrot.lane.b32.xlu0 %v1101, 8
      %v1226 = vpop.permute.xlu0 %1225
      %1227 = vrot.lane.b32.xlu0 %v1127, 8
      %v1228 = vpop.permute.xlu0 %1227
      %1229 = vrot.lane.b32.xlu0 %v1104, 8
      %v1230 = vpop.permute.xlu0 %1229
      %1231 = vrot.lane.b32.xlu0 %v1128, 8
      %v1232 = vpop.permute.xlu0 %1231
      %1233 = vrot.lane.b32.xlu0 %v1107, 8
      %v1234 = vpop.permute.xlu0 %1233
      %1235 = vrot.lane.b32.xlu0 %v1129, 8
      %v1236 = vpop.permute.xlu0 %1235
      %1237 = vrot.lane.b32.xlu0 %v1110, 8
      %v1238 = vpop.permute.xlu0 %1237
      %1239 = vrot.lane.b32.xlu0 %v1130, 8
      %v1240 = vpop.permute.xlu0 %1239
      %vm1261 = vcmask 31744
      %v1262 = vsel %vm1261, %v1070, %v1132
      %v1263 = vsel %vm1261, %v1022, %v1134
      %v1264 = vsel %vm1261, %v1071, %v1136
      %v1265 = vsel %vm1261, %v1025, %v1138
      %v1266 = vsel %vm1261, %v1072, %v1140
      %v1267 = vsel %vm1261, %v1028, %v1142
      %v1268 = vsel %vm1261, %v1073, %v1144
      %v1269 = vsel %vm1261, %v1031, %v1146
      %v1270 = vsel %vm1261, %v1074, %v1148
      %v1271 = vsel %vm1261, %v1034, %v1150
      %v1272 = vsel %vm1261, %v1075, %v1152
      %v1273 = vsel %vm1261, %v1037, %v1154
      %v1274 = vsel %vm1261, %v1076, %v1156
      %v1275 = vsel %vm1261, %v1040, %v1158
      %v1276 = vsel %vm1261, %v1077, %v1160
      %v1277 = vsel %vm1261, %v1043, %v1162
      %v1278 = vsel %vm1261, %v1078, %v1164
      %v1279 = vsel %vm1261, %v1046, %v1166
      %v1280 = vsel %vm1261, %v1079, %v1168
      %v1281 = vsel %vm1261, %v1049, %v1170
      %vm1282 = vcmask 64512
      %v1283 = vsel %vm1282, %v1262, %v1202
      %v1284 = vsel %vm1282, %v1263, %v1204
      %v1285 = vsel %vm1282, %v1264, %v1206
      %v1286 = vsel %vm1282, %v1265, %v1208
      %v1287 = vsel %vm1282, %v1266, %v1210
      %v1288 = vsel %vm1282, %v1267, %v1212
      %v1289 = vsel %vm1282, %v1268, %v1214
      %v1290 = vsel %vm1282, %v1269, %v1216
      %v1291 = vsel %vm1282, %v1270, %v1218
      %v1292 = vsel %vm1282, %v1271, %v1220
      %v1293 = vsel %vm1282, %v1272, %v1222
      %v1294 = vsel %vm1282, %v1273, %v1224
      %v1295 = vsel %vm1282, %v1274, %v1226
      %v1296 = vsel %vm1282, %v1275, %v1228
      %v1297 = vsel %vm1282, %v1276, %v1230
      %v1298 = vsel %vm1282, %v1277, %v1232
      %v1299 = vsel %vm1282, %v1278, %v1234
      %v1300 = vsel %vm1282, %v1279, %v1236
      %v1301 = vsel %vm1282, %v1280, %v1238
      %v1302 = vsel %vm1282, %v1281, %v1240
      %v1303 = vld [vmem:[%s5] sm:$0xff]
      %v1304 = vld [vmem:[%s5 + $0x8] sm:$0xf]
      %s1305 = scalar_lea.vmem %s5, 16
      %v1306 = vld [vmem:[%s1305] sm:$0xff]
      %v1307 = vld [vmem:[%s1305 + $0x8] sm:$0xf]
      %vm1308 = vcmask 97280
      %v1310 = vsel %vm1308, %v1285, 0
      %v1313 = vsel %vm1308, %v1286, 0
      %v1316 = vsel %vm1308, %v1287, 0
      %v1319 = vsel %vm1308, %v1288, 0
      %v1322 = vsel %vm1308, %v1289, 0
      %v1325 = vsel %vm1308, %v1290, 0
      %v1328 = vsel %vm1308, %v1291, 0
      %v1331 = vsel %vm1308, %v1292, 0
      %v1334 = vsel %vm1308, %v1293, 0
      %v1337 = vsel %vm1308, %v1294, 0
      %v1340 = vsel %vm1308, %v1295, 0
      %v1343 = vsel %vm1308, %v1296, 0
      %v1346 = vsel %vm1308, %v1297, 0
      %v1349 = vsel %vm1308, %v1298, 0
      %v1352 = vsel %vm1308, %v1299, 0
      %v1355 = vsel %vm1308, %v1300, 0
      %vm1357 = vcmask 1043456
      %v1359 = vsel %vm1357, %v1307, 0
      %1361 = vmatpush.msra.mxu0 0.0
      %1362 = vmatpush.msra.mxu0 0.0
      %1363 = vmatpush.msra.mxu0 0.0
      %1364 = vmatpush.msra.mxu0 0.0
      %1365 = vmatpush.msra.mxu0 0.0
      %1366 = vmatpush.msra.mxu0 0.0
      %1367 = vmatpush.msra.mxu0 0.0
      %1368 = vmatpush.msra.mxu0 0.0
      %1369 = vmatpush.msra.mxu0 0.0
      %1370 = vmatpush.msra.mxu0 0.0
      %1371 = vmatpush.msra.mxu0 0.0
      %1372 = vmatpush.msra.mxu0 0.0
      %1373 = vmatpush.msra.mxu0 0.0
      %1374 = vmatpush.msra.mxu0 0.0
      %1375 = vmatpush.msra.mxu0 %v1359
      %1376 = vmatpush.msra.mxu0 %v1306
      %1377 = vmatmul.f32.gmra.mxu0 %v1310
      %v1378 = vpop.f32.mrf.mxu0
      %v1379 = vadd.f32 0.0, %v1378
      %1380 = vmatmul.f32.gmra.mxu0 %v1313
      %v1381 = vpop.f32.mrf.mxu0
      %v1382 = vadd.f32 0.0, %v1381
      %1383 = vmatmul.f32.gmra.mxu0 %v1316
      %v1384 = vpop.f32.mrf.mxu0
      %v1385 = vadd.f32 0.0, %v1384
      %1386 = vmatmul.f32.gmra.mxu0 %v1319
      %v1387 = vpop.f32.mrf.mxu0
      %v1388 = vadd.f32 0.0, %v1387
      %1389 = vmatmul.f32.gmra.mxu0 %v1322
      %v1390 = vpop.f32.mrf.mxu0
      %v1391 = vadd.f32 0.0, %v1390
      %1392 = vmatmul.f32.gmra.mxu0 %v1325
      %v1393 = vpop.f32.mrf.mxu0
      %v1394 = vadd.f32 0.0, %v1393
      %1395 = vmatmul.f32.gmra.mxu0 %v1328
      %v1396 = vpop.f32.mrf.mxu0
      %v1397 = vadd.f32 0.0, %v1396
      %1398 = vmatmul.f32.gmra.mxu0 %v1331
      %v1399 = vpop.f32.mrf.mxu0
      %v1400 = vadd.f32 0.0, %v1399
      %1401 = vmatmul.f32.gmra.mxu0 %v1334
      %v1402 = vpop.f32.mrf.mxu0
      %v1403 = vadd.f32 0.0, %v1402
      %1404 = vmatmul.f32.gmra.mxu0 %v1337
      %v1405 = vpop.f32.mrf.mxu0
      %v1406 = vadd.f32 0.0, %v1405
      %1407 = vmatmul.f32.gmra.mxu0 %v1340
      %v1408 = vpop.f32.mrf.mxu0
      %v1409 = vadd.f32 0.0, %v1408
      %1410 = vmatmul.f32.gmra.mxu0 %v1343
      %v1411 = vpop.f32.mrf.mxu0
      %v1412 = vadd.f32 0.0, %v1411
      %1413 = vmatmul.f32.gmra.mxu0 %v1346
      %v1414 = vpop.f32.mrf.mxu0
      %v1415 = vadd.f32 0.0, %v1414
      %1416 = vmatmul.f32.gmra.mxu0 %v1349
      %v1417 = vpop.f32.mrf.mxu0
      %v1418 = vadd.f32 0.0, %v1417
      %1419 = vmatmul.f32.gmra.mxu0 %v1352
      %v1420 = vpop.f32.mrf.mxu0
      %v1421 = vadd.f32 0.0, %v1420
      %1422 = vmatmul.f32.gmra.mxu0 %v1355
      %v1423 = vpop.f32.mrf.mxu0
      %v1424 = vadd.f32 0.0, %v1423
      %1425 = vdwg.mxu0
      %v1427 = vsel %vm1308, %v1283, 0
      %v1430 = vsel %vm1308, %v1284, 0
      %v1433 = vsel %vm1357, %v1304, 0
      %1435 = vmatpush.msra.mxu0 0.0
      %1436 = vmatpush.msra.mxu0 0.0
      %1437 = vmatpush.msra.mxu0 0.0
      %1438 = vmatpush.msra.mxu0 0.0
      %1439 = vmatpush.msra.mxu0 0.0
      %1440 = vmatpush.msra.mxu0 0.0
      %1441 = vmatpush.msra.mxu0 0.0
      %1442 = vmatpush.msra.mxu0 0.0
      %1443 = vmatpush.msra.mxu0 0.0
      %1444 = vmatpush.msra.mxu0 0.0
      %1445 = vmatpush.msra.mxu0 0.0
      %1446 = vmatpush.msra.mxu0 0.0
      %1447 = vmatpush.msra.mxu0 0.0
      %1448 = vmatpush.msra.mxu0 0.0
      %1449 = vmatpush.msra.mxu0 %v1433
      %1450 = vmatpush.msra.mxu0 %v1303
      %1451 = vmatmul.f32.gmra.mxu0 %v1427
      %v1452 = vpop.f32.mrf.mxu0
      %v1453 = vadd.f32 %v1379, %v1452
      %1454 = vmatmul.f32.gmra.mxu0 %v1430
      %v1455 = vpop.f32.mrf.mxu0
      %v1456 = vadd.f32 %v1382, %v1455
      %1457 = vmatmul.f32.gmra.mxu0 %v1310
      %v1458 = vpop.f32.mrf.mxu0
      %v1459 = vadd.f32 %v1385, %v1458
      %1460 = vmatmul.f32.gmra.mxu0 %v1313
      %v1461 = vpop.f32.mrf.mxu0
      %v1462 = vadd.f32 %v1388, %v1461
      %1463 = vmatmul.f32.gmra.mxu0 %v1316
      %v1464 = vpop.f32.mrf.mxu0
      %v1465 = vadd.f32 %v1391, %v1464
      %1466 = vmatmul.f32.gmra.mxu0 %v1319
      %v1467 = vpop.f32.mrf.mxu0
      %v1468 = vadd.f32 %v1394, %v1467
      %1469 = vmatmul.f32.gmra.mxu0 %v1322
      %v1470 = vpop.f32.mrf.mxu0
      %v1471 = vadd.f32 %v1397, %v1470
      %1472 = vmatmul.f32.gmra.mxu0 %v1325
      %v1473 = vpop.f32.mrf.mxu0
      %v1474 = vadd.f32 %v1400, %v1473
      %1475 = vmatmul.f32.gmra.mxu0 %v1328
      %v1476 = vpop.f32.mrf.mxu0
      %v1477 = vadd.f32 %v1403, %v1476
      %1478 = vmatmul.f32.gmra.mxu0 %v1331
      %v1479 = vpop.f32.mrf.mxu0
      %v1480 = vadd.f32 %v1406, %v1479
      %1481 = vmatmul.f32.gmra.mxu0 %v1334
      %v1482 = vpop.f32.mrf.mxu0
      %v1483 = vadd.f32 %v1409, %v1482
      %1484 = vmatmul.f32.gmra.mxu0 %v1337
      %v1485 = vpop.f32.mrf.mxu0
      %v1486 = vadd.f32 %v1412, %v1485
      %1487 = vmatmul.f32.gmra.mxu0 %v1340
      %v1488 = vpop.f32.mrf.mxu0
      %v1489 = vadd.f32 %v1415, %v1488
      %1490 = vmatmul.f32.gmra.mxu0 %v1343
      %v1491 = vpop.f32.mrf.mxu0
      %v1492 = vadd.f32 %v1418, %v1491
      %1493 = vmatmul.f32.gmra.mxu0 %v1346
      %v1494 = vpop.f32.mrf.mxu0
      %v1495 = vadd.f32 %v1421, %v1494
      %1496 = vmatmul.f32.gmra.mxu0 %v1349
      %v1497 = vpop.f32.mrf.mxu0
      %v1498 = vadd.f32 %v1424, %v1497
      %1499 = vdwg.mxu0
      %s1500 = scalar_lea.vmem %s5, 32
      %v1501 = vld [vmem:[%s1500] sm:$0xff]
      %v1502 = vld [vmem:[%s1500 + $0x8] sm:$0xf]
      %v1504 = vsel %vm1308, %v1301, 0
      %v1507 = vsel %vm1308, %v1302, 0
      %v1510 = vsel %vm1357, %v1502, 0
      %1512 = vmatpush.msra.mxu0 0.0
      %1513 = vmatpush.msra.mxu0 0.0
      %1514 = vmatpush.msra.mxu0 0.0
      %1515 = vmatpush.msra.mxu0 0.0
      %1516 = vmatpush.msra.mxu0 0.0
      %1517 = vmatpush.msra.mxu0 0.0
      %1518 = vmatpush.msra.mxu0 0.0
      %1519 = vmatpush.msra.mxu0 0.0
      %1520 = vmatpush.msra.mxu0 0.0
      %1521 = vmatpush.msra.mxu0 0.0
      %1522 = vmatpush.msra.mxu0 0.0
      %1523 = vmatpush.msra.mxu0 0.0
      %1524 = vmatpush.msra.mxu0 0.0
      %1525 = vmatpush.msra.mxu0 0.0
      %1526 = vmatpush.msra.mxu0 %v1510
      %1527 = vmatpush.msra.mxu0 %v1501
      %1528 = vmatmul.f32.gmra.mxu0 %v1316
      %v1529 = vpop.f32.mrf.mxu0
      %v1530 = vadd.f32 0.0, %v1529
      %1531 = vmatmul.f32.gmra.mxu0 %v1319
      %v1532 = vpop.f32.mrf.mxu0
      %v1533 = vadd.f32 0.0, %v1532
      %1534 = vmatmul.f32.gmra.mxu0 %v1322
      %v1535 = vpop.f32.mrf.mxu0
      %v1536 = vadd.f32 0.0, %v1535
      %1537 = vmatmul.f32.gmra.mxu0 %v1325
      %v1538 = vpop.f32.mrf.mxu0
      %v1539 = vadd.f32 0.0, %v1538
      %1540 = vmatmul.f32.gmra.mxu0 %v1328
      %v1541 = vpop.f32.mrf.mxu0
      %v1542 = vadd.f32 0.0, %v1541
      %1543 = vmatmul.f32.gmra.mxu0 %v1331
      %v1544 = vpop.f32.mrf.mxu0
      %v1545 = vadd.f32 0.0, %v1544
      %1546 = vmatmul.f32.gmra.mxu0 %v1334
      %v1547 = vpop.f32.mrf.mxu0
      %v1548 = vadd.f32 0.0, %v1547
      %1549 = vmatmul.f32.gmra.mxu0 %v1337
      %v1550 = vpop.f32.mrf.mxu0
      %v1551 = vadd.f32 0.0, %v1550
      %1552 = vmatmul.f32.gmra.mxu0 %v1340
      %v1553 = vpop.f32.mrf.mxu0
      %v1554 = vadd.f32 0.0, %v1553
      %1555 = vmatmul.f32.gmra.mxu0 %v1343
      %v1556 = vpop.f32.mrf.mxu0
      %v1557 = vadd.f32 0.0, %v1556
      %1558 = vmatmul.f32.gmra.mxu0 %v1346
      %v1559 = vpop.f32.mrf.mxu0
      %v1560 = vadd.f32 0.0, %v1559
      %1561 = vmatmul.f32.gmra.mxu0 %v1349
      %v1562 = vpop.f32.mrf.mxu0
      %v1563 = vadd.f32 0.0, %v1562
      %1564 = vmatmul.f32.gmra.mxu0 %v1352
      %v1565 = vpop.f32.mrf.mxu0
      %v1566 = vadd.f32 0.0, %v1565
      %1567 = vmatmul.f32.gmra.mxu0 %v1355
      %v1568 = vpop.f32.mrf.mxu0
      %v1569 = vadd.f32 0.0, %v1568
      %1570 = vmatmul.f32.gmra.mxu0 %v1504
      %v1571 = vpop.f32.mrf.mxu0
      %v1572 = vadd.f32 0.0, %v1571
      %1573 = vmatmul.f32.gmra.mxu0 %v1507
      %v1574 = vpop.f32.mrf.mxu0
      %v1575 = vadd.f32 0.0, %v1574
      %1576 = vdwg.mxu0
      %v1577 = vadd.f32 %v1453, %v1530
      %v1578 = vadd.f32 %v1456, %v1533
      %v1579 = vadd.f32 %v1459, %v1536
      %v1580 = vadd.f32 %v1462, %v1539
      %v1581 = vadd.f32 %v1465, %v1542
      %v1582 = vadd.f32 %v1468, %v1545
      %v1583 = vadd.f32 %v1471, %v1548
      %v1584 = vadd.f32 %v1474, %v1551
      %v1585 = vadd.f32 %v1477, %v1554
      %v1586 = vadd.f32 %v1480, %v1557
      %v1587 = vadd.f32 %v1483, %v1560
      %v1588 = vadd.f32 %v1486, %v1563
      %v1589 = vadd.f32 %v1489, %v1566
      %v1590 = vadd.f32 %v1492, %v1569
      %v1591 = vadd.f32 %v1495, %v1572
      %v1592 = vadd.f32 %v1498, %v1575
      %v1593 = vld [vmem:[%s6] sm:$0x1]
      %v1595 = vperm.slane %v1593, 0
      %v1597 = vadd.f32 %v1577, %v1595
      %v1598 = vadd.f32 %v1578, %v1595
      %v1599 = vadd.f32 %v1579, %v1595
      %v1600 = vadd.f32 %v1580, %v1595
      %v1601 = vadd.f32 %v1581, %v1595
      %v1602 = vadd.f32 %v1582, %v1595
      %v1603 = vadd.f32 %v1583, %v1595
      %v1604 = vadd.f32 %v1584, %v1595
      %v1605 = vadd.f32 %v1585, %v1595
      %v1606 = vadd.f32 %v1586, %v1595
      %v1607 = vadd.f32 %v1587, %v1595
      %v1608 = vadd.f32 %v1588, %v1595
      %v1609 = vadd.f32 %v1589, %v1595
      %v1610 = vadd.f32 %v1590, %v1595
      %v1611 = vadd.f32 %v1591, %v1595
      %v1612 = vadd.f32 %v1592, %v1595
      %v1613 = vsel %vm1282, %v1597, 0.0
      %v1614 = vsel %vm1282, %v1598, 0.0
      %v1615 = vadd.f32 %v1613, %v1614
      %v1616 = vsel %vm1282, %v1599, 0.0
      %v1617 = vadd.f32 %v1615, %v1616
      %v1618 = vsel %vm1282, %v1600, 0.0
      %v1619 = vadd.f32 %v1617, %v1618
      %v1620 = vsel %vm1282, %v1601, 0.0
      %v1621 = vadd.f32 %v1619, %v1620
      %v1622 = vsel %vm1282, %v1602, 0.0
      %v1623 = vadd.f32 %v1621, %v1622
      %v1624 = vsel %vm1282, %v1603, 0.0
      %v1625 = vadd.f32 %v1623, %v1624
      %v1626 = vsel %vm1282, %v1604, 0.0
      %v1627 = vadd.f32 %v1625, %v1626
      %v1628 = vsel %vm1282, %v1605, 0.0
      %v1629 = vadd.f32 %v1627, %v1628
      %v1630 = vsel %vm1282, %v1606, 0.0
      %v1631 = vadd.f32 %v1629, %v1630
      %v1632 = vsel %vm1282, %v1607, 0.0
      %v1633 = vadd.f32 %v1631, %v1632
      %v1634 = vsel %vm1282, %v1608, 0.0
      %v1635 = vadd.f32 %v1633, %v1634
      %v1636 = vsel %vm1282, %v1609, 0.0
      %v1637 = vadd.f32 %v1635, %v1636
      %v1638 = vsel %vm1282, %v1610, 0.0
      %v1639 = vadd.f32 %v1637, %v1638
      %v1640 = vsel %vm1282, %v1611, 0.0
      %v1641 = vadd.f32 %v1639, %v1640
      %v1642 = vsel %vm1282, %v1612, 0.0
      %v1643 = vadd.f32 %v1641, %v1642
      %v1644 = vrot.slane %v1643, 4
      %v1645 = vadd.f32 %v1643, %v1644
      %v1646 = vrot.slane %v1645, 2
      %v1647 = vadd.f32 %v1645, %v1646
      %v1648 = vrot.slane %v1647, 1
      %v1649 = vadd.f32 %v1647, %v1648
      %v1650 = vmul.f32 %v1597, %v1597
      %v1651 = vmul.f32 %v1598, %v1598
      %v1652 = vmul.f32 %v1599, %v1599
      %v1653 = vmul.f32 %v1600, %v1600
      %v1654 = vmul.f32 %v1601, %v1601
      %v1655 = vmul.f32 %v1602, %v1602
      %v1656 = vmul.f32 %v1603, %v1603
      %v1657 = vmul.f32 %v1604, %v1604
      %v1658 = vmul.f32 %v1605, %v1605
      %v1659 = vmul.f32 %v1606, %v1606
      %v1660 = vmul.f32 %v1607, %v1607
      %v1661 = vmul.f32 %v1608, %v1608
      %v1662 = vmul.f32 %v1609, %v1609
      %v1663 = vmul.f32 %v1610, %v1610
      %v1664 = vmul.f32 %v1611, %v1611
      %v1665 = vmul.f32 %v1612, %v1612
      %v1666 = vsel %vm1282, %v1650, 0.0
      %v1667 = vsel %vm1282, %v1651, 0.0
      %v1668 = vadd.f32 %v1666, %v1667
      %v1669 = vsel %vm1282, %v1652, 0.0
      %v1670 = vadd.f32 %v1668, %v1669
      %v1671 = vsel %vm1282, %v1653, 0.0
      %v1672 = vadd.f32 %v1670, %v1671
      %v1673 = vsel %vm1282, %v1654, 0.0
      %v1674 = vadd.f32 %v1672, %v1673
      %v1675 = vsel %vm1282, %v1655, 0.0
      %v1676 = vadd.f32 %v1674, %v1675
      %v1677 = vsel %vm1282, %v1656, 0.0
      %v1678 = vadd.f32 %v1676, %v1677
      %v1679 = vsel %vm1282, %v1657, 0.0
      %v1680 = vadd.f32 %v1678, %v1679
      %v1681 = vsel %vm1282, %v1658, 0.0
      %v1682 = vadd.f32 %v1680, %v1681
      %v1683 = vsel %vm1282, %v1659, 0.0
      %v1684 = vadd.f32 %v1682, %v1683
      %v1685 = vsel %vm1282, %v1660, 0.0
      %v1686 = vadd.f32 %v1684, %v1685
      %v1687 = vsel %vm1282, %v1661, 0.0
      %v1688 = vadd.f32 %v1686, %v1687
      %v1689 = vsel %vm1282, %v1662, 0.0
      %v1690 = vadd.f32 %v1688, %v1689
      %v1691 = vsel %vm1282, %v1663, 0.0
      %v1692 = vadd.f32 %v1690, %v1691
      %v1693 = vsel %vm1282, %v1664, 0.0
      %v1694 = vadd.f32 %v1692, %v1693
      %v1695 = vsel %vm1282, %v1665, 0.0
      %v1696 = vadd.f32 %v1694, %v1695
      %v1697 = vrot.slane %v1696, 4
      %v1698 = vadd.f32 %v1696, %v1697
      %v1699 = vrot.slane %v1698, 2
      %v1700 = vadd.f32 %v1698, %v1699
      %v1701 = vrot.slane %v1700, 1
      %v1702 = vadd.f32 %v1700, %v1701
      %v1703 = vld [vmem:[%s512] sm:$0x3]
      %v1704 = vsel %vm1019, %v1649, %v1702
      %v1705 = vadd.f32 %v1703, %v1704
      %vm1706 = vcmask 58368
      %1707 = vst.msk [vmem:[%s512] sm:$0x3] %vm1706, %v1705
      %1708 = vst.msk [vmem:[%s507] sm:$0xff] %vm1282, %v1597
      %1709 = vst.msk [vmem:[%s507 + $0x8] sm:$0xff] %vm1282, %v1598
      %1710 = vst.msk [vmem:[%s507 + $0x10] sm:$0xff] %vm1282, %v1599
      %1711 = vst.msk [vmem:[%s507 + $0x18] sm:$0xff] %vm1282, %v1600
      %1712 = vst.msk [vmem:[%s507 + $0x20] sm:$0xff] %vm1282, %v1601
      %1713 = vst.msk [vmem:[%s507 + $0x28] sm:$0xff] %vm1282, %v1602
      %1714 = vst.msk [vmem:[%s507 + $0x30] sm:$0xff] %vm1282, %v1603
      %1715 = vst.msk [vmem:[%s507 + $0x38] sm:$0xff] %vm1282, %v1604
      %1716 = vst.msk [vmem:[%s507 + $0x40] sm:$0xff] %vm1282, %v1605
      %1717 = vst.msk [vmem:[%s507 + $0x48] sm:$0xff] %vm1282, %v1606
      %1718 = vst.msk [vmem:[%s507 + $0x50] sm:$0xff] %vm1282, %v1607
      %1719 = vst.msk [vmem:[%s507 + $0x58] sm:$0xff] %vm1282, %v1608
      %1720 = vst.msk [vmem:[%s507 + $0x60] sm:$0xff] %vm1282, %v1609
      %1721 = vst.msk [vmem:[%s507 + $0x68] sm:$0xff] %vm1282, %v1610
      %1722 = vst.msk [vmem:[%s507 + $0x70] sm:$0xff] %vm1282, %v1611
      %1723 = vst.msk [vmem:[%s507 + $0x78] sm:$0xff] %vm1282, %v1612
      %s1724 = smul.u32 8, %s25
      %p1725 = scmp.lt.s32.totalorder %s24, 1
      %s1726 = scalar_select %p1725, %s24, 1
      %p1727 = scmp.lt.s32.totalorder %s1724, 15
      %s1728 = scalar_select %p1727, %s1724, 15
      %s1729 = smul.addr %s1728, 2
      %s1730 = smul.addr %s1726, 32
      %s1731 = sadd.s32 %s1729, %s1730
      %s1732 = smul.addr %s1731, 8
      %s1733 = scalar_lea.vmem %s7, %s1732
      %p1734 = scmp.lt.s32.totalorder %s24, 1
      %s1735 = scalar_select %p1734, %s24, 1
      %s1736 = smul.addr %s1735, 2
      %s1737 = scalar_lea.vmem %s8, %s1736
      // Predicated region
      $region53: #{resnet_block_2d.4} parent=47 // pred_check
        %p1738 = pneg %p246
      $region54: #{resnet_block_2d.4} parent=47 // pred_check_branch
        %1740 = sbr.rel (%p1738) target = $region56
      $region55: #{resnet_block_2d.4} parent=47 // pred_region
        %s1741 = smul.u32 8, %s25
      $region56: #{resnet_block_2d.4} parent=47 // pred_fallthru
        _
      // Predicated region
      $region57: #{resnet_block_2d.4} parent=47 // pred_check
        %p1742 = pneg %p272
      $region58: #{resnet_block_2d.4} parent=47 // pred_check_branch
        %1744 = sbr.rel (%p1742) target = $region60
      $region59: #{resnet_block_2d.4} parent=47 // pred_region
        _
      $region60: #{resnet_block_2d.4} parent=47 // pred_fallthru
        _
    $region48: #{resnet_block_2d.4} parent=5 // pred_fallthru
      _
    %p1745 = scmp.le.s32.totalorder 2, %s15
    // Predicated region
    $region61: #{resnet_block_2d.4} parent=5 // pred_check
      %p1746 = pneg %p1745
    $region62: #{resnet_block_2d.4} parent=5 // pred_check_branch
      %1748 = sbr.rel (%p1746) target = $region64
    $region63: #{resnet_block_2d.4} parent=5 // pred_region
      %s1749 = ssub.s32 %s15, 2
      // Predicated region
      $region65: #{resnet_block_2d.4} parent=63 // pred_check
        %p1750 = pneg %p252
      $region66: #{resnet_block_2d.4} parent=63 // pred_check_branch
        %1752 = sbr.rel (%p1750) target = $region68
      $region67: #{resnet_block_2d.4} parent=63 // pred_region
        %s1753 = smul.u32 8, %s27
        %p1754 = scmp.lt.s32.totalorder %s26, 1
        %s1755 = scalar_select %p1754, %s26, 1
        %p1756 = scmp.lt.s32.totalorder %s1753, 15
        %s1757 = scalar_select %p1756, %s1753, 15
        %s1758 = smul.addr %s1757, 2
        %s1759 = smul.addr %s1755, 32
        %s1760 = sadd.s32 %s1758, %s1759
        %s1761 = smul.addr %s1760, 8
        %s1762 = scalar_lea.vmem %s7, %s1761
      $region68: #{resnet_block_2d.4} parent=63 // pred_fallthru
        _
      // Predicated region
      $region69: #{resnet_block_2d.4} parent=63 // pred_check
        %p1763 = pneg %p278
      $region70: #{resnet_block_2d.4} parent=63 // pred_check_branch
        %1765 = sbr.rel (%p1763) target = $region72
      $region71: #{resnet_block_2d.4} parent=63 // pred_region
        %p1766 = scmp.lt.s32.totalorder %s26, 1
        %s1767 = scalar_select %p1766, %s26, 1
        %s1768 = smul.addr %s1767, 2
        %s1769 = scalar_lea.vmem %s8, %s1768
      $region72: #{resnet_block_2d.4} parent=63 // pred_fallthru
        _
    $region64: #{resnet_block_2d.4} parent=5 // pred_fallthru
      _
  $region6: #{resnet_block_2d.4} parent=0 // loop_footer
    %s19 = sadd.s32 1, %s15
  $region7: #{resnet_block_2d.4} parent=0 // loop_footer_branch
    %14 = sbr.rel target = $region3
  $region8: #{resnet_block_2d.4} parent=0 // loop_exit
    _

</llo_original>
